<compile_context>
chip_gen: v6e
topology: v6e:2x2x1
jax: 0.10.0
libtpu: 0.0.40
codegen_flags: <defaults>
</compile_context>

<pallas_src>
import numpy as np
import jax
import jax.numpy as jnp
from jax.experimental import pallas as pl
from jax.experimental.pallas import tpu as pltpu

# Static dimensions implied by the module (fc1 expects 8*8*8 -> input 3x32x32).
H1, W1, CIN = 32, 32, 3          # conv1 spatial / in-channels
C1, C2 = 16, 8                   # conv1 / conv2 out-channels
H2, W2 = 16, 16                  # after pool1
HP, WP = 8, 8                    # after pool2
LIN = W1 * CIN                   # 96  : conv1 input lanes  (w, ci)
L1 = W1 * C1                     # 512 : conv1 output lanes [even-w half | odd-w half]
L1C = L1 // 2                    # 256 : pooled conv1 lanes (wp, c1)
L2 = W2 * C2                     # 128 : conv2 output lanes [even-w half | odd-w half]
L2C = L2 // 2                    # 64  : pooled conv2 lanes (wp, c2)
NH, NOUT = 32, 2                 # fc1 hidden, fc2 out


def fused_net_kernel(x_ref, band1_ref, b1_ref, sel1_ref, band2_ref, b2_ref, sel2_ref,
                     w1_ref, bf1_ref, w2_ref, bf2_ref,
                     out_ref, c1_ref, pad2_ref):
    f32 = jnp.float32
    B = out_ref.shape[0]
    nc1 = B * (H1 + 2) - 2          # conv1 output rows (incl. 2 junk batch-seam rows)
    nc2 = B * (H2 + 2) - 2          # conv2 output rows (incl. junk seam rows)

    # ---- conv1: 3 banded MXU matmuls over the whole flat (rows=(b,h)) slab -----
    acc1 = jnp.dot(x_ref[0:nc1, :], band1_ref[0], preferred_element_type=f32)
    acc1 = acc1 + jnp.dot(x_ref[1:nc1 + 1, :], band1_ref[1], preferred_element_type=f32)
    acc1 = acc1 + jnp.dot(x_ref[2:nc1 + 2, :], band1_ref[2], preferred_element_type=f32)
    c1_ref[...] = acc1                                        # (66, 512) f32

    # ---- pool1 (vectorized): H-pair max = shifted-slab max + 0/1 row-select matmul;
    #      W-pair max = max of the even/odd lane halves (compacts 512 -> 256 lanes).
    mshift1 = jnp.maximum(c1_ref[0:nc1 - 1, :], c1_ref[1:nc1, :])
    pooled1 = jnp.dot(sel1_ref[...], mshift1, preferred_element_type=f32)   # (B*16, 512)
    act1 = jnp.tanh(jnp.maximum(pooled1[:, :L1C], pooled1[:, L1C:]) + b1_ref[...])

    # conv2 input slab: zero the H-pad rows once, then two contiguous block stores.
    pad2_ref[...] = jnp.zeros_like(pad2_ref)
    for b in range(B):
        pad2_ref[b * (H2 + 2) + 1: b * (H2 + 2) + 1 + H2, :] = (
            act1[b * H2:(b + 1) * H2, :].astype(pad2_ref.dtype))

    # ---- conv2: 3 banded MXU matmuls, K = 256 (compacted), output 128 lanes ----
    acc2 = jnp.dot(pad2_ref[0:nc2, :], band2_ref[0], preferred_element_type=f32)
    acc2 = acc2 + jnp.dot(pad2_ref[1:nc2 + 1, :], band2_ref[1], preferred_element_type=f32)
    acc2 = acc2 + jnp.dot(pad2_ref[2:nc2 + 2, :], band2_ref[2], preferred_element_type=f32)

    # ---- pool2 (vectorized, hp-major row order for fc1) ------------------------
    mshift2 = jnp.maximum(acc2[0:nc2 - 1, :], acc2[1:nc2, :])
    pooled2 = jnp.dot(sel2_ref[...], mshift2, preferred_element_type=f32)   # (8*B, 128)
    act2 = jnp.tanh(jnp.maximum(pooled2[:, :L2C], pooled2[:, L2C:]) + b2_ref[...])  # (8B, 64)

    # ---- fc1 (8 contiguous (B,64)x(64,32) matmuls) + tanh + fc2 (one matmul) ----
    accf = None
    for h in range(HP):
        part = jnp.dot(act2[h * B:(h + 1) * B, :], w1_ref[h], preferred_element_type=f32)
        accf = part if accf is None else accf + part
    hidden = jnp.tanh(accf + bf1_ref[...])                                  # (B, 32)
    out_ref[...] = jnp.dot(hidden, w2_ref[...], preferred_element_type=f32) + bf2_ref[...]


def build_kernel_params(params, batch):
    """One-time host-side repack of PyTorch-layout weights (device-resident after
    jnp.asarray).  Folds: dx taps + W zero-padding into band matrices, even/odd
    lane split (so W-pool = static lane-half max and the pooled slab is compacted),
    the H-pool row selection (0/1 matrices), and torch's NCHW flatten order."""
    c1w, c1b, c2w, c2b, f1w, f1b, f2w, f2b = [np.asarray(p, np.float32) for p in params]
    bf16 = jnp.bfloat16

    def olane1(wo):   # conv1 output lane-group start, even-w half then odd-w half
        return (wo // 2) * C1 + (0 if wo % 2 == 0 else L1C)

    def olane2(wo):
        return (wo // 2) * C2 + (0 if wo % 2 == 0 else L2C)

    band1 = np.zeros((3, LIN, L1), np.float32)           # conv1: (w,ci) -> (even|odd, c1)
    for dy in range(3):
        for dx in range(3):
            blk = c1w[:, :, dy, dx].T                    # (ci, co)
            for wo in range(W1):
                wi = wo + dx - 1
                if 0 <= wi < W1:
                    band1[dy, wi * CIN:(wi + 1) * CIN, olane1(wo):olane1(wo) + C1] = blk

    band2 = np.zeros((3, L1C, L2), np.float32)           # conv2: (wp,c1) -> (even|odd, c2)
    for dy in range(3):
        for dx in range(3):
            blk = c2w[:, :, dy, dx].T                    # (c1, co)
            for wo in range(W2):
                wi = wo + dx - 1
                if 0 <= wi < W2:
                    band2[dy, wi * C1:(wi + 1) * C1, olane2(wo):olane2(wo) + C2] = blk

    # H-pool row selectors: pooled row picks mshift[b*(H+2) + 2*hp]; junk batch-seam
    # rows are never selected.  sel1 rows are batch-major, sel2 rows hp-major (fc1).
    sel1 = np.zeros((batch * H2, batch * (H1 + 2) - 3), np.float32)
    for b in range(batch):
        for hp in range(H2):
            sel1[b * H2 + hp, b * (H1 + 2) + 2 * hp] = 1.0
    sel2 = np.zeros((HP * batch, batch * (H2 + 2) - 3), np.float32)
    for b in range(batch):
        for hp in range(HP):
            sel2[hp * batch + b, b * (H2 + 2) + 2 * hp] = 1.0

    # fc1 weights grouped per pooled row hp, lanes=(wp,c2), torch c*64+h*8+w order.
    w1p = np.zeros((HP, L2C, NH), np.float32)
    for hp in range(HP):
        for wp in range(WP):
            for c in range(C2):
                w1p[hp, wp * C2 + c, :] = f1w[:, c * (HP * WP) + hp * WP + wp]

    b1t = np.tile(c1b, W2).reshape(1, L1C)               # pooled conv1 bias (wp,c1)
    b2t = np.tile(c2b, WP).reshape(1, L2C)               # pooled conv2 bias (wp,c2)
    bf1 = f1b.reshape(1, NH)
    w2t = np.ascontiguousarray(f2w.T)                    # (32, 2)
    bf2 = f2b.reshape(1, NOUT)

    return (jnp.asarray(band1, bf16), jnp.asarray(b1t), jnp.asarray(sel1),
            jnp.asarray(band2, bf16), jnp.asarray(b2t), jnp.asarray(sel2),
            jnp.asarray(w1p), jnp.asarray(bf1), jnp.asarray(w2t), jnp.asarray(bf2))


@jax.jit
def net_forward(x_nchw, kparams):
    B = x_nchw.shape[0]
    # Single cheap relayout: NCHW -> NHWC -> (B,H,W*Cin), pre-pad H, flatten rows.
    x_slab = jnp.transpose(x_nchw, (0, 2, 3, 1)).reshape(B, H1, LIN)
    x_pad = jnp.pad(x_slab, ((0, 0), (1, 1), (0, 0))).reshape(B * (H1 + 2), LIN)
    x_pad = x_pad.astype(jnp.bfloat16)
    return pl.pallas_call(
        fused_net_kernel,
        out_shape=jax.ShapeDtypeStruct((B, NOUT), jnp.float32),
        in_specs=[pl.BlockSpec(memory_space=pltpu.MemorySpace.VMEM)] * (1 + len(kparams)),
        out_specs=pl.BlockSpec(memory_space=pltpu.MemorySpace.VMEM),
        scratch_shapes=[
            pltpu.VMEM((B * (H1 + 2) - 2, L1), jnp.float32),     # conv1 output rows
            pltpu.VMEM((B * (H2 + 2), L1C), jnp.bfloat16),       # H-padded conv2 input
        ],
    )(x_pad, *kparams)


def net_forward_ref(x_nchw, params):
    """Pure-JAX reference mirroring the PyTorch forward."""
    c1w, c1b, c2w, c2b, f1w, f1b, f2w, f2b = params

    def conv(x, w, b):
        y = jax.lax.conv_general_dilated(x, w, (1, 1), ((1, 1), (1, 1)),
                                         dimension_numbers=("NCHW", "OIHW", "NCHW"))
        return y + b[None, :, None, None]

    def pool(x):
        return jax.lax.reduce_window(x, -jnp.inf, jax.lax.max,
                                     (1, 1, 2, 2), (1, 1, 2, 2), "VALID")

    h = pool(jnp.tanh(conv(x_nchw, c1w, c1b)))
    h = pool(jnp.tanh(conv(h, c2w, c2b)))
    h = h.reshape(h.shape[0], -1)
    h = jnp.tanh(h @ f1w.T + f1b)
    return h @ f2w.T + f2b


if __name__ == "__main__":
    key = jax.random.PRNGKey(0)
    ks = jax.random.split(key, 9)

    # Deterministic parameters in native PyTorch layouts.
    c1w = 0.1 * jax.random.normal(ks[0], (C1, CIN, 3, 3), jnp.float32)
    c1b = 0.1 * jax.random.normal(ks[1], (C1,), jnp.float32)
    c2w = 0.1 * jax.random.normal(ks[2], (C2, C1, 3, 3), jnp.float32)
    c2b = 0.1 * jax.random.normal(ks[3], (C2,), jnp.float32)
    f1w = 0.1 * jax.random.normal(ks[4], (NH, C2 * HP * WP), jnp.float32)
    f1b = 0.1 * jax.random.normal(ks[5], (NH,), jnp.float32)
    f2w = 0.1 * jax.random.normal(ks[6], (NOUT, NH), jnp.float32)
    f2b = 0.1 * jax.random.normal(ks[7], (NOUT,), jnp.float32)
    params = (c1w, c1b, c2w, c2b, f1w, f1b, f2w, f2b)

    # Input implied by the module: two 2x maxpools + 8*8*8 flatten -> 3x32x32.
    BATCH = 2
    x = jax.random.normal(ks[8], (BATCH, CIN, H1, W1), jnp.float32)

    kparams = build_kernel_params(params, BATCH)        # one-time repack, device-resident
    out = jax.block_until_ready(net_forward(x, kparams))
    ref = jax.block_until_ready(net_forward_ref(x, params))

    # bf16 conv weights/activations (f32 MXU accumulation) -> loosened tolerance.
    np.testing.assert_allclose(np.asarray(out), np.asarray(ref), rtol=2e-2, atol=2e-2)
    assert out.shape == (BATCH, NOUT) and out.dtype == jnp.float32
    print("KERNEL_OK")
</pallas_src>

<mosaic_0001>
module attributes {stable_mosaic.version = 11 : i64} {
  func.func @fused_net_kernel(%arg0: memref<68x96xbf16, #tpu.memory_space<vmem>>, %arg1: memref<3x96x512xbf16, #tpu.memory_space<vmem>>, %arg2: memref<1x256xf32, #tpu.memory_space<vmem>>, %arg3: memref<32x65xf32, #tpu.memory_space<vmem>>, %arg4: memref<3x256x128xbf16, #tpu.memory_space<vmem>>, %arg5: memref<1x64xf32, #tpu.memory_space<vmem>>, %arg6: memref<16x33xf32, #tpu.memory_space<vmem>>, %arg7: memref<8x64x32xf32, #tpu.memory_space<vmem>>, %arg8: memref<1x32xf32, #tpu.memory_space<vmem>>, %arg9: memref<32x2xf32, #tpu.memory_space<vmem>>, %arg10: memref<1x2xf32, #tpu.memory_space<vmem>>, %arg11: memref<2x2xf32, #tpu.memory_space<vmem>>, %arg12: memref<66x512xf32, #tpu.memory_space<vmem>>, %arg13: memref<36x256xbf16, #tpu.memory_space<vmem>>) attributes {dimension_semantics = [], scalar_prefetch = 0 : i64, scratch_operands = 2 : i64, tpu.core_type = #tpu.core_type<tc>} {
    %c0 = arith.constant 0 : index
    %c0_0 = arith.constant 0 : index
    %0 = vector.load %arg0[%c0, %c0_0] : memref<68x96xbf16, #tpu.memory_space<vmem>>, vector<66x96xbf16>
    %c0_1 = arith.constant 0 : index
    %c0_2 = arith.constant 0 : index
    %c0_3 = arith.constant 0 : index
    %1 = vector.load %arg1[%c0_1, %c0_2, %c0_3] : memref<3x96x512xbf16, #tpu.memory_space<vmem>>, vector<1x96x512xbf16>
    %2 = vector.shape_cast %1 : vector<1x96x512xbf16> to vector<96x512xbf16>
    %cst = arith.constant dense<0.000000e+00> : vector<66x512xf32>
    %3 = tpu.matmul %0, %2, %cst {dimension_numbers = #tpu.dot_dimension_numbers<[1], [0], [0], [1], [0, 0, 1, 1], [], []>} : vector<66x96xbf16>, vector<96x512xbf16>, vector<66x512xf32> -> vector<66x512xf32>
    %c1 = arith.constant 1 : index
    %c0_4 = arith.constant 0 : index
    %4 = vector.load %arg0[%c1, %c0_4] : memref<68x96xbf16, #tpu.memory_space<vmem>>, vector<66x96xbf16>
    %c1_5 = arith.constant 1 : index
    %c0_6 = arith.constant 0 : index
    %c0_7 = arith.constant 0 : index
    %5 = vector.load %arg1[%c1_5, %c0_6, %c0_7] : memref<3x96x512xbf16, #tpu.memory_space<vmem>>, vector<1x96x512xbf16>
    %6 = vector.shape_cast %5 : vector<1x96x512xbf16> to vector<96x512xbf16>
    %cst_8 = arith.constant dense<0.000000e+00> : vector<66x512xf32>
    %7 = tpu.matmul %4, %6, %cst_8 {dimension_numbers = #tpu.dot_dimension_numbers<[1], [0], [0], [1], [0, 0, 1, 1], [], []>} : vector<66x96xbf16>, vector<96x512xbf16>, vector<66x512xf32> -> vector<66x512xf32>
    %8 = arith.addf %3, %7 : vector<66x512xf32>
    %c2 = arith.constant 2 : index
    %c0_9 = arith.constant 0 : index
    %9 = vector.load %arg0[%c2, %c0_9] : memref<68x96xbf16, #tpu.memory_space<vmem>>, vector<66x96xbf16>
    %c2_10 = arith.constant 2 : index
    %c0_11 = arith.constant 0 : index
    %c0_12 = arith.constant 0 : index
    %10 = vector.load %arg1[%c2_10, %c0_11, %c0_12] : memref<3x96x512xbf16, #tpu.memory_space<vmem>>, vector<1x96x512xbf16>
    %11 = vector.shape_cast %10 : vector<1x96x512xbf16> to vector<96x512xbf16>
    %cst_13 = arith.constant dense<0.000000e+00> : vector<66x512xf32>
    %12 = tpu.matmul %9, %11, %cst_13 {dimension_numbers = #tpu.dot_dimension_numbers<[1], [0], [0], [1], [0, 0, 1, 1], [], []>} : vector<66x96xbf16>, vector<96x512xbf16>, vector<66x512xf32> -> vector<66x512xf32>
    %13 = arith.addf %8, %12 : vector<66x512xf32>
    %c0_14 = arith.constant 0 : index
    %c0_15 = arith.constant 0 : index
    %14 = vector.load %arg12[%c0_14, %c0_15] : memref<66x512xf32, #tpu.memory_space<vmem>>, vector<66x512xf32>
    tpu.vector_store %arg12[%c0_14, %c0_15], %13 {strides = array<i32>} : memref<66x512xf32, #tpu.memory_space<vmem>>, vector<66x512xf32>,
    %c0_16 = arith.constant 0 : index
    %c0_17 = arith.constant 0 : index
    %15 = vector.load %arg12[%c0_16, %c0_17] : memref<66x512xf32, #tpu.memory_space<vmem>>, vector<65x512xf32>
    %c1_18 = arith.constant 1 : index
    %c0_19 = arith.constant 0 : index
    %16 = vector.load %arg12[%c1_18, %c0_19] : memref<66x512xf32, #tpu.memory_space<vmem>>, vector<65x512xf32>
    %17 = arith.maximumf %15, %16 : vector<65x512xf32>
    %c0_20 = arith.constant 0 : index
    %c0_21 = arith.constant 0 : index
    %18 = vector.load %arg3[%c0_20, %c0_21] : memref<32x65xf32, #tpu.memory_space<vmem>>, vector<32x65xf32>
    %cst_22 = arith.constant dense<0.000000e+00> : vector<32x512xf32>
    %19 = tpu.matmul %18, %17, %cst_22 {dimension_numbers = #tpu.dot_dimension_numbers<[1], [0], [0], [1], [0, 0, 1, 1], [], []>} : vector<32x65xf32>, vector<65x512xf32>, vector<32x512xf32> -> vector<32x512xf32>
    %20 = vector.extract_strided_slice %19 {offsets = [0, 0], sizes = [32, 256], strides = [1, 1]} : vector<32x512xf32> to vector<32x256xf32>
    %21 = vector.extract_strided_slice %19 {offsets = [0, 256], sizes = [32, 256], strides = [1, 1]} : vector<32x512xf32> to vector<32x256xf32>
    %22 = arith.maximumf %20, %21 : vector<32x256xf32>
    %c0_23 = arith.constant 0 : index
    %c0_24 = arith.constant 0 : index
    %23 = vector.load %arg2[%c0_23, %c0_24] : memref<1x256xf32, #tpu.memory_space<vmem>>, vector<1x256xf32>
    %24 = vector.broadcast %23 : vector<1x256xf32> to vector<32x256xf32>
    %25 = arith.addf %22, %24 : vector<32x256xf32>
    %26 = math.tanh %25 : vector<32x256xf32>
    %cst_25 = arith.constant 0.000000e+00 : bf16
    %27 = vector.broadcast %cst_25 : bf16 to vector<36x256xbf16>
    %c0_26 = arith.constant 0 : index
    %c0_27 = arith.constant 0 : index
    %28 = vector.load %arg13[%c0_26, %c0_27] : memref<36x256xbf16, #tpu.memory_space<vmem>>, vector<36x256xbf16>
    tpu.vector_store %arg13[%c0_26, %c0_27], %27 {strides = array<i32>} : memref<36x256xbf16, #tpu.memory_space<vmem>>, vector<36x256xbf16>,
    %29 = vector.extract_strided_slice %26 {offsets = [0, 0], sizes = [16, 256], strides = [1, 1]} : vector<32x256xf32> to vector<16x256xf32>
    %30 = arith.truncf %29 : vector<16x256xf32> to vector<16x256xbf16>
    %c1_28 = arith.constant 1 : index
    %c0_29 = arith.constant 0 : index
    %31 = vector.load %arg13[%c1_28, %c0_29] : memref<36x256xbf16, #tpu.memory_space<vmem>>, vector<16x256xbf16>
    tpu.vector_store %arg13[%c1_28, %c0_29], %30 {strides = array<i32>} : memref<36x256xbf16, #tpu.memory_space<vmem>>, vector<16x256xbf16>,
    %32 = vector.extract_strided_slice %26 {offsets = [16, 0], sizes = [16, 256], strides = [1, 1]} : vector<32x256xf32> to vector<16x256xf32>
    %33 = arith.truncf %32 : vector<16x256xf32> to vector<16x256xbf16>
    %c19 = arith.constant 19 : index
    %c0_30 = arith.constant 0 : index
    %34 = vector.load %arg13[%c19, %c0_30] : memref<36x256xbf16, #tpu.memory_space<vmem>>, vector<16x256xbf16>
    tpu.vector_store %arg13[%c19, %c0_30], %33 {strides = array<i32>} : memref<36x256xbf16, #tpu.memory_space<vmem>>, vector<16x256xbf16>,
    %c0_31 = arith.constant 0 : index
    %c0_32 = arith.constant 0 : index
    %35 = vector.load %arg13[%c0_31, %c0_32] : memref<36x256xbf16, #tpu.memory_space<vmem>>, vector<34x256xbf16>
    %c0_33 = arith.constant 0 : index
    %c0_34 = arith.constant 0 : index
    %c0_35 = arith.constant 0 : index
    %36 = vector.load %arg4[%c0_33, %c0_34, %c0_35] : memref<3x256x128xbf16, #tpu.memory_space<vmem>>, vector<1x256x128xbf16>
    %37 = vector.shape_cast %36 : vector<1x256x128xbf16> to vector<256x128xbf16>
    %cst_36 = arith.constant dense<0.000000e+00> : vector<34x128xf32>
    %38 = tpu.matmul %35, %37, %cst_36 {dimension_numbers = #tpu.dot_dimension_numbers<[1], [0], [0], [1], [0, 0, 1, 1], [], []>} : vector<34x256xbf16>, vector<256x128xbf16>, vector<34x128xf32> -> vector<34x128xf32>
    %c1_37 = arith.constant 1 : index
    %c0_38 = arith.constant 0 : index
    %39 = vector.load %arg13[%c1_37, %c0_38] : memref<36x256xbf16, #tpu.memory_space<vmem>>, vector<34x256xbf16>
    %c1_39 = arith.constant 1 : index
    %c0_40 = arith.constant 0 : index
    %c0_41 = arith.constant 0 : index
    %40 = vector.load %arg4[%c1_39, %c0_40, %c0_41] : memref<3x256x128xbf16, #tpu.memory_space<vmem>>, vector<1x256x128xbf16>
    %41 = vector.shape_cast %40 : vector<1x256x128xbf16> to vector<256x128xbf16>
    %cst_42 = arith.constant dense<0.000000e+00> : vector<34x128xf32>
    %42 = tpu.matmul %39, %41, %cst_42 {dimension_numbers = #tpu.dot_dimension_numbers<[1], [0], [0], [1], [0, 0, 1, 1], [], []>} : vector<34x256xbf16>, vector<256x128xbf16>, vector<34x128xf32> -> vector<34x128xf32>
    %43 = arith.addf %38, %42 : vector<34x128xf32>
    %c2_43 = arith.constant 2 : index
    %c0_44 = arith.constant 0 : index
    %44 = vector.load %arg13[%c2_43, %c0_44] : memref<36x256xbf16, #tpu.memory_space<vmem>>, vector<34x256xbf16>
    %c2_45 = arith.constant 2 : index
    %c0_46 = arith.constant 0 : index
    %c0_47 = arith.constant 0 : index
    %45 = vector.load %arg4[%c2_45, %c0_46, %c0_47] : memref<3x256x128xbf16, #tpu.memory_space<vmem>>, vector<1x256x128xbf16>
    %46 = vector.shape_cast %45 : vector<1x256x128xbf16> to vector<256x128xbf16>
    %cst_48 = arith.constant dense<0.000000e+00> : vector<34x128xf32>
    %47 = tpu.matmul %44, %46, %cst_48 {dimension_numbers = #tpu.dot_dimension_numbers<[1], [0], [0], [1], [0, 0, 1, 1], [], []>} : vector<34x256xbf16>, vector<256x128xbf16>, vector<34x128xf32> -> vector<34x128xf32>
    %48 = arith.addf %43, %47 : vector<34x128xf32>
    %49 = vector.extract_strided_slice %48 {offsets = [0, 0], sizes = [33, 128], strides = [1, 1]} : vector<34x128xf32> to vector<33x128xf32>
    %50 = vector.extract_strided_slice %48 {offsets = [1, 0], sizes = [33, 128], strides = [1, 1]} : vector<34x128xf32> to vector<33x128xf32>
    %51 = arith.maximumf %49, %50 : vector<33x128xf32>
    %c0_49 = arith.constant 0 : index
    %c0_50 = arith.constant 0 : index
    %52 = vector.load %arg6[%c0_49, %c0_50] : memref<16x33xf32, #tpu.memory_space<vmem>>, vector<16x33xf32>
    %cst_51 = arith.constant dense<0.000000e+00> : vector<16x128xf32>
    %53 = tpu.matmul %52, %51, %cst_51 {dimension_numbers = #tpu.dot_dimension_numbers<[1], [0], [0], [1], [0, 0, 1, 1], [], []>} : vector<16x33xf32>, vector<33x128xf32>, vector<16x128xf32> -> vector<16x128xf32>
    %54 = vector.extract_strided_slice %53 {offsets = [0, 0], sizes = [16, 64], strides = [1, 1]} : vector<16x128xf32> to vector<16x64xf32>
    %55 = vector.extract_strided_slice %53 {offsets = [0, 64], sizes = [16, 64], strides = [1, 1]} : vector<16x128xf32> to vector<16x64xf32>
    %56 = arith.maximumf %54, %55 : vector<16x64xf32>
    %c0_52 = arith.constant 0 : index
    %c0_53 = arith.constant 0 : index
    %57 = vector.load %arg5[%c0_52, %c0_53] : memref<1x64xf32, #tpu.memory_space<vmem>>, vector<1x64xf32>
    %58 = vector.broadcast %57 : vector<1x64xf32> to vector<16x64xf32>
    %59 = arith.addf %56, %58 : vector<16x64xf32>
    %60 = math.tanh %59 : vector<16x64xf32>
    %61 = vector.extract_strided_slice %60 {offsets = [0, 0], sizes = [2, 64], strides = [1, 1]} : vector<16x64xf32> to vector<2x64xf32>
    %c0_54 = arith.constant 0 : index
    %c0_55 = arith.constant 0 : index
    %c0_56 = arith.constant 0 : index
    %62 = vector.load %arg7[%c0_54, %c0_55, %c0_56] : memref<8x64x32xf32, #tpu.memory_space<vmem>>, vector<1x64x32xf32>
    %63 = vector.shape_cast %62 : vector<1x64x32xf32> to vector<64x32xf32>
    %cst_57 = arith.constant dense<0.000000e+00> : vector<2x32xf32>
    %64 = tpu.matmul %61, %63, %cst_57 {dimension_numbers = #tpu.dot_dimension_numbers<[1], [0], [0], [1], [0, 0, 1, 1], [], []>} : vector<2x64xf32>, vector<64x32xf32>, vector<2x32xf32> -> vector<2x32xf32>
    %65 = vector.extract_strided_slice %60 {offsets = [2, 0], sizes = [2, 64], strides = [1, 1]} : vector<16x64xf32> to vector<2x64xf32>
    %c1_58 = arith.constant 1 : index
    %c0_59 = arith.constant 0 : index
    %c0_60 = arith.constant 0 : index
    %66 = vector.load %arg7[%c1_58, %c0_59, %c0_60] : memref<8x64x32xf32, #tpu.memory_space<vmem>>, vector<1x64x32xf32>
    %67 = vector.shape_cast %66 : vector<1x64x32xf32> to vector<64x32xf32>
    %cst_61 = arith.constant dense<0.000000e+00> : vector<2x32xf32>
    %68 = tpu.matmul %65, %67, %cst_61 {dimension_numbers = #tpu.dot_dimension_numbers<[1], [0], [0], [1], [0, 0, 1, 1], [], []>} : vector<2x64xf32>, vector<64x32xf32>, vector<2x32xf32> -> vector<2x32xf32>
    %69 = arith.addf %64, %68 : vector<2x32xf32>
    %70 = vector.extract_strided_slice %60 {offsets = [4, 0], sizes = [2, 64], strides = [1, 1]} : vector<16x64xf32> to vector<2x64xf32>
    %c2_62 = arith.constant 2 : index
    %c0_63 = arith.constant 0 : index
    %c0_64 = arith.constant 0 : index
    %71 = vector.load %arg7[%c2_62, %c0_63, %c0_64] : memref<8x64x32xf32, #tpu.memory_space<vmem>>, vector<1x64x32xf32>
    %72 = vector.shape_cast %71 : vector<1x64x32xf32> to vector<64x32xf32>
    %cst_65 = arith.constant dense<0.000000e+00> : vector<2x32xf32>
    %73 = tpu.matmul %70, %72, %cst_65 {dimension_numbers = #tpu.dot_dimension_numbers<[1], [0], [0], [1], [0, 0, 1, 1], [], []>} : vector<2x64xf32>, vector<64x32xf32>, vector<2x32xf32> -> vector<2x32xf32>
    %74 = arith.addf %69, %73 : vector<2x32xf32>
    %75 = vector.extract_strided_slice %60 {offsets = [6, 0], sizes = [2, 64], strides = [1, 1]} : vector<16x64xf32> to vector<2x64xf32>
    %c3 = arith.constant 3 : index
    %c0_66 = arith.constant 0 : index
    %c0_67 = arith.constant 0 : index
    %76 = vector.load %arg7[%c3, %c0_66, %c0_67] : memref<8x64x32xf32, #tpu.memory_space<vmem>>, vector<1x64x32xf32>
    %77 = vector.shape_cast %76 : vector<1x64x32xf32> to vector<64x32xf32>
    %cst_68 = arith.constant dense<0.000000e+00> : vector<2x32xf32>
    %78 = tpu.matmul %75, %77, %cst_68 {dimension_numbers = #tpu.dot_dimension_numbers<[1], [0], [0], [1], [0, 0, 1, 1], [], []>} : vector<2x64xf32>, vector<64x32xf32>, vector<2x32xf32> -> vector<2x32xf32>
    %79 = arith.addf %74, %78 : vector<2x32xf32>
    %80 = vector.extract_strided_slice %60 {offsets = [8, 0], sizes = [2, 64], strides = [1, 1]} : vector<16x64xf32> to vector<2x64xf32>
    %c4 = arith.constant 4 : index
    %c0_69 = arith.constant 0 : index
    %c0_70 = arith.constant 0 : index
    %81 = vector.load %arg7[%c4, %c0_69, %c0_70] : memref<8x64x32xf32, #tpu.memory_space<vmem>>, vector<1x64x32xf32>
    %82 = vector.shape_cast %81 : vector<1x64x32xf32> to vector<64x32xf32>
    %cst_71 = arith.constant dense<0.000000e+00> : vector<2x32xf32>
    %83 = tpu.matmul %80, %82, %cst_71 {dimension_numbers = #tpu.dot_dimension_numbers<[1], [0], [0], [1], [0, 0, 1, 1], [], []>} : vector<2x64xf32>, vector<64x32xf32>, vector<2x32xf32> -> vector<2x32xf32>
    %84 = arith.addf %79, %83 : vector<2x32xf32>
    %85 = vector.extract_strided_slice %60 {offsets = [10, 0], sizes = [2, 64], strides = [1, 1]} : vector<16x64xf32> to vector<2x64xf32>
    %c5 = arith.constant 5 : index
    %c0_72 = arith.constant 0 : index
    %c0_73 = arith.constant 0 : index
    %86 = vector.load %arg7[%c5, %c0_72, %c0_73] : memref<8x64x32xf32, #tpu.memory_space<vmem>>, vector<1x64x32xf32>
    %87 = vector.shape_cast %86 : vector<1x64x32xf32> to vector<64x32xf32>
    %cst_74 = arith.constant dense<0.000000e+00> : vector<2x32xf32>
    %88 = tpu.matmul %85, %87, %cst_74 {dimension_numbers = #tpu.dot_dimension_numbers<[1], [0], [0], [1], [0, 0, 1, 1], [], []>} : vector<2x64xf32>, vector<64x32xf32>, vector<2x32xf32> -> vector<2x32xf32>
    %89 = arith.addf %84, %88 : vector<2x32xf32>
    %90 = vector.extract_strided_slice %60 {offsets = [12, 0], sizes = [2, 64], strides = [1, 1]} : vector<16x64xf32> to vector<2x64xf32>
    %c6 = arith.constant 6 : index
    %c0_75 = arith.constant 0 : index
    %c0_76 = arith.constant 0 : index
    %91 = vector.load %arg7[%c6, %c0_75, %c0_76] : memref<8x64x32xf32, #tpu.memory_space<vmem>>, vector<1x64x32xf32>
    %92 = vector.shape_cast %91 : vector<1x64x32xf32> to vector<64x32xf32>
    %cst_77 = arith.constant dense<0.000000e+00> : vector<2x32xf32>
    %93 = tpu.matmul %90, %92, %cst_77 {dimension_numbers = #tpu.dot_dimension_numbers<[1], [0], [0], [1], [0, 0, 1, 1], [], []>} : vector<2x64xf32>, vector<64x32xf32>, vector<2x32xf32> -> vector<2x32xf32>
    %94 = arith.addf %89, %93 : vector<2x32xf32>
    %95 = vector.extract_strided_slice %60 {offsets = [14, 0], sizes = [2, 64], strides = [1, 1]} : vector<16x64xf32> to vector<2x64xf32>
    %c7 = arith.constant 7 : index
    %c0_78 = arith.constant 0 : index
    %c0_79 = arith.constant 0 : index
    %96 = vector.load %arg7[%c7, %c0_78, %c0_79] : memref<8x64x32xf32, #tpu.memory_space<vmem>>, vector<1x64x32xf32>
    %97 = vector.shape_cast %96 : vector<1x64x32xf32> to vector<64x32xf32>
    %cst_80 = arith.constant dense<0.000000e+00> : vector<2x32xf32>
    %98 = tpu.matmul %95, %97, %cst_80 {dimension_numbers = #tpu.dot_dimension_numbers<[1], [0], [0], [1], [0, 0, 1, 1], [], []>} : vector<2x64xf32>, vector<64x32xf32>, vector<2x32xf32> -> vector<2x32xf32>
    %99 = arith.addf %94, %98 : vector<2x32xf32>
    %c0_81 = arith.constant 0 : index
    %c0_82 = arith.constant 0 : index
    %100 = vector.load %arg8[%c0_81, %c0_82] : memref<1x32xf32, #tpu.memory_space<vmem>>, vector<1x32xf32>
    %101 = vector.broadcast %100 : vector<1x32xf32> to vector<2x32xf32>
    %102 = arith.addf %99, %101 : vector<2x32xf32>
    %103 = math.tanh %102 : vector<2x32xf32>
    %c0_83 = arith.constant 0 : index
    %c0_84 = arith.constant 0 : index
    %104 = vector.load %arg9[%c0_83, %c0_84] : memref<32x2xf32, #tpu.memory_space<vmem>>, vector<32x2xf32>
    %cst_85 = arith.constant dense<0.000000e+00> : vector<2x2xf32>
    %105 = tpu.matmul %103, %104, %cst_85 {dimension_numbers = #tpu.dot_dimension_numbers<[1], [0], [0], [1], [0, 0, 1, 1], [], []>} : vector<2x32xf32>, vector<32x2xf32>, vector<2x2xf32> -> vector<2x2xf32>
    %c0_86 = arith.constant 0 : index
    %c0_87 = arith.constant 0 : index
    %106 = vector.load %arg10[%c0_86, %c0_87] : memref<1x2xf32, #tpu.memory_space<vmem>>, vector<1x2xf32>
    %107 = vector.broadcast %106 : vector<1x2xf32> to vector<2x2xf32>
    %108 = arith.addf %105, %107 : vector<2x2xf32>
    %c0_88 = arith.constant 0 : index
    %c0_89 = arith.constant 0 : index
    %109 = vector.load %arg11[%c0_88, %c0_89] : memref<2x2xf32, #tpu.memory_space<vmem>>, vector<2x2xf32>
    tpu.vector_store %arg11[%c0_88, %c0_89], %108 {strides = array<i32>} : memref<2x2xf32, #tpu.memory_space<vmem>>, vector<2x2xf32>,
    return
  }
}

</mosaic_0001>

<llo_original>
// kernel: net_forward.1
$region0: #{net_forward.1}
  #allocation0 [shape = 'u32[]', space=smem, size = 0x4, offset = 0x4, fixed_abs, tag = 'smem constant byte address 0x4 - core index']
  #allocation1 [shape = 'u32[144,128]{1,0:T(1,128)}', space=vmem, size = 0x12000, scoped, tag = 'internal scratch']
  #allocation2 [shape = 'f32[66,512]{1,0:T(8,128)}', space=vmem, size = 0x24000, scoped, tag = 'scratch operand']
  #allocation3 [shape = 'bf16[36,256]{1,0:T(8,128)(2,1)}', space=vmem, size = 0x5000, scoped, tag = 'scratch operand']
  %s0 = inlined_call_operand.vmem [shape: bf16[68,96], index: 0, kind: input, shape index: {}]
  %s1 = inlined_call_operand.vmem [shape: bf16[3,96,512], index: 1, kind: input, shape index: {}]
  %s2 = inlined_call_operand.vmem [shape: f32[1,256], index: 2, kind: input, shape index: {}]
  %s3 = inlined_call_operand.vmem [shape: f32[32,65], index: 3, kind: input, shape index: {}]
  %s4 = inlined_call_operand.vmem [shape: bf16[3,256,128], index: 4, kind: input, shape index: {}]
  %s5 = inlined_call_operand.vmem [shape: f32[1,64], index: 5, kind: input, shape index: {}]
  %s6 = inlined_call_operand.vmem [shape: f32[16,33], index: 6, kind: input, shape index: {}]
  %s7 = inlined_call_operand.vmem [shape: f32[8,64,32], index: 7, kind: input, shape index: {}]
  %s8 = inlined_call_operand.vmem [shape: f32[1,32], index: 8, kind: input, shape index: {}]
  %s9 = inlined_call_operand.vmem [shape: f32[32,2], index: 9, kind: input, shape index: {}]
  %s10 = inlined_call_operand.vmem [shape: f32[1,2], index: 10, kind: input, shape index: {}]
  %s11 = inlined_call_operand.hbm [shape: f32[2,2], index: 11, kind: output, shape index: {}]
  %s12 = sld [smem:[#allocation0]]
  $region54: #{net_forward.1} parent=0
    _
  %s14 = ssub.s32 1, %s12
  %s15 = scalar_select 0, %s14, %s12
  $region1: #{net_forward.1} parent=0
    #allocation4 [shape = 'u8[1024]{0}', space=vmem, size = 0x400, scoped, tag = 'output window, operand 0, single buffered']
    #allocation5 [shape = 's32[1]{0}', space=sflag, size = 0x4, scoped, tag = 'scoped memory for net_forward.1']
    %16 = vsyncpa [#allocation5], 0
    // Predicated region
    $region2: #{net_forward.1} parent=1 // pred_check
      _
    $region3: #{net_forward.1} parent=1 // pred_check_branch
      %18 = sbr.rel (0) target = $region5
    $region4: #{net_forward.1} parent=1 // pred_region
      _
    $region5: #{net_forward.1} parent=1 // pred_fallthru
      _
    // Predicated region
    $region6: #{net_forward.1} parent=1 // pred_check
      _
    $region7: #{net_forward.1} parent=1 // pred_check_branch
      %20 = sbr.rel (0) target = $region9
    $region8: #{net_forward.1} parent=1 // pred_region
      _
    $region9: #{net_forward.1} parent=1 // pred_fallthru
      _
    // Predicated region
    $region10: #{net_forward.1} parent=1 // pred_check
      _
    $region11: #{net_forward.1} parent=1 // pred_check_branch
      %22 = sbr.rel (0) target = $region13
    $region12: #{net_forward.1} parent=1 // pred_region
      _
    $region13: #{net_forward.1} parent=1 // pred_fallthru
      _
    // Predicated region
    $region14: #{net_forward.1} parent=1 // pred_check
      _
    $region15: #{net_forward.1} parent=1 // pred_check_branch
      %24 = sbr.rel (0) target = $region17
    $region16: #{net_forward.1} parent=1 // pred_region
      _
    $region17: #{net_forward.1} parent=1 // pred_fallthru
      _
    // Predicated region
    $region18: #{net_forward.1} parent=1 // pred_check
      _
    $region19: #{net_forward.1} parent=1 // pred_check_branch
      %26 = sbr.rel (0) target = $region21
    $region20: #{net_forward.1} parent=1 // pred_region
      _
    $region21: #{net_forward.1} parent=1 // pred_fallthru
      _
    // Predicated region
    $region22: #{net_forward.1} parent=1 // pred_check
      _
    $region23: #{net_forward.1} parent=1 // pred_check_branch
      %28 = sbr.rel (0) target = $region25
    $region24: #{net_forward.1} parent=1 // pred_region
      _
    $region25: #{net_forward.1} parent=1 // pred_fallthru
      _
    // Predicated region
    $region26: #{net_forward.1} parent=1 // pred_check
      _
    $region27: #{net_forward.1} parent=1 // pred_check_branch
      %30 = sbr.rel (0) target = $region29
    $region28: #{net_forward.1} parent=1 // pred_region
      _
    $region29: #{net_forward.1} parent=1 // pred_fallthru
      _
    // Predicated region
    $region30: #{net_forward.1} parent=1 // pred_check
      _
    $region31: #{net_forward.1} parent=1 // pred_check_branch
      %32 = sbr.rel (0) target = $region33
    $region32: #{net_forward.1} parent=1 // pred_region
      _
    $region33: #{net_forward.1} parent=1 // pred_fallthru
      _
    // Predicated region
    $region34: #{net_forward.1} parent=1 // pred_check
      _
    $region35: #{net_forward.1} parent=1 // pred_check_branch
      %34 = sbr.rel (0) target = $region37
    $region36: #{net_forward.1} parent=1 // pred_region
      _
    $region37: #{net_forward.1} parent=1 // pred_fallthru
      _
    // Predicated region
    $region38: #{net_forward.1} parent=1 // pred_check
      _
    $region39: #{net_forward.1} parent=1 // pred_check_branch
      %36 = sbr.rel (0) target = $region41
    $region40: #{net_forward.1} parent=1 // pred_region
      _
    $region41: #{net_forward.1} parent=1 // pred_fallthru
      _
    // Predicated region
    $region42: #{net_forward.1} parent=1 // pred_check
      _
    $region43: #{net_forward.1} parent=1 // pred_check_branch
      %38 = sbr.rel (0) target = $region45
    $region44: #{net_forward.1} parent=1 // pred_region
      _
    $region45: #{net_forward.1} parent=1 // pred_fallthru
      _
    %v40 = vld [vmem:[%s0] sm:$0xf]
    %v41 = vld [vmem:[%s0 + $0x4] sm:$0xf]
    %v42 = vld [vmem:[%s0 + $0x8] sm:$0xf]
    %v43 = vld [vmem:[%s0 + $0xc] sm:$0xf]
    %v44 = vld [vmem:[%s0 + $0x10] sm:$0xf]
    %v45 = vld [vmem:[%s0 + $0x14] sm:$0xf]
    %v46 = vld [vmem:[%s0 + $0x18] sm:$0xf]
    %v47 = vld [vmem:[%s0 + $0x1c] sm:$0xf]
    %v48 = vld [vmem:[%s0 + $0x20] sm:$0x1]
    %v49 = vld [vmem:[%s1] sm:$0xff]
    %v50 = vld [vmem:[%s1 + $0x8] sm:$0xff]
    %v51 = vld [vmem:[%s1 + $0x10] sm:$0xff]
    %v52 = vld [vmem:[%s1 + $0x18] sm:$0xff]
    %v53 = vld [vmem:[%s1 + $0x20] sm:$0xff]
    %v54 = vld [vmem:[%s1 + $0x28] sm:$0xff]
    %v55 = vld [vmem:[%s1 + $0x30] sm:$0xff]
    %v56 = vld [vmem:[%s1 + $0x38] sm:$0xff]
    %v57 = vld [vmem:[%s1 + $0x40] sm:$0xff]
    %v58 = vld [vmem:[%s1 + $0x48] sm:$0xff]
    %v59 = vld [vmem:[%s1 + $0x50] sm:$0xff]
    %v60 = vld [vmem:[%s1 + $0x58] sm:$0xff]
    %v61 = vld [vmem:[%s1 + $0x60] sm:$0xff]
    %v62 = vld [vmem:[%s1 + $0x68] sm:$0xff]
    %v63 = vld [vmem:[%s1 + $0x70] sm:$0xff]
    %v64 = vld [vmem:[%s1 + $0x78] sm:$0xff]
    %v65 = vld [vmem:[%s1 + $0x80] sm:$0xff]
    %v66 = vld [vmem:[%s1 + $0x88] sm:$0xff]
    %v67 = vld [vmem:[%s1 + $0x90] sm:$0xff]
    %v68 = vld [vmem:[%s1 + $0x98] sm:$0xff]
    %v69 = vld [vmem:[%s1 + $0xa0] sm:$0xff]
    %v70 = vld [vmem:[%s1 + $0xa8] sm:$0xff]
    %v71 = vld [vmem:[%s1 + $0xb0] sm:$0xff]
    %v72 = vld [vmem:[%s1 + $0xb8] sm:$0xff]
    %v73 = vld [vmem:[%s0 + $0x20] sm:$0x3]
    %s74 = scalar_lea.vmem %s1, 192
    %v75 = vld [vmem:[%s74] sm:$0xff]
    %v76 = vld [vmem:[%s74 + $0x8] sm:$0xff]
    %v77 = vld [vmem:[%s74 + $0x10] sm:$0xff]
    %v78 = vld [vmem:[%s74 + $0x18] sm:$0xff]
    %v79 = vld [vmem:[%s74 + $0x20] sm:$0xff]
    %v80 = vld [vmem:[%s74 + $0x28] sm:$0xff]
    %v81 = vld [vmem:[%s74 + $0x30] sm:$0xff]
    %v82 = vld [vmem:[%s74 + $0x38] sm:$0xff]
    %v83 = vld [vmem:[%s74 + $0x40] sm:$0xff]
    %v84 = vld [vmem:[%s74 + $0x48] sm:$0xff]
    %v85 = vld [vmem:[%s74 + $0x50] sm:$0xff]
    %v86 = vld [vmem:[%s74 + $0x58] sm:$0xff]
    %v87 = vld [vmem:[%s74 + $0x60] sm:$0xff]
    %v88 = vld [vmem:[%s74 + $0x68] sm:$0xff]
    %v89 = vld [vmem:[%s74 + $0x70] sm:$0xff]
    %v90 = vld [vmem:[%s74 + $0x78] sm:$0xff]
    %v91 = vld [vmem:[%s74 + $0x80] sm:$0xff]
    %v92 = vld [vmem:[%s74 + $0x88] sm:$0xff]
    %v93 = vld [vmem:[%s74 + $0x90] sm:$0xff]
    %v94 = vld [vmem:[%s74 + $0x98] sm:$0xff]
    %v95 = vld [vmem:[%s74 + $0xa0] sm:$0xff]
    %v96 = vld [vmem:[%s74 + $0xa8] sm:$0xff]
    %v97 = vld [vmem:[%s74 + $0xb0] sm:$0xff]
    %v98 = vld [vmem:[%s74 + $0xb8] sm:$0xff]
    %v108 = vunpack.c.l.b16 %v40
    %v109 = vunpack.c.l.b16 %v41
    %v110 = vunpack.c.l.b16 %v42
    %v111 = vunpack.c.l.b16 %v43
    %v112 = vunpack.c.l.b16 %v44
    %v113 = vunpack.c.l.b16 %v45
    %v114 = vunpack.c.l.b16 %v46
    %v115 = vunpack.c.l.b16 %v47
    %v116 = vunpack.c.l.b16 %v73
    %v117 = vpack.c.b16 %v109, %v108
    %v118 = vpack.c.b16 %v111, %v110
    %v119 = vpack.c.b16 %v113, %v112
    %v120 = vpack.c.b16 %v115, %v114
    %v121 = vpack.c.b16 %v116, %v116
    %vm122 = vsmask.f32 7424
    %v124 = vshrl.u32 %v117, 16
    %v126 = vshll.u32 %v117, 16
    %v128 = vrot.slane %v126, 1
    %v129 = vor.u32 %v124, %v128
    %v131 = vshll.u32 %v118, 16
    %v133 = vrot.slane %v131, 1
    %v134 = vsel %vm122, %v129, %v133
    %v135 = vshrl.u32 %v118, 16
    %v137 = vor.u32 %v135, %v133
    %v139 = vshll.u32 %v119, 16
    %v141 = vrot.slane %v139, 1
    %v142 = vsel %vm122, %v137, %v141
    %v143 = vshrl.u32 %v119, 16
    %v145 = vor.u32 %v143, %v141
    %v147 = vshll.u32 %v120, 16
    %v149 = vrot.slane %v147, 1
    %v150 = vsel %vm122, %v145, %v149
    %v151 = vshrl.u32 %v120, 16
    %v153 = vor.u32 %v151, %v149
    %v155 = vshll.u32 %v121, 16
    %v157 = vrot.slane %v155, 1
    %v158 = vsel %vm122, %v153, %v157
    %v159 = vshrl.u32 %v121, 16
    %v161 = vor.u32 %v159, %v157
    %v186 = vunpack.c.l.b16 %v75
    %v187 = vunpack.c.h.b16 %v75
    %v188 = vunpack.c.l.b16 %v76
    %v189 = vunpack.c.h.b16 %v76
    %v190 = vunpack.c.l.b16 %v77
    %v191 = vunpack.c.h.b16 %v77
    %v192 = vunpack.c.l.b16 %v78
    %v193 = vunpack.c.h.b16 %v78
    %v194 = vunpack.c.l.b16 %v79
    %v195 = vunpack.c.h.b16 %v79
    %v196 = vunpack.c.l.b16 %v80
    %v197 = vunpack.c.h.b16 %v80
    %v198 = vunpack.c.l.b16 %v81
    %v199 = vunpack.c.h.b16 %v81
    %v200 = vunpack.c.l.b16 %v82
    %v201 = vunpack.c.h.b16 %v82
    %v202 = vunpack.c.l.b16 %v83
    %v203 = vunpack.c.h.b16 %v83
    %v204 = vunpack.c.l.b16 %v84
    %v205 = vunpack.c.h.b16 %v84
    %v206 = vunpack.c.l.b16 %v85
    %v207 = vunpack.c.h.b16 %v85
    %v208 = vunpack.c.l.b16 %v86
    %v209 = vunpack.c.h.b16 %v86
    %v210 = vunpack.c.l.b16 %v87
    %v211 = vunpack.c.h.b16 %v87
    %v212 = vunpack.c.l.b16 %v88
    %v213 = vunpack.c.h.b16 %v88
    %v214 = vunpack.c.l.b16 %v89
    %v215 = vunpack.c.h.b16 %v89
    %v216 = vunpack.c.l.b16 %v90
    %v217 = vunpack.c.h.b16 %v90
    %v218 = vunpack.c.l.b16 %v91
    %v219 = vunpack.c.h.b16 %v91
    %v220 = vunpack.c.l.b16 %v92
    %v221 = vunpack.c.h.b16 %v92
    %v222 = vunpack.c.l.b16 %v93
    %v223 = vunpack.c.h.b16 %v93
    %v224 = vunpack.c.l.b16 %v94
    %v225 = vunpack.c.h.b16 %v94
    %v226 = vunpack.c.l.b16 %v95
    %v227 = vunpack.c.h.b16 %v95
    %v228 = vunpack.c.l.b16 %v96
    %v229 = vunpack.c.h.b16 %v96
    %v230 = vunpack.c.l.b16 %v97
    %v231 = vunpack.c.h.b16 %v97
    %v232 = vunpack.c.l.b16 %v98
    %v233 = vunpack.c.h.b16 %v98
    %v234 = vpack.c.b16 %v190, %v186
    %v235 = vpack.c.b16 %v191, %v187
    %v236 = vpack.c.b16 %v192, %v188
    %v237 = vpack.c.b16 %v193, %v189
    %v238 = vpack.c.b16 %v198, %v194
    %v239 = vpack.c.b16 %v199, %v195
    %v240 = vpack.c.b16 %v200, %v196
    %v241 = vpack.c.b16 %v201, %v197
    %v242 = vpack.c.b16 %v206, %v202
    %v243 = vpack.c.b16 %v207, %v203
    %v244 = vpack.c.b16 %v208, %v204
    %v245 = vpack.c.b16 %v209, %v205
    %v246 = vpack.c.b16 %v214, %v210
    %v247 = vpack.c.b16 %v215, %v211
    %v248 = vpack.c.b16 %v216, %v212
    %v249 = vpack.c.b16 %v217, %v213
    %v250 = vpack.c.b16 %v222, %v218
    %v251 = vpack.c.b16 %v223, %v219
    %v252 = vpack.c.b16 %v224, %v220
    %v253 = vpack.c.b16 %v225, %v221
    %v254 = vpack.c.b16 %v230, %v226
    %v255 = vpack.c.b16 %v231, %v227
    %v256 = vpack.c.b16 %v232, %v228
    %v257 = vpack.c.b16 %v233, %v229
    %vm282 = vcmask 785408
    %v284 = vsel %vm282, %v134, 0
    %v287 = vsel %vm282, %v142, 0
    %v290 = vsel %vm282, %v150, 0
    %v293 = vsel %vm282, %v158, 0
    %v296 = vsel %vm282, %v161, 0
    %298 = vmatprep.subr.bf16.mxu0 0
    %299 = vmatpush1.bf16.msra.mxu0 0
    %300 = vmatprep.subr.bf16.mxu0 0
    %301 = vmatpush1.bf16.msra.mxu0 0
    %302 = vmatprep.subr.bf16.mxu0 %v255
    %303 = vmatpush1.bf16.msra.mxu0 %v254
    %304 = vmatprep.subr.bf16.mxu0 %v251
    %305 = vmatpush1.bf16.msra.mxu0 %v250
    %306 = vmatprep.subr.bf16.mxu0 %v247
    %307 = vmatpush1.bf16.msra.mxu0 %v246
    %308 = vmatprep.subr.bf16.mxu0 %v243
    %309 = vmatpush1.bf16.msra.mxu0 %v242
    %310 = vmatprep.subr.bf16.mxu0 %v239
    %311 = vmatpush1.bf16.msra.mxu0 %v238
    %312 = vmatprep.subr.bf16.mxu0 %v235
    %313 = vmatpush1.bf16.msra.mxu0 %v234
    %314 = vmatprep.subr.bf16.mxu0 0
    %315 = vmatpush2.bf16.msra.mxu0 0
    %316 = vmatprep.subr.bf16.mxu0 0
    %317 = vmatpush2.bf16.msra.mxu0 0
    %318 = vmatprep.subr.bf16.mxu0 0
    %319 = vmatpush2.bf16.msra.mxu0 0
    %320 = vmatprep.subr.bf16.mxu0 0
    %321 = vmatpush2.bf16.msra.mxu0 0
    %322 = vmatprep.subr.bf16.mxu0 0
    %323 = vmatpush2.bf16.msra.mxu0 0
    %324 = vmatprep.subr.bf16.mxu0 0
    %325 = vmatpush2.bf16.msra.mxu0 0
    %326 = vmatprep.subr.bf16.mxu0 0
    %327 = vmatpush2.bf16.msra.mxu0 0
    %328 = vmatprep.subr.bf16.mxu0 0
    %329 = vmatpush2.bf16.msra.mxu0 0
    %330 = vmatprep.mubr.bf16.mxu0 0
    %331 = vmatmul.mubr.bf16.gmra.mxu0 %v284
    %v332 = vpop.f32.mrf.mxu0
    %v333 = vadd.f32 0.0, %v332
    %v334 = vpop.f32.mrf.mxu0
    %v335 = vadd.f32 0.0, %v334
    %v336 = vpop.f32.mrf.mxu0
    %v337 = vadd.f32 0.0, %v336
    %v338 = vpop.f32.mrf.mxu0
    %v339 = vadd.f32 0.0, %v338
    %340 = vmatprep.mubr.bf16.mxu0 0
    %341 = vmatmul.mubr.bf16.gmra.mxu0 %v287
    %v342 = vpop.f32.mrf.mxu0
    %v343 = vadd.f32 0.0, %v342
    %v344 = vpop.f32.mrf.mxu0
    %v345 = vadd.f32 0.0, %v344
    %v346 = vpop.f32.mrf.mxu0
    %v347 = vadd.f32 0.0, %v346
    %v348 = vpop.f32.mrf.mxu0
    %v349 = vadd.f32 0.0, %v348
    %350 = vmatprep.mubr.bf16.mxu0 0
    %351 = vmatmul.mubr.bf16.gmra.mxu0 %v290
    %v352 = vpop.f32.mrf.mxu0
    %v353 = vadd.f32 0.0, %v352
    %v354 = vpop.f32.mrf.mxu0
    %v355 = vadd.f32 0.0, %v354
    %v356 = vpop.f32.mrf.mxu0
    %v357 = vadd.f32 0.0, %v356
    %v358 = vpop.f32.mrf.mxu0
    %v359 = vadd.f32 0.0, %v358
    %360 = vmatprep.mubr.bf16.mxu0 0
    %361 = vmatmul.mubr.bf16.gmra.mxu0 %v293
    %v362 = vpop.f32.mrf.mxu0
    %v363 = vadd.f32 0.0, %v362
    %v364 = vpop.f32.mrf.mxu0
    %v365 = vadd.f32 0.0, %v364
    %v366 = vpop.f32.mrf.mxu0
    %v367 = vadd.f32 0.0, %v366
    %v368 = vpop.f32.mrf.mxu0
    %v369 = vadd.f32 0.0, %v368
    %370 = vmatprep.mubr.bf16.mxu0 0
    %371 = vmatmul.mubr.bf16.gmra.mxu0 %v296
    %v372 = vpop.f32.mrf.mxu0
    %v373 = vadd.f32 0.0, %v372
    %v374 = vpop.f32.mrf.mxu0
    %v375 = vadd.f32 0.0, %v374
    %v376 = vpop.f32.mrf.mxu0
    %v377 = vpop.f32.mrf.mxu0
    %378 = vdwg.mxu0
    %379 = vmatprep.subr.bf16.mxu0 0
    %380 = vmatpush1.bf16.msra.mxu0 0
    %381 = vmatprep.subr.bf16.mxu0 0
    %382 = vmatpush1.bf16.msra.mxu0 0
    %383 = vmatprep.subr.bf16.mxu0 %v257
    %384 = vmatpush1.bf16.msra.mxu0 %v256
    %385 = vmatprep.subr.bf16.mxu0 %v253
    %386 = vmatpush1.bf16.msra.mxu0 %v252
    %387 = vmatprep.subr.bf16.mxu0 %v249
    %388 = vmatpush1.bf16.msra.mxu0 %v248
    %389 = vmatprep.subr.bf16.mxu0 %v245
    %390 = vmatpush1.bf16.msra.mxu0 %v244
    %391 = vmatprep.subr.bf16.mxu0 %v241
    %392 = vmatpush1.bf16.msra.mxu0 %v240
    %393 = vmatprep.subr.bf16.mxu0 %v237
    %394 = vmatpush1.bf16.msra.mxu0 %v236
    %395 = vmatprep.subr.bf16.mxu0 0
    %396 = vmatpush2.bf16.msra.mxu0 0
    %397 = vmatprep.subr.bf16.mxu0 0
    %398 = vmatpush2.bf16.msra.mxu0 0
    %399 = vmatprep.subr.bf16.mxu0 0
    %400 = vmatpush2.bf16.msra.mxu0 0
    %401 = vmatprep.subr.bf16.mxu0 0
    %402 = vmatpush2.bf16.msra.mxu0 0
    %403 = vmatprep.subr.bf16.mxu0 0
    %404 = vmatpush2.bf16.msra.mxu0 0
    %405 = vmatprep.subr.bf16.mxu0 0
    %406 = vmatpush2.bf16.msra.mxu0 0
    %407 = vmatprep.subr.bf16.mxu0 0
    %408 = vmatpush2.bf16.msra.mxu0 0
    %409 = vmatprep.subr.bf16.mxu0 0
    %410 = vmatpush2.bf16.msra.mxu0 0
    %411 = vmatprep.mubr.bf16.mxu0 0
    %412 = vmatmul.mubr.bf16.gmra.mxu0 %v284
    %v413 = vpop.f32.mrf.mxu0
    %v414 = vadd.f32 0.0, %v413
    %v415 = vpop.f32.mrf.mxu0
    %v416 = vadd.f32 0.0, %v415
    %v417 = vpop.f32.mrf.mxu0
    %v418 = vadd.f32 0.0, %v417
    %v419 = vpop.f32.mrf.mxu0
    %v420 = vadd.f32 0.0, %v419
    %421 = vmatprep.mubr.bf16.mxu0 0
    %422 = vmatmul.mubr.bf16.gmra.mxu0 %v287
    %v423 = vpop.f32.mrf.mxu0
    %v424 = vadd.f32 0.0, %v423
    %v425 = vpop.f32.mrf.mxu0
    %v426 = vadd.f32 0.0, %v425
    %v427 = vpop.f32.mrf.mxu0
    %v428 = vadd.f32 0.0, %v427
    %v429 = vpop.f32.mrf.mxu0
    %v430 = vadd.f32 0.0, %v429
    %431 = vmatprep.mubr.bf16.mxu0 0
    %432 = vmatmul.mubr.bf16.gmra.mxu0 %v290
    %v433 = vpop.f32.mrf.mxu0
    %v434 = vadd.f32 0.0, %v433
    %v435 = vpop.f32.mrf.mxu0
    %v436 = vadd.f32 0.0, %v435
    %v437 = vpop.f32.mrf.mxu0
    %v438 = vadd.f32 0.0, %v437
    %v439 = vpop.f32.mrf.mxu0
    %v440 = vadd.f32 0.0, %v439
    %441 = vmatprep.mubr.bf16.mxu0 0
    %442 = vmatmul.mubr.bf16.gmra.mxu0 %v293
    %v443 = vpop.f32.mrf.mxu0
    %v444 = vadd.f32 0.0, %v443
    %v445 = vpop.f32.mrf.mxu0
    %v446 = vadd.f32 0.0, %v445
    %v447 = vpop.f32.mrf.mxu0
    %v448 = vadd.f32 0.0, %v447
    %v449 = vpop.f32.mrf.mxu0
    %v450 = vadd.f32 0.0, %v449
    %451 = vmatprep.mubr.bf16.mxu0 0
    %452 = vmatmul.mubr.bf16.gmra.mxu0 %v296
    %v453 = vpop.f32.mrf.mxu0
    %v454 = vadd.f32 0.0, %v453
    %v455 = vpop.f32.mrf.mxu0
    %v456 = vadd.f32 0.0, %v455
    %v457 = vpop.f32.mrf.mxu0
    %v458 = vpop.f32.mrf.mxu0
    %459 = vdwg.mxu0
    %v461 = vunpack.c.l.b16 %v48
    %v462 = vpack.c.b16 %v461, %v461
    %v487 = vunpack.c.l.b16 %v49
    %v488 = vunpack.c.h.b16 %v49
    %v489 = vunpack.c.l.b16 %v50
    %v490 = vunpack.c.h.b16 %v50
    %v491 = vunpack.c.l.b16 %v51
    %v492 = vunpack.c.h.b16 %v51
    %v493 = vunpack.c.l.b16 %v52
    %v494 = vunpack.c.h.b16 %v52
    %v495 = vunpack.c.l.b16 %v53
    %v496 = vunpack.c.h.b16 %v53
    %v497 = vunpack.c.l.b16 %v54
    %v498 = vunpack.c.h.b16 %v54
    %v499 = vunpack.c.l.b16 %v55
    %v500 = vunpack.c.h.b16 %v55
    %v501 = vunpack.c.l.b16 %v56
    %v502 = vunpack.c.h.b16 %v56
    %v503 = vunpack.c.l.b16 %v57
    %v504 = vunpack.c.h.b16 %v57
    %v505 = vunpack.c.l.b16 %v58
    %v506 = vunpack.c.h.b16 %v58
    %v507 = vunpack.c.l.b16 %v59
    %v508 = vunpack.c.h.b16 %v59
    %v509 = vunpack.c.l.b16 %v60
    %v510 = vunpack.c.h.b16 %v60
    %v511 = vunpack.c.l.b16 %v61
    %v512 = vunpack.c.h.b16 %v61
    %v513 = vunpack.c.l.b16 %v62
    %v514 = vunpack.c.h.b16 %v62
    %v515 = vunpack.c.l.b16 %v63
    %v516 = vunpack.c.h.b16 %v63
    %v517 = vunpack.c.l.b16 %v64
    %v518 = vunpack.c.h.b16 %v64
    %v519 = vunpack.c.l.b16 %v65
    %v520 = vunpack.c.h.b16 %v65
    %v521 = vunpack.c.l.b16 %v66
    %v522 = vunpack.c.h.b16 %v66
    %v523 = vunpack.c.l.b16 %v67
    %v524 = vunpack.c.h.b16 %v67
    %v525 = vunpack.c.l.b16 %v68
    %v526 = vunpack.c.h.b16 %v68
    %v527 = vunpack.c.l.b16 %v69
    %v528 = vunpack.c.h.b16 %v69
    %v529 = vunpack.c.l.b16 %v70
    %v530 = vunpack.c.h.b16 %v70
    %v531 = vunpack.c.l.b16 %v71
    %v532 = vunpack.c.h.b16 %v71
    %v533 = vunpack.c.l.b16 %v72
    %v534 = vunpack.c.h.b16 %v72
    %v535 = vpack.c.b16 %v491, %v487
    %v536 = vpack.c.b16 %v492, %v488
    %v537 = vpack.c.b16 %v493, %v489
    %v538 = vpack.c.b16 %v494, %v490
    %v539 = vpack.c.b16 %v499, %v495
    %v540 = vpack.c.b16 %v500, %v496
    %v541 = vpack.c.b16 %v501, %v497
    %v542 = vpack.c.b16 %v502, %v498
    %v543 = vpack.c.b16 %v507, %v503
    %v544 = vpack.c.b16 %v508, %v504
    %v545 = vpack.c.b16 %v509, %v505
    %v546 = vpack.c.b16 %v510, %v506
    %v547 = vpack.c.b16 %v515, %v511
    %v548 = vpack.c.b16 %v516, %v512
    %v549 = vpack.c.b16 %v517, %v513
    %v550 = vpack.c.b16 %v518, %v514
    %v551 = vpack.c.b16 %v523, %v519
    %v552 = vpack.c.b16 %v524, %v520
    %v553 = vpack.c.b16 %v525, %v521
    %v554 = vpack.c.b16 %v526, %v522
    %v555 = vpack.c.b16 %v531, %v527
    %v556 = vpack.c.b16 %v532, %v528
    %v557 = vpack.c.b16 %v533, %v529
    %v558 = vpack.c.b16 %v534, %v530
    %v583 = vsel %vm282, %v117, 0
    %v585 = vsel %vm282, %v118, 0
    %v587 = vsel %vm282, %v119, 0
    %v589 = vsel %vm282, %v120, 0
    %v592 = vsel %vm282, %v462, 0
    %594 = vmatprep.subr.bf16.mxu0 0
    %595 = vmatpush1.bf16.msra.mxu0 0
    %596 = vmatprep.subr.bf16.mxu0 0
    %597 = vmatpush1.bf16.msra.mxu0 0
    %598 = vmatprep.subr.bf16.mxu0 %v556
    %599 = vmatpush1.bf16.msra.mxu0 %v555
    %600 = vmatprep.subr.bf16.mxu0 %v552
    %601 = vmatpush1.bf16.msra.mxu0 %v551
    %602 = vmatprep.subr.bf16.mxu0 %v548
    %603 = vmatpush1.bf16.msra.mxu0 %v547
    %604 = vmatprep.subr.bf16.mxu0 %v544
    %605 = vmatpush1.bf16.msra.mxu0 %v543
    %606 = vmatprep.subr.bf16.mxu0 %v540
    %607 = vmatpush1.bf16.msra.mxu0 %v539
    %608 = vmatprep.subr.bf16.mxu0 %v536
    %609 = vmatpush1.bf16.msra.mxu0 %v535
    %610 = vmatprep.subr.bf16.mxu0 0
    %611 = vmatpush2.bf16.msra.mxu0 0
    %612 = vmatprep.subr.bf16.mxu0 0
    %613 = vmatpush2.bf16.msra.mxu0 0
    %614 = vmatprep.subr.bf16.mxu0 0
    %615 = vmatpush2.bf16.msra.mxu0 0
    %616 = vmatprep.subr.bf16.mxu0 0
    %617 = vmatpush2.bf16.msra.mxu0 0
    %618 = vmatprep.subr.bf16.mxu0 0
    %619 = vmatpush2.bf16.msra.mxu0 0
    %620 = vmatprep.subr.bf16.mxu0 0
    %621 = vmatpush2.bf16.msra.mxu0 0
    %622 = vmatprep.subr.bf16.mxu0 0
    %623 = vmatpush2.bf16.msra.mxu0 0
    %624 = vmatprep.subr.bf16.mxu0 0
    %625 = vmatpush2.bf16.msra.mxu0 0
    %626 = vmatprep.mubr.bf16.mxu0 0
    %627 = vmatmul.mubr.bf16.gmra.mxu0 %v583
    %v628 = vpop.f32.mrf.mxu0
    %v629 = vadd.f32 %v333, %v628
    %v630 = vpop.f32.mrf.mxu0
    %v631 = vadd.f32 %v335, %v630
    %v632 = vpop.f32.mrf.mxu0
    %v633 = vadd.f32 %v337, %v632
    %v634 = vpop.f32.mrf.mxu0
    %v635 = vadd.f32 %v339, %v634
    %636 = vmatprep.mubr.bf16.mxu0 0
    %637 = vmatmul.mubr.bf16.gmra.mxu0 %v585
    %v638 = vpop.f32.mrf.mxu0
    %v639 = vadd.f32 %v343, %v638
    %v640 = vpop.f32.mrf.mxu0
    %v641 = vadd.f32 %v345, %v640
    %v642 = vpop.f32.mrf.mxu0
    %v643 = vadd.f32 %v347, %v642
    %v644 = vpop.f32.mrf.mxu0
    %v645 = vadd.f32 %v349, %v644
    %646 = vmatprep.mubr.bf16.mxu0 0
    %647 = vmatmul.mubr.bf16.gmra.mxu0 %v587
    %v648 = vpop.f32.mrf.mxu0
    %v649 = vadd.f32 %v353, %v648
    %v650 = vpop.f32.mrf.mxu0
    %v651 = vadd.f32 %v355, %v650
    %v652 = vpop.f32.mrf.mxu0
    %v653 = vadd.f32 %v357, %v652
    %v654 = vpop.f32.mrf.mxu0
    %v655 = vadd.f32 %v359, %v654
    %656 = vmatprep.mubr.bf16.mxu0 0
    %657 = vmatmul.mubr.bf16.gmra.mxu0 %v589
    %v658 = vpop.f32.mrf.mxu0
    %v659 = vadd.f32 %v363, %v658
    %v660 = vpop.f32.mrf.mxu0
    %v661 = vadd.f32 %v365, %v660
    %v662 = vpop.f32.mrf.mxu0
    %v663 = vadd.f32 %v367, %v662
    %v664 = vpop.f32.mrf.mxu0
    %v665 = vadd.f32 %v369, %v664
    %666 = vmatprep.mubr.bf16.mxu0 0
    %667 = vmatmul.mubr.bf16.gmra.mxu0 %v592
    %v668 = vpop.f32.mrf.mxu0
    %v669 = vadd.f32 %v373, %v668
    %v670 = vpop.f32.mrf.mxu0
    %v671 = vadd.f32 %v375, %v670
    %v672 = vpop.f32.mrf.mxu0
    %v673 = vpop.f32.mrf.mxu0
    %674 = vdwg.mxu0
    %675 = vmatprep.subr.bf16.mxu0 0
    %676 = vmatpush1.bf16.msra.mxu0 0
    %677 = vmatprep.subr.bf16.mxu0 0
    %678 = vmatpush1.bf16.msra.mxu0 0
    %679 = vmatprep.subr.bf16.mxu0 %v558
    %680 = vmatpush1.bf16.msra.mxu0 %v557
    %681 = vmatprep.subr.bf16.mxu0 %v554
    %682 = vmatpush1.bf16.msra.mxu0 %v553
    %683 = vmatprep.subr.bf16.mxu0 %v550
    %684 = vmatpush1.bf16.msra.mxu0 %v549
    %685 = vmatprep.subr.bf16.mxu0 %v546
    %686 = vmatpush1.bf16.msra.mxu0 %v545
    %687 = vmatprep.subr.bf16.mxu0 %v542
    %688 = vmatpush1.bf16.msra.mxu0 %v541
    %689 = vmatprep.subr.bf16.mxu0 %v538
    %690 = vmatpush1.bf16.msra.mxu0 %v537
    %691 = vmatprep.subr.bf16.mxu0 0
    %692 = vmatpush2.bf16.msra.mxu0 0
    %693 = vmatprep.subr.bf16.mxu0 0
    %694 = vmatpush2.bf16.msra.mxu0 0
    %695 = vmatprep.subr.bf16.mxu0 0
    %696 = vmatpush2.bf16.msra.mxu0 0
    %697 = vmatprep.subr.bf16.mxu0 0
    %698 = vmatpush2.bf16.msra.mxu0 0
    %699 = vmatprep.subr.bf16.mxu0 0
    %700 = vmatpush2.bf16.msra.mxu0 0
    %701 = vmatprep.subr.bf16.mxu0 0
    %702 = vmatpush2.bf16.msra.mxu0 0
    %703 = vmatprep.subr.bf16.mxu0 0
    %704 = vmatpush2.bf16.msra.mxu0 0
    %705 = vmatprep.subr.bf16.mxu0 0
    %706 = vmatpush2.bf16.msra.mxu0 0
    %707 = vmatprep.mubr.bf16.mxu0 0
    %708 = vmatmul.mubr.bf16.gmra.mxu0 %v583
    %v709 = vpop.f32.mrf.mxu0
    %v710 = vadd.f32 %v414, %v709
    %v711 = vpop.f32.mrf.mxu0
    %v712 = vadd.f32 %v416, %v711
    %v713 = vpop.f32.mrf.mxu0
    %v714 = vadd.f32 %v418, %v713
    %v715 = vpop.f32.mrf.mxu0
    %v716 = vadd.f32 %v420, %v715
    %717 = vmatprep.mubr.bf16.mxu0 0
    %718 = vmatmul.mubr.bf16.gmra.mxu0 %v585
    %v719 = vpop.f32.mrf.mxu0
    %v720 = vadd.f32 %v424, %v719
    %v721 = vpop.f32.mrf.mxu0
    %v722 = vadd.f32 %v426, %v721
    %v723 = vpop.f32.mrf.mxu0
    %v724 = vadd.f32 %v428, %v723
    %v725 = vpop.f32.mrf.mxu0
    %v726 = vadd.f32 %v430, %v725
    %727 = vmatprep.mubr.bf16.mxu0 0
    %728 = vmatmul.mubr.bf16.gmra.mxu0 %v587
    %v729 = vpop.f32.mrf.mxu0
    %v730 = vadd.f32 %v434, %v729
    %v731 = vpop.f32.mrf.mxu0
    %v732 = vadd.f32 %v436, %v731
    %v733 = vpop.f32.mrf.mxu0
    %v734 = vadd.f32 %v438, %v733
    %v735 = vpop.f32.mrf.mxu0
    %v736 = vadd.f32 %v440, %v735
    %737 = vmatprep.mubr.bf16.mxu0 0
    %738 = vmatmul.mubr.bf16.gmra.mxu0 %v589
    %v739 = vpop.f32.mrf.mxu0
    %v740 = vadd.f32 %v444, %v739
    %v741 = vpop.f32.mrf.mxu0
    %v742 = vadd.f32 %v446, %v741
    %v743 = vpop.f32.mrf.mxu0
    %v744 = vadd.f32 %v448, %v743
    %v745 = vpop.f32.mrf.mxu0
    %v746 = vadd.f32 %v450, %v745
    %747 = vmatprep.mubr.bf16.mxu0 0
    %748 = vmatmul.mubr.bf16.gmra.mxu0 %v592
    %v749 = vpop.f32.mrf.mxu0
    %v750 = vadd.f32 %v454, %v749
    %v751 = vpop.f32.mrf.mxu0
    %v752 = vadd.f32 %v456, %v751
    %v753 = vpop.f32.mrf.mxu0
    %v754 = vpop.f32.mrf.mxu0
    %755 = vdwg.mxu0
    %v756 = vld [vmem:[%s0] sm:$0xe]
    %s757 = scalar_lea.vmem %s1, 384
    %v758 = vld [vmem:[%s757] sm:$0xff]
    %v759 = vld [vmem:[%s757 + $0x8] sm:$0xff]
    %v760 = vld [vmem:[%s757 + $0x10] sm:$0xff]
    %v761 = vld [vmem:[%s757 + $0x18] sm:$0xff]
    %v762 = vld [vmem:[%s757 + $0x20] sm:$0xff]
    %v763 = vld [vmem:[%s757 + $0x28] sm:$0xff]
    %v764 = vld [vmem:[%s757 + $0x30] sm:$0xff]
    %v765 = vld [vmem:[%s757 + $0x38] sm:$0xff]
    %v766 = vld [vmem:[%s757 + $0x40] sm:$0xff]
    %v767 = vld [vmem:[%s757 + $0x48] sm:$0xff]
    %v768 = vld [vmem:[%s757 + $0x50] sm:$0xff]
    %v769 = vld [vmem:[%s757 + $0x58] sm:$0xff]
    %v770 = vld [vmem:[%s757 + $0x60] sm:$0xff]
    %v771 = vld [vmem:[%s757 + $0x68] sm:$0xff]
    %v772 = vld [vmem:[%s757 + $0x70] sm:$0xff]
    %v773 = vld [vmem:[%s757 + $0x78] sm:$0xff]
    %v774 = vld [vmem:[%s757 + $0x80] sm:$0xff]
    %v775 = vld [vmem:[%s757 + $0x88] sm:$0xff]
    %v776 = vld [vmem:[%s757 + $0x90] sm:$0xff]
    %v777 = vld [vmem:[%s757 + $0x98] sm:$0xff]
    %v778 = vld [vmem:[%s757 + $0xa0] sm:$0xff]
    %v779 = vld [vmem:[%s757 + $0xa8] sm:$0xff]
    %v780 = vld [vmem:[%s757 + $0xb0] sm:$0xff]
    %v781 = vld [vmem:[%s757 + $0xb8] sm:$0xff]
    %v783 = vunpack.c.l.b16 %v756
    %v784 = vpack.c.b16 %v109, %v783
    %vm785 = vcmask 1046528
    %v786 = vrot.slane %v784, 1
    %v787 = vrot.slane %v118, 1
    %v788 = vsel %vm785, %v786, %v787
    %v789 = vrot.slane %v119, 1
    %v790 = vsel %vm785, %v787, %v789
    %v791 = vrot.slane %v120, 1
    %v792 = vsel %vm785, %v789, %v791
    %v793 = vrot.slane %v121, 1
    %v794 = vsel %vm785, %v791, %v793
    %v819 = vunpack.c.l.b16 %v758
    %v820 = vunpack.c.h.b16 %v758
    %v821 = vunpack.c.l.b16 %v759
    %v822 = vunpack.c.h.b16 %v759
    %v823 = vunpack.c.l.b16 %v760
    %v824 = vunpack.c.h.b16 %v760
    %v825 = vunpack.c.l.b16 %v761
    %v826 = vunpack.c.h.b16 %v761
    %v827 = vunpack.c.l.b16 %v762
    %v828 = vunpack.c.h.b16 %v762
    %v829 = vunpack.c.l.b16 %v763
    %v830 = vunpack.c.h.b16 %v763
    %v831 = vunpack.c.l.b16 %v764
    %v832 = vunpack.c.h.b16 %v764
    %v833 = vunpack.c.l.b16 %v765
    %v834 = vunpack.c.h.b16 %v765
    %v835 = vunpack.c.l.b16 %v766
    %v836 = vunpack.c.h.b16 %v766
    %v837 = vunpack.c.l.b16 %v767
    %v838 = vunpack.c.h.b16 %v767
    %v839 = vunpack.c.l.b16 %v768
    %v840 = vunpack.c.h.b16 %v768
    %v841 = vunpack.c.l.b16 %v769
    %v842 = vunpack.c.h.b16 %v769
    %v843 = vunpack.c.l.b16 %v770
    %v844 = vunpack.c.h.b16 %v770
    %v845 = vunpack.c.l.b16 %v771
    %v846 = vunpack.c.h.b16 %v771
    %v847 = vunpack.c.l.b16 %v772
    %v848 = vunpack.c.h.b16 %v772
    %v849 = vunpack.c.l.b16 %v773
    %v850 = vunpack.c.h.b16 %v773
    %v851 = vunpack.c.l.b16 %v774
    %v852 = vunpack.c.h.b16 %v774
    %v853 = vunpack.c.l.b16 %v775
    %v854 = vunpack.c.h.b16 %v775
    %v855 = vunpack.c.l.b16 %v776
    %v856 = vunpack.c.h.b16 %v776
    %v857 = vunpack.c.l.b16 %v777
    %v858 = vunpack.c.h.b16 %v777
    %v859 = vunpack.c.l.b16 %v778
    %v860 = vunpack.c.h.b16 %v778
    %v861 = vunpack.c.l.b16 %v779
    %v862 = vunpack.c.h.b16 %v779
    %v863 = vunpack.c.l.b16 %v780
    %v864 = vunpack.c.h.b16 %v780
    %v865 = vunpack.c.l.b16 %v781
    %v866 = vunpack.c.h.b16 %v781
    %v867 = vpack.c.b16 %v823, %v819
    %v868 = vpack.c.b16 %v824, %v820
    %v869 = vpack.c.b16 %v825, %v821
    %v870 = vpack.c.b16 %v826, %v822
    %v871 = vpack.c.b16 %v831, %v827
    %v872 = vpack.c.b16 %v832, %v828
    %v873 = vpack.c.b16 %v833, %v829
    %v874 = vpack.c.b16 %v834, %v830
    %v875 = vpack.c.b16 %v839, %v835
    %v876 = vpack.c.b16 %v840, %v836
    %v877 = vpack.c.b16 %v841, %v837
    %v878 = vpack.c.b16 %v842, %v838
    %v879 = vpack.c.b16 %v847, %v843
    %v880 = vpack.c.b16 %v848, %v844
    %v881 = vpack.c.b16 %v849, %v845
    %v882 = vpack.c.b16 %v850, %v846
    %v883 = vpack.c.b16 %v855, %v851
    %v884 = vpack.c.b16 %v856, %v852
    %v885 = vpack.c.b16 %v857, %v853
    %v886 = vpack.c.b16 %v858, %v854
    %v887 = vpack.c.b16 %v863, %v859
    %v888 = vpack.c.b16 %v864, %v860
    %v889 = vpack.c.b16 %v865, %v861
    %v890 = vpack.c.b16 %v866, %v862
    %v916 = vsel %vm282, %v788, 0
    %v919 = vsel %vm282, %v790, 0
    %v922 = vsel %vm282, %v792, 0
    %v925 = vsel %vm282, %v794, 0
    %v928 = vsel %vm282, %v793, 0
    %930 = vmatprep.subr.bf16.mxu0 0
    %931 = vmatpush1.bf16.msra.mxu0 0
    %932 = vmatprep.subr.bf16.mxu0 0
    %933 = vmatpush1.bf16.msra.mxu0 0
    %934 = vmatprep.subr.bf16.mxu0 %v888
    %935 = vmatpush1.bf16.msra.mxu0 %v887
    %936 = vmatprep.subr.bf16.mxu0 %v884
    %937 = vmatpush1.bf16.msra.mxu0 %v883
    %938 = vmatprep.subr.bf16.mxu0 %v880
    %939 = vmatpush1.bf16.msra.mxu0 %v879
    %940 = vmatprep.subr.bf16.mxu0 %v876
    %941 = vmatpush1.bf16.msra.mxu0 %v875
    %942 = vmatprep.subr.bf16.mxu0 %v872
    %943 = vmatpush1.bf16.msra.mxu0 %v871
    %944 = vmatprep.subr.bf16.mxu0 %v868
    %945 = vmatpush1.bf16.msra.mxu0 %v867
    %946 = vmatprep.subr.bf16.mxu0 0
    %947 = vmatpush2.bf16.msra.mxu0 0
    %948 = vmatprep.subr.bf16.mxu0 0
    %949 = vmatpush2.bf16.msra.mxu0 0
    %950 = vmatprep.subr.bf16.mxu0 0
    %951 = vmatpush2.bf16.msra.mxu0 0
    %952 = vmatprep.subr.bf16.mxu0 0
    %953 = vmatpush2.bf16.msra.mxu0 0
    %954 = vmatprep.subr.bf16.mxu0 0
    %955 = vmatpush2.bf16.msra.mxu0 0
    %956 = vmatprep.subr.bf16.mxu0 0
    %957 = vmatpush2.bf16.msra.mxu0 0
    %958 = vmatprep.subr.bf16.mxu0 0
    %959 = vmatpush2.bf16.msra.mxu0 0
    %960 = vmatprep.subr.bf16.mxu0 0
    %961 = vmatpush2.bf16.msra.mxu0 0
    %962 = vmatprep.mubr.bf16.mxu0 0
    %963 = vmatmul.mubr.bf16.gmra.mxu0 %v916
    %v964 = vpop.f32.mrf.mxu0
    %v965 = vadd.f32 0.0, %v964
    %v966 = vpop.f32.mrf.mxu0
    %v967 = vadd.f32 0.0, %v966
    %v968 = vpop.f32.mrf.mxu0
    %v969 = vadd.f32 0.0, %v968
    %v970 = vpop.f32.mrf.mxu0
    %v971 = vadd.f32 0.0, %v970
    %972 = vmatprep.mubr.bf16.mxu0 0
    %973 = vmatmul.mubr.bf16.gmra.mxu0 %v919
    %v974 = vpop.f32.mrf.mxu0
    %v975 = vadd.f32 0.0, %v974
    %v976 = vpop.f32.mrf.mxu0
    %v977 = vadd.f32 0.0, %v976
    %v978 = vpop.f32.mrf.mxu0
    %v979 = vadd.f32 0.0, %v978
    %v980 = vpop.f32.mrf.mxu0
    %v981 = vadd.f32 0.0, %v980
    %982 = vmatprep.mubr.bf16.mxu0 0
    %983 = vmatmul.mubr.bf16.gmra.mxu0 %v922
    %v984 = vpop.f32.mrf.mxu0
    %v985 = vadd.f32 0.0, %v984
    %v986 = vpop.f32.mrf.mxu0
    %v987 = vadd.f32 0.0, %v986
    %v988 = vpop.f32.mrf.mxu0
    %v989 = vadd.f32 0.0, %v988
    %v990 = vpop.f32.mrf.mxu0
    %v991 = vadd.f32 0.0, %v990
    %992 = vmatprep.mubr.bf16.mxu0 0
    %993 = vmatmul.mubr.bf16.gmra.mxu0 %v925
    %v994 = vpop.f32.mrf.mxu0
    %v995 = vadd.f32 0.0, %v994
    %v996 = vpop.f32.mrf.mxu0
    %v997 = vadd.f32 0.0, %v996
    %v998 = vpop.f32.mrf.mxu0
    %v999 = vadd.f32 0.0, %v998
    %v1000 = vpop.f32.mrf.mxu0
    %v1001 = vadd.f32 0.0, %v1000
    %1002 = vmatprep.mubr.bf16.mxu0 0
    %1003 = vmatmul.mubr.bf16.gmra.mxu0 %v928
    %v1004 = vpop.f32.mrf.mxu0
    %v1005 = vadd.f32 0.0, %v1004
    %v1006 = vpop.f32.mrf.mxu0
    %v1007 = vadd.f32 0.0, %v1006
    %v1008 = vpop.f32.mrf.mxu0
    %v1009 = vpop.f32.mrf.mxu0
    %1010 = vdwg.mxu0
    %1011 = vmatprep.subr.bf16.mxu0 0
    %1012 = vmatpush1.bf16.msra.mxu0 0
    %1013 = vmatprep.subr.bf16.mxu0 0
    %1014 = vmatpush1.bf16.msra.mxu0 0
    %1015 = vmatprep.subr.bf16.mxu0 %v890
    %1016 = vmatpush1.bf16.msra.mxu0 %v889
    %1017 = vmatprep.subr.bf16.mxu0 %v886
    %1018 = vmatpush1.bf16.msra.mxu0 %v885
    %1019 = vmatprep.subr.bf16.mxu0 %v882
    %1020 = vmatpush1.bf16.msra.mxu0 %v881
    %1021 = vmatprep.subr.bf16.mxu0 %v878
    %1022 = vmatpush1.bf16.msra.mxu0 %v877
    %1023 = vmatprep.subr.bf16.mxu0 %v874
    %1024 = vmatpush1.bf16.msra.mxu0 %v873
    %1025 = vmatprep.subr.bf16.mxu0 %v870
    %1026 = vmatpush1.bf16.msra.mxu0 %v869
    %1027 = vmatprep.subr.bf16.mxu0 0
    %1028 = vmatpush2.bf16.msra.mxu0 0
    %1029 = vmatprep.subr.bf16.mxu0 0
    %1030 = vmatpush2.bf16.msra.mxu0 0
    %1031 = vmatprep.subr.bf16.mxu0 0
    %1032 = vmatpush2.bf16.msra.mxu0 0
    %1033 = vmatprep.subr.bf16.mxu0 0
    %1034 = vmatpush2.bf16.msra.mxu0 0
    %1035 = vmatprep.subr.bf16.mxu0 0
    %1036 = vmatpush2.bf16.msra.mxu0 0
    %1037 = vmatprep.subr.bf16.mxu0 0
    %1038 = vmatpush2.bf16.msra.mxu0 0
    %1039 = vmatprep.subr.bf16.mxu0 0
    %1040 = vmatpush2.bf16.msra.mxu0 0
    %1041 = vmatprep.subr.bf16.mxu0 0
    %1042 = vmatpush2.bf16.msra.mxu0 0
    %1043 = vmatprep.mubr.bf16.mxu0 0
    %1044 = vmatmul.mubr.bf16.gmra.mxu0 %v916
    %v1045 = vpop.f32.mrf.mxu0
    %v1046 = vadd.f32 0.0, %v1045
    %v1047 = vpop.f32.mrf.mxu0
    %v1048 = vadd.f32 0.0, %v1047
    %v1049 = vpop.f32.mrf.mxu0
    %v1050 = vadd.f32 0.0, %v1049
    %v1051 = vpop.f32.mrf.mxu0
    %v1052 = vadd.f32 0.0, %v1051
    %1053 = vmatprep.mubr.bf16.mxu0 0
    %1054 = vmatmul.mubr.bf16.gmra.mxu0 %v919
    %v1055 = vpop.f32.mrf.mxu0
    %v1056 = vadd.f32 0.0, %v1055
    %v1057 = vpop.f32.mrf.mxu0
    %v1058 = vadd.f32 0.0, %v1057
    %v1059 = vpop.f32.mrf.mxu0
    %v1060 = vadd.f32 0.0, %v1059
    %v1061 = vpop.f32.mrf.mxu0
    %v1062 = vadd.f32 0.0, %v1061
    %1063 = vmatprep.mubr.bf16.mxu0 0
    %1064 = vmatmul.mubr.bf16.gmra.mxu0 %v922
    %v1065 = vpop.f32.mrf.mxu0
    %v1066 = vadd.f32 0.0, %v1065
    %v1067 = vpop.f32.mrf.mxu0
    %v1068 = vadd.f32 0.0, %v1067
    %v1069 = vpop.f32.mrf.mxu0
    %v1070 = vadd.f32 0.0, %v1069
    %v1071 = vpop.f32.mrf.mxu0
    %v1072 = vadd.f32 0.0, %v1071
    %1073 = vmatprep.mubr.bf16.mxu0 0
    %1074 = vmatmul.mubr.bf16.gmra.mxu0 %v925
    %v1075 = vpop.f32.mrf.mxu0
    %v1076 = vadd.f32 0.0, %v1075
    %v1077 = vpop.f32.mrf.mxu0
    %v1078 = vadd.f32 0.0, %v1077
    %v1079 = vpop.f32.mrf.mxu0
    %v1080 = vadd.f32 0.0, %v1079
    %v1081 = vpop.f32.mrf.mxu0
    %v1082 = vadd.f32 0.0, %v1081
    %1083 = vmatprep.mubr.bf16.mxu0 0
    %1084 = vmatmul.mubr.bf16.gmra.mxu0 %v928
    %v1085 = vpop.f32.mrf.mxu0
    %v1086 = vadd.f32 0.0, %v1085
    %v1087 = vpop.f32.mrf.mxu0
    %v1088 = vadd.f32 0.0, %v1087
    %v1089 = vpop.f32.mrf.mxu0
    %v1090 = vpop.f32.mrf.mxu0
    %1091 = vdwg.mxu0
    %v1092 = vadd.f32 %v629, %v965
    %v1093 = vadd.f32 %v631, %v967
    %v1094 = vadd.f32 %v710, %v1046
    %v1095 = vadd.f32 %v712, %v1048
    %v1096 = vadd.f32 %v633, %v969
    %v1097 = vadd.f32 %v635, %v971
    %v1098 = vadd.f32 %v714, %v1050
    %v1099 = vadd.f32 %v716, %v1052
    %v1100 = vadd.f32 %v639, %v975
    %v1101 = vadd.f32 %v641, %v977
    %v1102 = vadd.f32 %v720, %v1056
    %v1103 = vadd.f32 %v722, %v1058
    %v1104 = vadd.f32 %v643, %v979
    %v1105 = vadd.f32 %v645, %v981
    %v1106 = vadd.f32 %v724, %v1060
    %v1107 = vadd.f32 %v726, %v1062
    %v1108 = vadd.f32 %v649, %v985
    %v1109 = vadd.f32 %v651, %v987
    %v1110 = vadd.f32 %v730, %v1066
    %v1111 = vadd.f32 %v732, %v1068
    %v1112 = vadd.f32 %v653, %v989
    %v1113 = vadd.f32 %v655, %v991
    %v1114 = vadd.f32 %v734, %v1070
    %v1115 = vadd.f32 %v736, %v1072
    %v1116 = vadd.f32 %v659, %v995
    %v1117 = vadd.f32 %v661, %v997
    %v1118 = vadd.f32 %v740, %v1076
    %v1119 = vadd.f32 %v742, %v1078
    %v1120 = vadd.f32 %v663, %v999
    %v1121 = vadd.f32 %v665, %v1001
    %v1122 = vadd.f32 %v744, %v1080
    %v1123 = vadd.f32 %v746, %v1082
    %v1124 = vadd.f32 %v669, %v1005
    %v1125 = vadd.f32 %v671, %v1007
    %v1126 = vadd.f32 %v750, %v1086
    %v1127 = vadd.f32 %v752, %v1088
    %1128 = vst [vmem:[#allocation2] sm:$0xff] %v1092
    %1129 = vst [vmem:[#allocation2 + $0x8] sm:$0xff] %v1093
    %1130 = vst [vmem:[#allocation2 + $0x10] sm:$0xff] %v1094
    %1131 = vst [vmem:[#allocation2 + $0x18] sm:$0xff] %v1095
    %1132 = vst [vmem:[#allocation2 + $0x20] sm:$0xff] %v1096
    %1133 = vst [vmem:[#allocation2 + $0x28] sm:$0xff] %v1097
    %1134 = vst [vmem:[#allocation2 + $0x30] sm:$0xff] %v1098
    %1135 = vst [vmem:[#allocation2 + $0x38] sm:$0xff] %v1099
    %1136 = vst [vmem:[#allocation2 + $0x40] sm:$0xff] %v1100
    %1137 = vst [vmem:[#allocation2 + $0x48] sm:$0xff] %v1101
    %1138 = vst [vmem:[#allocation2 + $0x50] sm:$0xff] %v1102
    %1139 = vst [vmem:[#allocation2 + $0x58] sm:$0xff] %v1103
    %1140 = vst [vmem:[#allocation2 + $0x60] sm:$0xff] %v1104
    %1141 = vst [vmem:[#allocation2 + $0x68] sm:$0xff] %v1105
    %1142 = vst [vmem:[#allocation2 + $0x70] sm:$0xff] %v1106
    %1143 = vst [vmem:[#allocation2 + $0x78] sm:$0xff] %v1107
    %1144 = vst [vmem:[#allocation2 + $0x80] sm:$0xff] %v1108
    %1145 = vst [vmem:[#allocation2 + $0x88] sm:$0xff] %v1109
    %1146 = vst [vmem:[#allocation2 + $0x90] sm:$0xff] %v1110
    %1147 = vst [vmem:[#allocation2 + $0x98] sm:$0xff] %v1111
    %1148 = vst [vmem:[#allocation2 + $0xa0] sm:$0xff] %v1112
    %1149 = vst [vmem:[#allocation2 + $0xa8] sm:$0xff] %v1113
    %1150 = vst [vmem:[#allocation2 + $0xb0] sm:$0xff] %v1114
    %1151 = vst [vmem:[#allocation2 + $0xb8] sm:$0xff] %v1115
    %1152 = vst [vmem:[#allocation2 + $0xc0] sm:$0xff] %v1116
    %1153 = vst [vmem:[#allocation2 + $0xc8] sm:$0xff] %v1117
    %1154 = vst [vmem:[#allocation2 + $0xd0] sm:$0xff] %v1118
    %1155 = vst [vmem:[#allocation2 + $0xd8] sm:$0xff] %v1119
    %1156 = vst [vmem:[#allocation2 + $0xe0] sm:$0xff] %v1120
    %1157 = vst [vmem:[#allocation2 + $0xe8] sm:$0xff] %v1121
    %1158 = vst [vmem:[#allocation2 + $0xf0] sm:$0xff] %v1122
    %1159 = vst [vmem:[#allocation2 + $0xf8] sm:$0xff] %v1123
    %1160 = vst [vmem:[#allocation2 + $0x100] sm:$0x3] %v1124
    %1161 = vst [vmem:[#allocation2 + $0x108] sm:$0x3] %v1125
    %1162 = vst [vmem:[#allocation2 + $0x110] sm:$0x3] %v1126
    %1163 = vst [vmem:[#allocation2 + $0x118] sm:$0x3] %v1127
    %v1164 = vld [vmem:[#allocation2] sm:$0xff]
    %v1165 = vld [vmem:[#allocation2 + $0x8] sm:$0xff]
    %v1166 = vld [vmem:[#allocation2 + $0x10] sm:$0xff]
    %v1167 = vld [vmem:[#allocation2 + $0x18] sm:$0xff]
    %v1168 = vld [vmem:[#allocation2 + $0x20] sm:$0xff]
    %v1169 = vld [vmem:[#allocation2 + $0x28] sm:$0xff]
    %v1170 = vld [vmem:[#allocation2 + $0x30] sm:$0xff]
    %v1171 = vld [vmem:[#allocation2 + $0x38] sm:$0xff]
    %v1172 = vld [vmem:[#allocation2 + $0x40] sm:$0xff]
    %v1173 = vld [vmem:[#allocation2 + $0x48] sm:$0xff]
    %v1174 = vld [vmem:[#allocation2 + $0x50] sm:$0xff]
    %v1175 = vld [vmem:[#allocation2 + $0x58] sm:$0xff]
    %v1176 = vld [vmem:[#allocation2 + $0x60] sm:$0xff]
    %v1177 = vld [vmem:[#allocation2 + $0x68] sm:$0xff]
    %v1178 = vld [vmem:[#allocation2 + $0x70] sm:$0xff]
    %v1179 = vld [vmem:[#allocation2 + $0x78] sm:$0xff]
    %v1180 = vld [vmem:[#allocation2 + $0x80] sm:$0xff]
    %v1181 = vld [vmem:[#allocation2 + $0x88] sm:$0xff]
    %v1182 = vld [vmem:[#allocation2 + $0x90] sm:$0xff]
    %v1183 = vld [vmem:[#allocation2 + $0x98] sm:$0xff]
    %v1184 = vld [vmem:[#allocation2 + $0xa0] sm:$0xff]
    %v1185 = vld [vmem:[#allocation2 + $0xa8] sm:$0xff]
    %v1186 = vld [vmem:[#allocation2 + $0xb0] sm:$0xff]
    %v1187 = vld [vmem:[#allocation2 + $0xb8] sm:$0xff]
    %v1188 = vld [vmem:[#allocation2 + $0xc0] sm:$0xff]
    %v1189 = vld [vmem:[#allocation2 + $0xc8] sm:$0xff]
    %v1190 = vld [vmem:[#allocation2 + $0xd0] sm:$0xff]
    %v1191 = vld [vmem:[#allocation2 + $0xd8] sm:$0xff]
    %v1192 = vld [vmem:[#allocation2 + $0xe0] sm:$0xff]
    %v1193 = vld [vmem:[#allocation2 + $0xe8] sm:$0xff]
    %v1194 = vld [vmem:[#allocation2 + $0xf0] sm:$0xff]
    %v1195 = vld [vmem:[#allocation2 + $0xf8] sm:$0xff]
    %v1196 = vld [vmem:[#allocation2 + $0x100] sm:$0x1]
    %v1197 = vld [vmem:[#allocation2 + $0x108] sm:$0x1]
    %v1198 = vld [vmem:[#allocation2 + $0x110] sm:$0x1]
    %v1199 = vld [vmem:[#allocation2 + $0x118] sm:$0x1]
    %v1200 = vld [vmem:[#allocation2] sm:$0xfe]
    %v1201 = vld [vmem:[#allocation2 + $0x8] sm:$0xfe]
    %v1202 = vld [vmem:[#allocation2 + $0x10] sm:$0xfe]
    %v1203 = vld [vmem:[#allocation2 + $0x18] sm:$0xfe]
    %v1204 = vld [vmem:[#allocation2 + $0x100] sm:$0x3]
    %v1205 = vld [vmem:[#allocation2 + $0x108] sm:$0x3]
    %v1206 = vld [vmem:[#allocation2 + $0x110] sm:$0x3]
    %v1207 = vld [vmem:[#allocation2 + $0x118] sm:$0x3]
    %vm1244 = vcmask 1046528
    %v1245 = vrot.slane %v1200, 1
    %v1246 = vrot.slane %v1168, 1
    %v1247 = vsel %vm1244, %v1245, %v1246
    %v1248 = vrot.slane %v1201, 1
    %v1249 = vrot.slane %v1169, 1
    %v1250 = vsel %vm1244, %v1248, %v1249
    %v1251 = vrot.slane %v1202, 1
    %v1252 = vrot.slane %v1170, 1
    %v1253 = vsel %vm1244, %v1251, %v1252
    %v1254 = vrot.slane %v1203, 1
    %v1255 = vrot.slane %v1171, 1
    %v1256 = vsel %vm1244, %v1254, %v1255
    %v1257 = vrot.slane %v1172, 1
    %v1258 = vsel %vm1244, %v1246, %v1257
    %v1259 = vrot.slane %v1173, 1
    %v1260 = vsel %vm1244, %v1249, %v1259
    %v1261 = vrot.slane %v1174, 1
    %v1262 = vsel %vm1244, %v1252, %v1261
    %v1263 = vrot.slane %v1175, 1
    %v1264 = vsel %vm1244, %v1255, %v1263
    %v1265 = vrot.slane %v1176, 1
    %v1266 = vsel %vm1244, %v1257, %v1265
    %v1267 = vrot.slane %v1177, 1
    %v1268 = vsel %vm1244, %v1259, %v1267
    %v1269 = vrot.slane %v1178, 1
    %v1270 = vsel %vm1244, %v1261, %v1269
    %v1271 = vrot.slane %v1179, 1
    %v1272 = vsel %vm1244, %v1263, %v1271
    %v1273 = vrot.slane %v1180, 1
    %v1274 = vsel %vm1244, %v1265, %v1273
    %v1275 = vrot.slane %v1181, 1
    %v1276 = vsel %vm1244, %v1267, %v1275
    %v1277 = vrot.slane %v1182, 1
    %v1278 = vsel %vm1244, %v1269, %v1277
    %v1279 = vrot.slane %v1183, 1
    %v1280 = vsel %vm1244, %v1271, %v1279
    %v1281 = vrot.slane %v1184, 1
    %v1282 = vsel %vm1244, %v1273, %v1281
    %v1283 = vrot.slane %v1185, 1
    %v1284 = vsel %vm1244, %v1275, %v1283
    %v1285 = vrot.slane %v1186, 1
    %v1286 = vsel %vm1244, %v1277, %v1285
    %v1287 = vrot.slane %v1187, 1
    %v1288 = vsel %vm1244, %v1279, %v1287
    %v1289 = vrot.slane %v1188, 1
    %v1290 = vsel %vm1244, %v1281, %v1289
    %v1291 = vrot.slane %v1189, 1
    %v1292 = vsel %vm1244, %v1283, %v1291
    %v1293 = vrot.slane %v1190, 1
    %v1294 = vsel %vm1244, %v1285, %v1293
    %v1295 = vrot.slane %v1191, 1
    %v1296 = vsel %vm1244, %v1287, %v1295
    %v1297 = vrot.slane %v1192, 1
    %v1298 = vsel %vm1244, %v1289, %v1297
    %v1299 = vrot.slane %v1193, 1
    %v1300 = vsel %vm1244, %v1291, %v1299
    %v1301 = vrot.slane %v1194, 1
    %v1302 = vsel %vm1244, %v1293, %v1301
    %v1303 = vrot.slane %v1195, 1
    %v1304 = vsel %vm1244, %v1295, %v1303
    %v1305 = vrot.slane %v1204, 1
    %v1306 = vsel %vm1244, %v1297, %v1305
    %v1307 = vrot.slane %v1205, 1
    %v1308 = vsel %vm1244, %v1299, %v1307
    %v1309 = vrot.slane %v1206, 1
    %v1310 = vsel %vm1244, %v1301, %v1309
    %v1311 = vrot.slane %v1207, 1
    %v1312 = vsel %vm1244, %v1303, %v1311
    %v1349 = vmax.f32 %v1164, %v1247
    %v1350 = vmax.f32 %v1165, %v1250
    %v1351 = vmax.f32 %v1166, %v1253
    %v1352 = vmax.f32 %v1167, %v1256
    %v1353 = vmax.f32 %v1168, %v1258
    %v1354 = vmax.f32 %v1169, %v1260
    %v1355 = vmax.f32 %v1170, %v1262
    %v1356 = vmax.f32 %v1171, %v1264
    %v1357 = vmax.f32 %v1172, %v1266
    %v1358 = vmax.f32 %v1173, %v1268
    %v1359 = vmax.f32 %v1174, %v1270
    %v1360 = vmax.f32 %v1175, %v1272
    %v1361 = vmax.f32 %v1176, %v1274
    %v1362 = vmax.f32 %v1177, %v1276
    %v1363 = vmax.f32 %v1178, %v1278
    %v1364 = vmax.f32 %v1179, %v1280
    %v1365 = vmax.f32 %v1180, %v1282
    %v1366 = vmax.f32 %v1181, %v1284
    %v1367 = vmax.f32 %v1182, %v1286
    %v1368 = vmax.f32 %v1183, %v1288
    %v1369 = vmax.f32 %v1184, %v1290
    %v1370 = vmax.f32 %v1185, %v1292
    %v1371 = vmax.f32 %v1186, %v1294
    %v1372 = vmax.f32 %v1187, %v1296
    %v1373 = vmax.f32 %v1188, %v1298
    %v1374 = vmax.f32 %v1189, %v1300
    %v1375 = vmax.f32 %v1190, %v1302
    %v1376 = vmax.f32 %v1191, %v1304
    %v1377 = vmax.f32 %v1192, %v1306
    %v1378 = vmax.f32 %v1193, %v1308
    %v1379 = vmax.f32 %v1194, %v1310
    %v1380 = vmax.f32 %v1195, %v1312
    %v1381 = vmax.f32 %v1196, %v1305
    %v1382 = vmax.f32 %v1197, %v1307
    %v1383 = vmax.f32 %v1198, %v1309
    %v1384 = vmax.f32 %v1199, %v1311
    %v1385 = vld [vmem:[%s3] sm:$0xff]
    %v1386 = vld [vmem:[%s3 + $0x8] sm:$0xff]
    %v1387 = vld [vmem:[%s3 + $0x10] sm:$0xff]
    %v1388 = vld [vmem:[%s3 + $0x18] sm:$0xff]
    %vm1389 = vcmask 531456
    %v1391 = vsel %vm1389, %v1385, 0
    %v1394 = vsel %vm1389, %v1386, 0
    %v1397 = vsel %vm1389, %v1387, 0
    %v1400 = vsel %vm1389, %v1388, 0
    %vm1402 = vcmask 1040384
    %v1404 = vsel %vm1402, %v1381, 0
    %v1407 = vsel %vm1402, %v1382, 0
    %v1410 = vsel %vm1402, %v1383, 0
    %v1413 = vsel %vm1402, %v1384, 0
    %1415 = vmatprep.subr.mxu0 0.0
    %1416 = vmatpush1.msra.mxu0 0.0
    %1417 = vmatprep.subr.mxu0 0.0
    %1418 = vmatpush1.msra.mxu0 0.0
    %1419 = vmatprep.subr.mxu0 0.0
    %1420 = vmatpush1.msra.mxu0 0.0
    %1421 = vmatprep.subr.mxu0 0.0
    %1422 = vmatpush1.msra.mxu0 0.0
    %1423 = vmatprep.subr.mxu0 0.0
    %1424 = vmatpush1.msra.mxu0 0.0
    %1425 = vmatprep.subr.mxu0 0.0
    %1426 = vmatpush1.msra.mxu0 0.0
    %1427 = vmatprep.subr.mxu0 0.0
    %1428 = vmatpush1.msra.mxu0 0.0
    %1429 = vmatprep.subr.mxu0 %v1407
    %1430 = vmatpush1.msra.mxu0 %v1404
    %1431 = vmatprep.subr.mxu0 %v1378
    %1432 = vmatpush1.msra.mxu0 %v1377
    %1433 = vmatprep.subr.mxu0 %v1374
    %1434 = vmatpush1.msra.mxu0 %v1373
    %1435 = vmatprep.subr.mxu0 %v1370
    %1436 = vmatpush1.msra.mxu0 %v1369
    %1437 = vmatprep.subr.mxu0 %v1366
    %1438 = vmatpush1.msra.mxu0 %v1365
    %1439 = vmatprep.subr.mxu0 %v1362
    %1440 = vmatpush1.msra.mxu0 %v1361
    %1441 = vmatprep.subr.mxu0 %v1358
    %1442 = vmatpush1.msra.mxu0 %v1357
    %1443 = vmatprep.subr.mxu0 %v1354
    %1444 = vmatpush1.msra.mxu0 %v1353
    %1445 = vmatprep.subr.mxu0 %v1350
    %1446 = vmatpush1.msra.mxu0 %v1349
    %1447 = vmatprep.subr.mxu0 0.0
    %1448 = vmatpush2.msra.mxu0 0.0
    %1449 = vmatprep.subr.mxu0 0.0
    %1450 = vmatpush2.msra.mxu0 0.0
    %1451 = vmatprep.subr.mxu0 0.0
    %1452 = vmatpush2.msra.mxu0 0.0
    %1453 = vmatprep.subr.mxu0 0.0
    %1454 = vmatpush2.msra.mxu0 0.0
    %1455 = vmatprep.subr.mxu0 0.0
    %1456 = vmatpush2.msra.mxu0 0.0
    %1457 = vmatprep.subr.mxu0 0.0
    %1458 = vmatpush2.msra.mxu0 0.0
    %1459 = vmatprep.subr.mxu0 0.0
    %1460 = vmatpush2.msra.mxu0 0.0
    %1461 = vmatprep.subr.mxu0 0.0
    %1462 = vmatpush2.msra.mxu0 0.0
    %1463 = vmatprep.subr.mxu0 0.0
    %1464 = vmatpush2.msra.mxu0 0.0
    %1465 = vmatprep.subr.mxu0 0.0
    %1466 = vmatpush2.msra.mxu0 0.0
    %1467 = vmatprep.subr.mxu0 0.0
    %1468 = vmatpush2.msra.mxu0 0.0
    %1469 = vmatprep.subr.mxu0 0.0
    %1470 = vmatpush2.msra.mxu0 0.0
    %1471 = vmatprep.subr.mxu0 0.0
    %1472 = vmatpush2.msra.mxu0 0.0
    %1473 = vmatprep.subr.mxu0 0.0
    %1474 = vmatpush2.msra.mxu0 0.0
    %1475 = vmatprep.subr.mxu0 0.0
    %1476 = vmatpush2.msra.mxu0 0.0
    %1477 = vmatprep.subr.mxu0 0.0
    %1478 = vmatpush2.msra.mxu0 0.0
    %1479 = vmatprep.mubr.f32.mxu0 0.0
    %1480 = vmatmul.mubr.f32.gmra.mxu0 %v1391
    %v1481 = vpop.f32.mrf.mxu0
    %v1482 = vadd.f32 0.0, %v1481
    %v1483 = vpop.f32.mrf.mxu0
    %v1484 = vadd.f32 0.0, %v1483
    %1485 = vmatprep.mubr.f32.mxu0 0.0
    %1486 = vmatmul.mubr.f32.gmra.mxu0 %v1394
    %v1487 = vpop.f32.mrf.mxu0
    %v1488 = vadd.f32 0.0, %v1487
    %v1489 = vpop.f32.mrf.mxu0
    %v1490 = vadd.f32 0.0, %v1489
    %1491 = vmatprep.mubr.f32.mxu0 0.0
    %1492 = vmatmul.mubr.f32.gmra.mxu0 %v1397
    %v1493 = vpop.f32.mrf.mxu0
    %v1494 = vadd.f32 0.0, %v1493
    %v1495 = vpop.f32.mrf.mxu0
    %v1496 = vadd.f32 0.0, %v1495
    %1497 = vmatprep.mubr.f32.mxu0 0.0
    %1498 = vmatmul.mubr.f32.gmra.mxu0 %v1400
    %v1499 = vpop.f32.mrf.mxu0
    %v1500 = vadd.f32 0.0, %v1499
    %v1501 = vpop.f32.mrf.mxu0
    %v1502 = vadd.f32 0.0, %v1501
    %1503 = vdwg.mxu0
    %1504 = vmatprep.subr.mxu0 0.0
    %1505 = vmatpush1.msra.mxu0 0.0
    %1506 = vmatprep.subr.mxu0 0.0
    %1507 = vmatpush1.msra.mxu0 0.0
    %1508 = vmatprep.subr.mxu0 0.0
    %1509 = vmatpush1.msra.mxu0 0.0
    %1510 = vmatprep.subr.mxu0 0.0
    %1511 = vmatpush1.msra.mxu0 0.0
    %1512 = vmatprep.subr.mxu0 0.0
    %1513 = vmatpush1.msra.mxu0 0.0
    %1514 = vmatprep.subr.mxu0 0.0
    %1515 = vmatpush1.msra.mxu0 0.0
    %1516 = vmatprep.subr.mxu0 0.0
    %1517 = vmatpush1.msra.mxu0 0.0
    %1518 = vmatprep.subr.mxu0 %v1413
    %1519 = vmatpush1.msra.mxu0 %v1410
    %1520 = vmatprep.subr.mxu0 %v1380
    %1521 = vmatpush1.msra.mxu0 %v1379
    %1522 = vmatprep.subr.mxu0 %v1376
    %1523 = vmatpush1.msra.mxu0 %v1375
    %1524 = vmatprep.subr.mxu0 %v1372
    %1525 = vmatpush1.msra.mxu0 %v1371
    %1526 = vmatprep.subr.mxu0 %v1368
    %1527 = vmatpush1.msra.mxu0 %v1367
    %1528 = vmatprep.subr.mxu0 %v1364
    %1529 = vmatpush1.msra.mxu0 %v1363
    %1530 = vmatprep.subr.mxu0 %v1360
    %1531 = vmatpush1.msra.mxu0 %v1359
    %1532 = vmatprep.subr.mxu0 %v1356
    %1533 = vmatpush1.msra.mxu0 %v1355
    %1534 = vmatprep.subr.mxu0 %v1352
    %1535 = vmatpush1.msra.mxu0 %v1351
    %1536 = vmatprep.subr.mxu0 0.0
    %1537 = vmatpush2.msra.mxu0 0.0
    %1538 = vmatprep.subr.mxu0 0.0
    %1539 = vmatpush2.msra.mxu0 0.0
    %1540 = vmatprep.subr.mxu0 0.0
    %1541 = vmatpush2.msra.mxu0 0.0
    %1542 = vmatprep.subr.mxu0 0.0
    %1543 = vmatpush2.msra.mxu0 0.0
    %1544 = vmatprep.subr.mxu0 0.0
    %1545 = vmatpush2.msra.mxu0 0.0
    %1546 = vmatprep.subr.mxu0 0.0
    %1547 = vmatpush2.msra.mxu0 0.0
    %1548 = vmatprep.subr.mxu0 0.0
    %1549 = vmatpush2.msra.mxu0 0.0
    %1550 = vmatprep.subr.mxu0 0.0
    %1551 = vmatpush2.msra.mxu0 0.0
    %1552 = vmatprep.subr.mxu0 0.0
    %1553 = vmatpush2.msra.mxu0 0.0
    %1554 = vmatprep.subr.mxu0 0.0
    %1555 = vmatpush2.msra.mxu0 0.0
    %1556 = vmatprep.subr.mxu0 0.0
    %1557 = vmatpush2.msra.mxu0 0.0
    %1558 = vmatprep.subr.mxu0 0.0
    %1559 = vmatpush2.msra.mxu0 0.0
    %1560 = vmatprep.subr.mxu0 0.0
    %1561 = vmatpush2.msra.mxu0 0.0
    %1562 = vmatprep.subr.mxu0 0.0
    %1563 = vmatpush2.msra.mxu0 0.0
    %1564 = vmatprep.subr.mxu0 0.0
    %1565 = vmatpush2.msra.mxu0 0.0
    %1566 = vmatprep.subr.mxu0 0.0
    %1567 = vmatpush2.msra.mxu0 0.0
    %1568 = vmatprep.mubr.f32.mxu0 0.0
    %1569 = vmatmul.mubr.f32.gmra.mxu0 %v1391
    %v1570 = vpop.f32.mrf.mxu0
    %v1571 = vadd.f32 0.0, %v1570
    %v1572 = vpop.f32.mrf.mxu0
    %v1573 = vadd.f32 0.0, %v1572
    %1574 = vmatprep.mubr.f32.mxu0 0.0
    %1575 = vmatmul.mubr.f32.gmra.mxu0 %v1394
    %v1576 = vpop.f32.mrf.mxu0
    %v1577 = vadd.f32 0.0, %v1576
    %v1578 = vpop.f32.mrf.mxu0
    %v1579 = vadd.f32 0.0, %v1578
    %1580 = vmatprep.mubr.f32.mxu0 0.0
    %1581 = vmatmul.mubr.f32.gmra.mxu0 %v1397
    %v1582 = vpop.f32.mrf.mxu0
    %v1583 = vadd.f32 0.0, %v1582
    %v1584 = vpop.f32.mrf.mxu0
    %v1585 = vadd.f32 0.0, %v1584
    %1586 = vmatprep.mubr.f32.mxu0 0.0
    %1587 = vmatmul.mubr.f32.gmra.mxu0 %v1400
    %v1588 = vpop.f32.mrf.mxu0
    %v1589 = vadd.f32 0.0, %v1588
    %v1590 = vpop.f32.mrf.mxu0
    %v1591 = vadd.f32 0.0, %v1590
    %1592 = vdwg.mxu0
    %v1593 = vmax.f32 %v1482, %v1571
    %v1594 = vmax.f32 %v1484, %v1573
    %v1595 = vmax.f32 %v1488, %v1577
    %v1596 = vmax.f32 %v1490, %v1579
    %v1597 = vmax.f32 %v1494, %v1583
    %v1598 = vmax.f32 %v1496, %v1585
    %v1599 = vmax.f32 %v1500, %v1589
    %v1600 = vmax.f32 %v1502, %v1591
    %v1601 = vld [vmem:[%s2] sm:$0x3]
    %v1603 = vlaneseq
    %v1604 = vshrl.u32 %v1603, 7
    %v1605 = vsub.s32 0, %v1604
    %v1606 = vrot.slane %v1601, %v1605
    %v1607 = vlaneseq
    %v1608 = vshrl.u32 %v1607, 7
    %v1609 = vsub.s32 1, %v1608
    %v1610 = vrot.slane %v1601, %v1609
    %v1613 = vadd.f32 %v1593, %v1606
    %v1614 = vadd.f32 %v1594, %v1610
    %v1615 = vadd.f32 %v1595, %v1606
    %v1616 = vadd.f32 %v1596, %v1610
    %v1617 = vadd.f32 %v1597, %v1606
    %v1618 = vadd.f32 %v1598, %v1610
    %v1619 = vadd.f32 %v1599, %v1606
    %v1620 = vadd.f32 %v1600, %v1610
    %v1621 = vtanh.pop %v1613
    %v1622 = vtanh.pop %v1614
    %v1623 = vtanh.pop %v1615
    %v1624 = vtanh.pop %v1616
    %v1625 = vtanh.pop %v1617
    %v1626 = vtanh.pop %v1618
    %v1627 = vtanh.pop %v1619
    %v1628 = vtanh.pop %v1620
    %1629 = vst [vmem:[#allocation3] sm:$0xff] 0
    %1630 = vst [vmem:[#allocation3 + $0x8] sm:$0xff] 0
    %1631 = vst [vmem:[#allocation3 + $0x10] sm:$0xff] 0
    %1632 = vst [vmem:[#allocation3 + $0x18] sm:$0xff] 0
    %1633 = vst [vmem:[#allocation3 + $0x20] sm:$0x33] 0
    %v1634 = vpack.c.bf16 %v1623, %v1621
    %v1635 = vpack.c.bf16 %v1624, %v1622
    %v1638 = vunpack.c.l.b16 %v1634
    %v1639 = vunpack.c.l.b16 %v1635
    %v1640 = vunpack.c.h.b16 %v1634
    %v1641 = vunpack.c.h.b16 %v1635
    %v1642 = vpack.c.b16 %v1639, %v1638
    %v1643 = vpack.c.b16 %v1641, %v1640
    %vm1644 = vsmask.f32 256
    %vm1645 = vsmask.f32 4368
    %vm1646 = vmor %vm1644, %vm1645
    %v1648 = vshrl.u32 %v1642, 16
    %v1650 = vrot.slane %v1648, 7
    %v1651 = vshll.u32 %v1642, 16
    %v1653 = vor.u32 %v1650, %v1651
    %v1654 = vrot.slane %v1650, 4
    %v1656 = vshrl.u32 %v1643, 16
    %v1658 = vrot.slane %v1656, 7
    %v1659 = vshll.u32 %v1643, 16
    %v1661 = vor.u32 %v1658, %v1659
    %v1662 = vsel %vm1646, %v1654, %v1661
    %v1663 = vrot.slane %v1658, 4
    %vm1667 = vcmask 1043456
    %vm1668 = vsmask.f32 7938
    %vm1669 = vmand %vm1667, %vm1668
    %vm1670 = vcmask 1047556
    %vm1671 = vsmask.f32 7954
    %vm1672 = vmand %vm1670, %vm1671
    %vm1673 = vmor %vm1672, %vm1669
    %v1674 = vld [vmem:[#allocation3] sm:$0xff]
    %v1675 = vsel %vm1673, %v1653, %v1674
    %1676 = vst [vmem:[#allocation3] sm:$0xff] %v1675
    %1677 = vst [vmem:[#allocation3 + $0x8] sm:$0xff] %v1662
    %vm1678 = vcmask 1040384
    %vm1679 = vmand %vm1678, %vm1644
    %vm1680 = vcmask 1044484
    %vm1681 = vsmask.f32 4352
    %vm1682 = vmand %vm1680, %vm1681
    %vm1683 = vmor %vm1682, %vm1679
    %v1684 = vld [vmem:[#allocation3 + $0x10] sm:$0x11]
    %v1685 = vsel %vm1683, %v1663, %v1684
    %1686 = vst [vmem:[#allocation3 + $0x10] sm:$0x11] %v1685
    %v1687 = vpack.c.bf16 %v1627, %v1625
    %v1688 = vpack.c.bf16 %v1628, %v1626
    %v1691 = vunpack.c.l.b16 %v1687
    %v1692 = vunpack.c.l.b16 %v1688
    %v1693 = vunpack.c.h.b16 %v1687
    %v1694 = vunpack.c.h.b16 %v1688
    %v1695 = vpack.c.b16 %v1692, %v1691
    %v1696 = vpack.c.b16 %v1694, %v1693
    %vm1697 = vsmask.f32 1280
    %vm1698 = vsmask.f32 5392
    %vm1699 = vmor %vm1697, %vm1698
    %v1701 = vshrl.u32 %v1695, 16
    %v1703 = vrot.slane %v1701, 6
    %v1704 = vshll.u32 %v1695, 16
    %v1706 = vrot.slane %v1704, 7
    %v1707 = vor.u32 %v1703, %v1706
    %v1708 = vrot.slane %v1707, 4
    %v1710 = vshrl.u32 %v1696, 16
    %v1712 = vrot.slane %v1710, 6
    %v1713 = vshll.u32 %v1696, 16
    %v1715 = vrot.slane %v1713, 7
    %v1716 = vor.u32 %v1712, %v1715
    %v1717 = vsel %vm1699, %v1708, %v1716
    %v1718 = vrot.slane %v1716, 4
    %vm1722 = vcmask 1043457
    %vm1723 = vsmask.f32 7942
    %vm1724 = vmand %vm1722, %vm1723
    %vm1725 = vcmask 1047557
    %vm1726 = vsmask.f32 7958
    %vm1727 = vmand %vm1725, %vm1726
    %vm1728 = vmor %vm1727, %vm1724
    %v1729 = vld [vmem:[#allocation3 + $0x10] sm:$0xee]
    %v1730 = vsel %vm1728, %v1707, %v1729
    %1731 = vst [vmem:[#allocation3 + $0x10] sm:$0xee] %v1730
    %1732 = vst [vmem:[#allocation3 + $0x18] sm:$0xff] %v1717
    %vm1733 = vcmask 1041408
    %vm1734 = vmand %vm1733, %vm1697
    %vm1735 = vcmask 1045508
    %vm1736 = vsmask.f32 5376
    %vm1737 = vmand %vm1735, %vm1736
    %vm1738 = vmor %vm1737, %vm1734
    %v1739 = vld [vmem:[#allocation3 + $0x20] sm:$0x33]
    %v1740 = vsel %vm1738, %v1718, %v1739
    %1741 = vst [vmem:[#allocation3 + $0x20] sm:$0x33] %v1740
    %v1742 = vld [vmem:[#allocation3] sm:$0xff]
    %v1743 = vld [vmem:[#allocation3 + $0x8] sm:$0xff]
    %v1744 = vld [vmem:[#allocation3 + $0x10] sm:$0xff]
    %v1745 = vld [vmem:[#allocation3 + $0x18] sm:$0xff]
    %v1746 = vld [vmem:[#allocation3 + $0x20] sm:$0x11]
    %v1747 = vld [vmem:[%s4] sm:$0xf]
    %v1748 = vld [vmem:[%s4 + $0x4] sm:$0xf]
    %v1749 = vld [vmem:[%s4 + $0x8] sm:$0xf]
    %v1750 = vld [vmem:[%s4 + $0xc] sm:$0xf]
    %v1751 = vld [vmem:[%s4 + $0x10] sm:$0xf]
    %v1752 = vld [vmem:[%s4 + $0x14] sm:$0xf]
    %v1753 = vld [vmem:[%s4 + $0x18] sm:$0xf]
    %v1754 = vld [vmem:[%s4 + $0x1c] sm:$0xf]
    %v1755 = vld [vmem:[%s4 + $0x20] sm:$0xf]
    %v1756 = vld [vmem:[%s4 + $0x24] sm:$0xf]
    %v1757 = vld [vmem:[%s4 + $0x28] sm:$0xf]
    %v1758 = vld [vmem:[%s4 + $0x2c] sm:$0xf]
    %v1759 = vld [vmem:[%s4 + $0x30] sm:$0xf]
    %v1760 = vld [vmem:[%s4 + $0x34] sm:$0xf]
    %v1761 = vld [vmem:[%s4 + $0x38] sm:$0xf]
    %v1762 = vld [vmem:[%s4 + $0x3c] sm:$0xf]
    %v1763 = vld [vmem:[%s4 + $0x40] sm:$0xf]
    %v1764 = vld [vmem:[%s4 + $0x44] sm:$0xf]
    %v1765 = vld [vmem:[%s4 + $0x48] sm:$0xf]
    %v1766 = vld [vmem:[%s4 + $0x4c] sm:$0xf]
    %v1767 = vld [vmem:[%s4 + $0x50] sm:$0xf]
    %v1768 = vld [vmem:[%s4 + $0x54] sm:$0xf]
    %v1769 = vld [vmem:[%s4 + $0x58] sm:$0xf]
    %v1770 = vld [vmem:[%s4 + $0x5c] sm:$0xf]
    %v1771 = vld [vmem:[%s4 + $0x60] sm:$0xf]
    %v1772 = vld [vmem:[%s4 + $0x64] sm:$0xf]
    %v1773 = vld [vmem:[%s4 + $0x68] sm:$0xf]
    %v1774 = vld [vmem:[%s4 + $0x6c] sm:$0xf]
    %v1775 = vld [vmem:[%s4 + $0x70] sm:$0xf]
    %v1776 = vld [vmem:[%s4 + $0x74] sm:$0xf]
    %v1777 = vld [vmem:[%s4 + $0x78] sm:$0xf]
    %v1778 = vld [vmem:[%s4 + $0x7c] sm:$0xf]
    %v1779 = vld [vmem:[#allocation3 + $0x20] sm:$0x33]
    %s1780 = scalar_lea.vmem %s4, 128
    %v1781 = vld [vmem:[%s1780] sm:$0xf]
    %v1782 = vld [vmem:[%s1780 + $0x4] sm:$0xf]
    %v1783 = vld [vmem:[%s1780 + $0x8] sm:$0xf]
    %v1784 = vld [vmem:[%s1780 + $0xc] sm:$0xf]
    %v1785 = vld [vmem:[%s1780 + $0x10] sm:$0xf]
    %v1786 = vld [vmem:[%s1780 + $0x14] sm:$0xf]
    %v1787 = vld [vmem:[%s1780 + $0x18] sm:$0xf]
    %v1788 = vld [vmem:[%s1780 + $0x1c] sm:$0xf]
    %v1789 = vld [vmem:[%s1780 + $0x20] sm:$0xf]
    %v1790 = vld [vmem:[%s1780 + $0x24] sm:$0xf]
    %v1791 = vld [vmem:[%s1780 + $0x28] sm:$0xf]
    %v1792 = vld [vmem:[%s1780 + $0x2c] sm:$0xf]
    %v1793 = vld [vmem:[%s1780 + $0x30] sm:$0xf]
    %v1794 = vld [vmem:[%s1780 + $0x34] sm:$0xf]
    %v1795 = vld [vmem:[%s1780 + $0x38] sm:$0xf]
    %v1796 = vld [vmem:[%s1780 + $0x3c] sm:$0xf]
    %v1797 = vld [vmem:[%s1780 + $0x40] sm:$0xf]
    %v1798 = vld [vmem:[%s1780 + $0x44] sm:$0xf]
    %v1799 = vld [vmem:[%s1780 + $0x48] sm:$0xf]
    %v1800 = vld [vmem:[%s1780 + $0x4c] sm:$0xf]
    %v1801 = vld [vmem:[%s1780 + $0x50] sm:$0xf]
    %v1802 = vld [vmem:[%s1780 + $0x54] sm:$0xf]
    %v1803 = vld [vmem:[%s1780 + $0x58] sm:$0xf]
    %v1804 = vld [vmem:[%s1780 + $0x5c] sm:$0xf]
    %v1805 = vld [vmem:[%s1780 + $0x60] sm:$0xf]
    %v1806 = vld [vmem:[%s1780 + $0x64] sm:$0xf]
    %v1807 = vld [vmem:[%s1780 + $0x68] sm:$0xf]
    %v1808 = vld [vmem:[%s1780 + $0x6c] sm:$0xf]
    %v1809 = vld [vmem:[%s1780 + $0x70] sm:$0xf]
    %v1810 = vld [vmem:[%s1780 + $0x74] sm:$0xf]
    %v1811 = vld [vmem:[%s1780 + $0x78] sm:$0xf]
    %v1812 = vld [vmem:[%s1780 + $0x7c] sm:$0xf]
    %v1818 = vunpack.c.l.b16 %v1742
    %v1819 = vunpack.c.h.b16 %v1742
    %v1820 = vunpack.c.l.b16 %v1743
    %v1821 = vunpack.c.h.b16 %v1743
    %v1822 = vunpack.c.l.b16 %v1744
    %v1823 = vunpack.c.h.b16 %v1744
    %v1824 = vunpack.c.l.b16 %v1745
    %v1825 = vunpack.c.h.b16 %v1745
    %v1826 = vunpack.c.l.b16 %v1779
    %v1827 = vunpack.c.h.b16 %v1779
    %v1828 = vpack.c.b16 %v1820, %v1818
    %v1829 = vpack.c.b16 %v1821, %v1819
    %v1830 = vpack.c.b16 %v1824, %v1822
    %v1831 = vpack.c.b16 %v1825, %v1823
    %v1832 = vpack.c.b16 %v1826, %v1826
    %v1833 = vpack.c.b16 %v1827, %v1827
    %v1835 = vshrl.u32 %v1828, 16
    %v1837 = vshll.u32 %v1828, 16
    %v1839 = vrot.slane %v1837, 1
    %v1840 = vor.u32 %v1835, %v1839
    %v1842 = vshll.u32 %v1830, 16
    %v1844 = vrot.slane %v1842, 1
    %v1845 = vsel %vm122, %v1840, %v1844
    %v1847 = vshrl.u32 %v1829, 16
    %v1849 = vshll.u32 %v1829, 16
    %v1851 = vrot.slane %v1849, 1
    %v1852 = vor.u32 %v1847, %v1851
    %v1854 = vshll.u32 %v1831, 16
    %v1856 = vrot.slane %v1854, 1
    %v1857 = vsel %vm122, %v1852, %v1856
    %v1858 = vshrl.u32 %v1830, 16
    %v1860 = vor.u32 %v1858, %v1844
    %v1862 = vshll.u32 %v1832, 16
    %v1864 = vrot.slane %v1862, 1
    %v1865 = vsel %vm122, %v1860, %v1864
    %v1866 = vshrl.u32 %v1831, 16
    %v1868 = vor.u32 %v1866, %v1856
    %v1870 = vshll.u32 %v1833, 16
    %v1872 = vrot.slane %v1870, 1
    %v1873 = vsel %vm122, %v1868, %v1872
    %v1874 = vshrl.u32 %v1832, 16
    %v1876 = vor.u32 %v1874, %v1864
    %v1877 = vshrl.u32 %v1833, 16
    %v1879 = vor.u32 %v1877, %v1872
    %v1918 = vunpack.c.l.b16 %v1781
    %v1919 = vunpack.c.l.b16 %v1782
    %v1920 = vunpack.c.l.b16 %v1783
    %v1921 = vunpack.c.l.b16 %v1784
    %v1922 = vunpack.c.l.b16 %v1785
    %v1923 = vunpack.c.l.b16 %v1786
    %v1924 = vunpack.c.l.b16 %v1787
    %v1925 = vunpack.c.l.b16 %v1788
    %v1926 = vunpack.c.l.b16 %v1789
    %v1927 = vunpack.c.l.b16 %v1790
    %v1928 = vunpack.c.l.b16 %v1791
    %v1929 = vunpack.c.l.b16 %v1792
    %v1930 = vunpack.c.l.b16 %v1793
    %v1931 = vunpack.c.l.b16 %v1794
    %v1932 = vunpack.c.l.b16 %v1795
    %v1933 = vunpack.c.l.b16 %v1796
    %v1934 = vunpack.c.l.b16 %v1797
    %v1935 = vunpack.c.l.b16 %v1798
    %v1936 = vunpack.c.l.b16 %v1799
    %v1937 = vunpack.c.l.b16 %v1800
    %v1938 = vunpack.c.l.b16 %v1801
    %v1939 = vunpack.c.l.b16 %v1802
    %v1940 = vunpack.c.l.b16 %v1803
    %v1941 = vunpack.c.l.b16 %v1804
    %v1942 = vunpack.c.l.b16 %v1805
    %v1943 = vunpack.c.l.b16 %v1806
    %v1944 = vunpack.c.l.b16 %v1807
    %v1945 = vunpack.c.l.b16 %v1808
    %v1946 = vunpack.c.l.b16 %v1809
    %v1947 = vunpack.c.l.b16 %v1810
    %v1948 = vunpack.c.l.b16 %v1811
    %v1949 = vunpack.c.l.b16 %v1812
    %v1950 = vpack.c.b16 %v1919, %v1918
    %v1951 = vpack.c.b16 %v1921, %v1920
    %v1952 = vpack.c.b16 %v1923, %v1922
    %v1953 = vpack.c.b16 %v1925, %v1924
    %v1954 = vpack.c.b16 %v1927, %v1926
    %v1955 = vpack.c.b16 %v1929, %v1928
    %v1956 = vpack.c.b16 %v1931, %v1930
    %v1957 = vpack.c.b16 %v1933, %v1932
    %v1958 = vpack.c.b16 %v1935, %v1934
    %v1959 = vpack.c.b16 %v1937, %v1936
    %v1960 = vpack.c.b16 %v1939, %v1938
    %v1961 = vpack.c.b16 %v1941, %v1940
    %v1962 = vpack.c.b16 %v1943, %v1942
    %v1963 = vpack.c.b16 %v1945, %v1944
    %v1964 = vpack.c.b16 %v1947, %v1946
    %v1965 = vpack.c.b16 %v1949, %v1948
    %1982 = vmatprep.subr.bf16.mxu0 0
    %1983 = vmatpush1.bf16.msra.mxu0 %v1957
    %1984 = vmatprep.subr.bf16.mxu0 0
    %1985 = vmatpush1.bf16.msra.mxu0 %v1956
    %1986 = vmatprep.subr.bf16.mxu0 0
    %1987 = vmatpush1.bf16.msra.mxu0 %v1955
    %1988 = vmatprep.subr.bf16.mxu0 0
    %1989 = vmatpush1.bf16.msra.mxu0 %v1954
    %1990 = vmatprep.subr.bf16.mxu0 0
    %1991 = vmatpush1.bf16.msra.mxu0 %v1953
    %1992 = vmatprep.subr.bf16.mxu0 0
    %1993 = vmatpush1.bf16.msra.mxu0 %v1952
    %1994 = vmatprep.subr.bf16.mxu0 0
    %1995 = vmatpush1.bf16.msra.mxu0 %v1951
    %1996 = vmatprep.subr.bf16.mxu0 0
    %1997 = vmatpush1.bf16.msra.mxu0 %v1950
    %1998 = vmatprep.subr.bf16.mxu0 0
    %1999 = vmatpush2.bf16.msra.mxu0 %v1965
    %2000 = vmatprep.subr.bf16.mxu0 0
    %2001 = vmatpush2.bf16.msra.mxu0 %v1964
    %2002 = vmatprep.subr.bf16.mxu0 0
    %2003 = vmatpush2.bf16.msra.mxu0 %v1963
    %2004 = vmatprep.subr.bf16.mxu0 0
    %2005 = vmatpush2.bf16.msra.mxu0 %v1962
    %2006 = vmatprep.subr.bf16.mxu0 0
    %2007 = vmatpush2.bf16.msra.mxu0 %v1961
    %2008 = vmatprep.subr.bf16.mxu0 0
    %2009 = vmatpush2.bf16.msra.mxu0 %v1960
    %2010 = vmatprep.subr.bf16.mxu0 0
    %2011 = vmatpush2.bf16.msra.mxu0 %v1959
    %2012 = vmatprep.subr.bf16.mxu0 0
    %2013 = vmatpush2.bf16.msra.mxu0 %v1958
    %2014 = vmatprep.mubr.bf16.mxu0 %v1857
    %2015 = vmatmul.mubr.bf16.gmra.mxu0 %v1845
    %v2016 = vpop.f32.mrf.mxu0
    %v2017 = vadd.f32 0.0, %v2016
    %v2018 = vpop.f32.mrf.mxu0
    %v2019 = vpop.f32.mrf.mxu0
    %v2020 = vadd.f32 0.0, %v2019
    %v2021 = vpop.f32.mrf.mxu0
    %2022 = vmatprep.mubr.bf16.mxu0 %v1873
    %2023 = vmatmul.mubr.bf16.gmra.mxu0 %v1865
    %v2024 = vpop.f32.mrf.mxu0
    %v2025 = vadd.f32 0.0, %v2024
    %v2026 = vpop.f32.mrf.mxu0
    %v2027 = vpop.f32.mrf.mxu0
    %v2028 = vadd.f32 0.0, %v2027
    %v2029 = vpop.f32.mrf.mxu0
    %2030 = vmatprep.mubr.bf16.mxu0 %v1879
    %2031 = vmatmul.mubr.bf16.gmra.mxu0 %v1876
    %v2032 = vpop.f32.mrf.mxu0
    %v2033 = vadd.f32 0.0, %v2032
    %v2034 = vpop.f32.mrf.mxu0
    %v2035 = vpop.f32.mrf.mxu0
    %v2036 = vpop.f32.mrf.mxu0
    %2037 = vdwg.mxu0
    %v2039 = vunpack.c.l.b16 %v1746
    %v2040 = vunpack.c.h.b16 %v1746
    %v2041 = vpack.c.b16 %v2039, %v2039
    %v2042 = vpack.c.b16 %v2040, %v2040
    %v2081 = vunpack.c.l.b16 %v1747
    %v2082 = vunpack.c.l.b16 %v1748
    %v2083 = vunpack.c.l.b16 %v1749
    %v2084 = vunpack.c.l.b16 %v1750
    %v2085 = vunpack.c.l.b16 %v1751
    %v2086 = vunpack.c.l.b16 %v1752
    %v2087 = vunpack.c.l.b16 %v1753
    %v2088 = vunpack.c.l.b16 %v1754
    %v2089 = vunpack.c.l.b16 %v1755
    %v2090 = vunpack.c.l.b16 %v1756
    %v2091 = vunpack.c.l.b16 %v1757
    %v2092 = vunpack.c.l.b16 %v1758
    %v2093 = vunpack.c.l.b16 %v1759
    %v2094 = vunpack.c.l.b16 %v1760
    %v2095 = vunpack.c.l.b16 %v1761
    %v2096 = vunpack.c.l.b16 %v1762
    %v2097 = vunpack.c.l.b16 %v1763
    %v2098 = vunpack.c.l.b16 %v1764
    %v2099 = vunpack.c.l.b16 %v1765
    %v2100 = vunpack.c.l.b16 %v1766
    %v2101 = vunpack.c.l.b16 %v1767
    %v2102 = vunpack.c.l.b16 %v1768
    %v2103 = vunpack.c.l.b16 %v1769
    %v2104 = vunpack.c.l.b16 %v1770
    %v2105 = vunpack.c.l.b16 %v1771
    %v2106 = vunpack.c.l.b16 %v1772
    %v2107 = vunpack.c.l.b16 %v1773
    %v2108 = vunpack.c.l.b16 %v1774
    %v2109 = vunpack.c.l.b16 %v1775
    %v2110 = vunpack.c.l.b16 %v1776
    %v2111 = vunpack.c.l.b16 %v1777
    %v2112 = vunpack.c.l.b16 %v1778
    %v2113 = vpack.c.b16 %v2082, %v2081
    %v2114 = vpack.c.b16 %v2084, %v2083
    %v2115 = vpack.c.b16 %v2086, %v2085
    %v2116 = vpack.c.b16 %v2088, %v2087
    %v2117 = vpack.c.b16 %v2090, %v2089
    %v2118 = vpack.c.b16 %v2092, %v2091
    %v2119 = vpack.c.b16 %v2094, %v2093
    %v2120 = vpack.c.b16 %v2096, %v2095
    %v2121 = vpack.c.b16 %v2098, %v2097
    %v2122 = vpack.c.b16 %v2100, %v2099
    %v2123 = vpack.c.b16 %v2102, %v2101
    %v2124 = vpack.c.b16 %v2104, %v2103
    %v2125 = vpack.c.b16 %v2106, %v2105
    %v2126 = vpack.c.b16 %v2108, %v2107
    %v2127 = vpack.c.b16 %v2110, %v2109
    %v2128 = vpack.c.b16 %v2112, %v2111
    %2145 = vmatprep.subr.bf16.mxu0 0
    %2146 = vmatpush1.bf16.msra.mxu0 %v2120
    %2147 = vmatprep.subr.bf16.mxu0 0
    %2148 = vmatpush1.bf16.msra.mxu0 %v2119
    %2149 = vmatprep.subr.bf16.mxu0 0
    %2150 = vmatpush1.bf16.msra.mxu0 %v2118
    %2151 = vmatprep.subr.bf16.mxu0 0
    %2152 = vmatpush1.bf16.msra.mxu0 %v2117
    %2153 = vmatprep.subr.bf16.mxu0 0
    %2154 = vmatpush1.bf16.msra.mxu0 %v2116
    %2155 = vmatprep.subr.bf16.mxu0 0
    %2156 = vmatpush1.bf16.msra.mxu0 %v2115
    %2157 = vmatprep.subr.bf16.mxu0 0
    %2158 = vmatpush1.bf16.msra.mxu0 %v2114
    %2159 = vmatprep.subr.bf16.mxu0 0
    %2160 = vmatpush1.bf16.msra.mxu0 %v2113
    %2161 = vmatprep.subr.bf16.mxu0 0
    %2162 = vmatpush2.bf16.msra.mxu0 %v2128
    %2163 = vmatprep.subr.bf16.mxu0 0
    %2164 = vmatpush2.bf16.msra.mxu0 %v2127
    %2165 = vmatprep.subr.bf16.mxu0 0
    %2166 = vmatpush2.bf16.msra.mxu0 %v2126
    %2167 = vmatprep.subr.bf16.mxu0 0
    %2168 = vmatpush2.bf16.msra.mxu0 %v2125
    %2169 = vmatprep.subr.bf16.mxu0 0
    %2170 = vmatpush2.bf16.msra.mxu0 %v2124
    %2171 = vmatprep.subr.bf16.mxu0 0
    %2172 = vmatpush2.bf16.msra.mxu0 %v2123
    %2173 = vmatprep.subr.bf16.mxu0 0
    %2174 = vmatpush2.bf16.msra.mxu0 %v2122
    %2175 = vmatprep.subr.bf16.mxu0 0
    %2176 = vmatpush2.bf16.msra.mxu0 %v2121
    %2177 = vmatprep.mubr.bf16.mxu0 %v1829
    %2178 = vmatmul.mubr.bf16.gmra.mxu0 %v1828
    %v2179 = vpop.f32.mrf.mxu0
    %v2180 = vadd.f32 %v2017, %v2179
    %v2181 = vpop.f32.mrf.mxu0
    %v2182 = vpop.f32.mrf.mxu0
    %v2183 = vadd.f32 %v2020, %v2182
    %v2184 = vpop.f32.mrf.mxu0
    %2185 = vmatprep.mubr.bf16.mxu0 %v1831
    %2186 = vmatmul.mubr.bf16.gmra.mxu0 %v1830
    %v2187 = vpop.f32.mrf.mxu0
    %v2188 = vadd.f32 %v2025, %v2187
    %v2189 = vpop.f32.mrf.mxu0
    %v2190 = vpop.f32.mrf.mxu0
    %v2191 = vadd.f32 %v2028, %v2190
    %v2192 = vpop.f32.mrf.mxu0
    %2193 = vmatprep.mubr.bf16.mxu0 %v2042
    %2194 = vmatmul.mubr.bf16.gmra.mxu0 %v2041
    %v2195 = vpop.f32.mrf.mxu0
    %v2196 = vadd.f32 %v2033, %v2195
    %v2197 = vpop.f32.mrf.mxu0
    %v2198 = vpop.f32.mrf.mxu0
    %v2199 = vpop.f32.mrf.mxu0
    %2200 = vdwg.mxu0
    %v2201 = vld [vmem:[#allocation3] sm:$0xee]
    %s2202 = scalar_lea.vmem %s4, 256
    %v2203 = vld [vmem:[%s2202] sm:$0xf]
    %v2204 = vld [vmem:[%s2202 + $0x4] sm:$0xf]
    %v2205 = vld [vmem:[%s2202 + $0x8] sm:$0xf]
    %v2206 = vld [vmem:[%s2202 + $0xc] sm:$0xf]
    %v2207 = vld [vmem:[%s2202 + $0x10] sm:$0xf]
    %v2208 = vld [vmem:[%s2202 + $0x14] sm:$0xf]
    %v2209 = vld [vmem:[%s2202 + $0x18] sm:$0xf]
    %v2210 = vld [vmem:[%s2202 + $0x1c] sm:$0xf]
    %v2211 = vld [vmem:[%s2202 + $0x20] sm:$0xf]
    %v2212 = vld [vmem:[%s2202 + $0x24] sm:$0xf]
    %v2213 = vld [vmem:[%s2202 + $0x28] sm:$0xf]
    %v2214 = vld [vmem:[%s2202 + $0x2c] sm:$0xf]
    %v2215 = vld [vmem:[%s2202 + $0x30] sm:$0xf]
    %v2216 = vld [vmem:[%s2202 + $0x34] sm:$0xf]
    %v2217 = vld [vmem:[%s2202 + $0x38] sm:$0xf]
    %v2218 = vld [vmem:[%s2202 + $0x3c] sm:$0xf]
    %v2219 = vld [vmem:[%s2202 + $0x40] sm:$0xf]
    %v2220 = vld [vmem:[%s2202 + $0x44] sm:$0xf]
    %v2221 = vld [vmem:[%s2202 + $0x48] sm:$0xf]
    %v2222 = vld [vmem:[%s2202 + $0x4c] sm:$0xf]
    %v2223 = vld [vmem:[%s2202 + $0x50] sm:$0xf]
    %v2224 = vld [vmem:[%s2202 + $0x54] sm:$0xf]
    %v2225 = vld [vmem:[%s2202 + $0x58] sm:$0xf]
    %v2226 = vld [vmem:[%s2202 + $0x5c] sm:$0xf]
    %v2227 = vld [vmem:[%s2202 + $0x60] sm:$0xf]
    %v2228 = vld [vmem:[%s2202 + $0x64] sm:$0xf]
    %v2229 = vld [vmem:[%s2202 + $0x68] sm:$0xf]
    %v2230 = vld [vmem:[%s2202 + $0x6c] sm:$0xf]
    %v2231 = vld [vmem:[%s2202 + $0x70] sm:$0xf]
    %v2232 = vld [vmem:[%s2202 + $0x74] sm:$0xf]
    %v2233 = vld [vmem:[%s2202 + $0x78] sm:$0xf]
    %v2234 = vld [vmem:[%s2202 + $0x7c] sm:$0xf]
    %v2236 = vunpack.c.l.b16 %v2201
    %v2237 = vunpack.c.h.b16 %v2201
    %v2238 = vpack.c.b16 %v1820, %v2236
    %v2239 = vpack.c.b16 %v1821, %v2237
    %v2240 = vrot.slane %v2238, 1
    %v2241 = vrot.slane %v1830, 1
    %v2242 = vsel %vm785, %v2240, %v2241
    %v2243 = vrot.slane %v2239, 1
    %v2244 = vrot.slane %v1831, 1
    %v2245 = vsel %vm785, %v2243, %v2244
    %v2246 = vrot.slane %v1832, 1
    %v2247 = vsel %vm785, %v2241, %v2246
    %v2248 = vrot.slane %v1833, 1
    %v2249 = vsel %vm785, %v2244, %v2248
    %v2288 = vunpack.c.l.b16 %v2203
    %v2289 = vunpack.c.l.b16 %v2204
    %v2290 = vunpack.c.l.b16 %v2205
    %v2291 = vunpack.c.l.b16 %v2206
    %v2292 = vunpack.c.l.b16 %v2207
    %v2293 = vunpack.c.l.b16 %v2208
    %v2294 = vunpack.c.l.b16 %v2209
    %v2295 = vunpack.c.l.b16 %v2210
    %v2296 = vunpack.c.l.b16 %v2211
    %v2297 = vunpack.c.l.b16 %v2212
    %v2298 = vunpack.c.l.b16 %v2213
    %v2299 = vunpack.c.l.b16 %v2214
    %v2300 = vunpack.c.l.b16 %v2215
    %v2301 = vunpack.c.l.b16 %v2216
    %v2302 = vunpack.c.l.b16 %v2217
    %v2303 = vunpack.c.l.b16 %v2218
    %v2304 = vunpack.c.l.b16 %v2219
    %v2305 = vunpack.c.l.b16 %v2220
    %v2306 = vunpack.c.l.b16 %v2221
    %v2307 = vunpack.c.l.b16 %v2222
    %v2308 = vunpack.c.l.b16 %v2223
    %v2309 = vunpack.c.l.b16 %v2224
    %v2310 = vunpack.c.l.b16 %v2225
    %v2311 = vunpack.c.l.b16 %v2226
    %v2312 = vunpack.c.l.b16 %v2227
    %v2313 = vunpack.c.l.b16 %v2228
    %v2314 = vunpack.c.l.b16 %v2229
    %v2315 = vunpack.c.l.b16 %v2230
    %v2316 = vunpack.c.l.b16 %v2231
    %v2317 = vunpack.c.l.b16 %v2232
    %v2318 = vunpack.c.l.b16 %v2233
    %v2319 = vunpack.c.l.b16 %v2234
    %v2320 = vpack.c.b16 %v2289, %v2288
    %v2321 = vpack.c.b16 %v2291, %v2290
    %v2322 = vpack.c.b16 %v2293, %v2292
    %v2323 = vpack.c.b16 %v2295, %v2294
    %v2324 = vpack.c.b16 %v2297, %v2296
    %v2325 = vpack.c.b16 %v2299, %v2298
    %v2326 = vpack.c.b16 %v2301, %v2300
    %v2327 = vpack.c.b16 %v2303, %v2302
    %v2328 = vpack.c.b16 %v2305, %v2304
    %v2329 = vpack.c.b16 %v2307, %v2306
    %v2330 = vpack.c.b16 %v2309, %v2308
    %v2331 = vpack.c.b16 %v2311, %v2310
    %v2332 = vpack.c.b16 %v2313, %v2312
    %v2333 = vpack.c.b16 %v2315, %v2314
    %v2334 = vpack.c.b16 %v2317, %v2316
    %v2335 = vpack.c.b16 %v2319, %v2318
    %2352 = vmatprep.subr.bf16.mxu0 0
    %2353 = vmatpush1.bf16.msra.mxu0 %v2327
    %2354 = vmatprep.subr.bf16.mxu0 0
    %2355 = vmatpush1.bf16.msra.mxu0 %v2326
    %2356 = vmatprep.subr.bf16.mxu0 0
    %2357 = vmatpush1.bf16.msra.mxu0 %v2325
    %2358 = vmatprep.subr.bf16.mxu0 0
    %2359 = vmatpush1.bf16.msra.mxu0 %v2324
    %2360 = vmatprep.subr.bf16.mxu0 0
    %2361 = vmatpush1.bf16.msra.mxu0 %v2323
    %2362 = vmatprep.subr.bf16.mxu0 0
    %2363 = vmatpush1.bf16.msra.mxu0 %v2322
    %2364 = vmatprep.subr.bf16.mxu0 0
    %2365 = vmatpush1.bf16.msra.mxu0 %v2321
    %2366 = vmatprep.subr.bf16.mxu0 0
    %2367 = vmatpush1.bf16.msra.mxu0 %v2320
    %2368 = vmatprep.subr.bf16.mxu0 0
    %2369 = vmatpush2.bf16.msra.mxu0 %v2335
    %2370 = vmatprep.subr.bf16.mxu0 0
    %2371 = vmatpush2.bf16.msra.mxu0 %v2334
    %2372 = vmatprep.subr.bf16.mxu0 0
    %2373 = vmatpush2.bf16.msra.mxu0 %v2333
    %2374 = vmatprep.subr.bf16.mxu0 0
    %2375 = vmatpush2.bf16.msra.mxu0 %v2332
    %2376 = vmatprep.subr.bf16.mxu0 0
    %2377 = vmatpush2.bf16.msra.mxu0 %v2331
    %2378 = vmatprep.subr.bf16.mxu0 0
    %2379 = vmatpush2.bf16.msra.mxu0 %v2330
    %2380 = vmatprep.subr.bf16.mxu0 0
    %2381 = vmatpush2.bf16.msra.mxu0 %v2329
    %2382 = vmatprep.subr.bf16.mxu0 0
    %2383 = vmatpush2.bf16.msra.mxu0 %v2328
    %2384 = vmatprep.mubr.bf16.mxu0 %v2245
    %2385 = vmatmul.mubr.bf16.gmra.mxu0 %v2242
    %v2386 = vpop.f32.mrf.mxu0
    %v2387 = vadd.f32 0.0, %v2386
    %v2388 = vpop.f32.mrf.mxu0
    %v2389 = vpop.f32.mrf.mxu0
    %v2390 = vadd.f32 0.0, %v2389
    %v2391 = vpop.f32.mrf.mxu0
    %2392 = vmatprep.mubr.bf16.mxu0 %v2249
    %2393 = vmatmul.mubr.bf16.gmra.mxu0 %v2247
    %v2394 = vpop.f32.mrf.mxu0
    %v2395 = vadd.f32 0.0, %v2394
    %v2396 = vpop.f32.mrf.mxu0
    %v2397 = vpop.f32.mrf.mxu0
    %v2398 = vadd.f32 0.0, %v2397
    %v2399 = vpop.f32.mrf.mxu0
    %2400 = vmatprep.mubr.bf16.mxu0 %v2248
    %2401 = vmatmul.mubr.bf16.gmra.mxu0 %v2246
    %v2402 = vpop.f32.mrf.mxu0
    %v2403 = vadd.f32 0.0, %v2402
    %v2404 = vpop.f32.mrf.mxu0
    %v2405 = vpop.f32.mrf.mxu0
    %v2406 = vpop.f32.mrf.mxu0
    %2407 = vdwg.mxu0
    %v2408 = vadd.f32 %v2180, %v2387
    %v2409 = vadd.f32 %v2183, %v2390
    %v2410 = vadd.f32 %v2188, %v2395
    %v2411 = vadd.f32 %v2191, %v2398
    %v2412 = vadd.f32 %v2196, %v2403
    %v2418 = vrot.slane %v2408, 1
    %v2419 = vrot.slane %v2409, 1
    %v2420 = vsel %vm1244, %v2418, %v2419
    %v2421 = vrot.slane %v2410, 1
    %v2422 = vsel %vm1244, %v2419, %v2421
    %v2423 = vrot.slane %v2411, 1
    %v2424 = vsel %vm1244, %v2421, %v2423
    %v2425 = vrot.slane %v2412, 1
    %v2426 = vsel %vm1244, %v2423, %v2425
    %v2432 = vmax.f32 %v2408, %v2420
    %v2433 = vmax.f32 %v2409, %v2422
    %v2434 = vmax.f32 %v2410, %v2424
    %v2435 = vmax.f32 %v2411, %v2426
    %v2436 = vmax.f32 %v2412, %v2425
    %v2437 = vld [vmem:[%s6] sm:$0xff]
    %v2438 = vld [vmem:[%s6 + $0x8] sm:$0xff]
    %vm2439 = vcmask 269312
    %v2441 = vsel %vm2439, %v2437, 0
    %v2444 = vsel %vm2439, %v2438, 0
    %v2447 = vsel %vm1402, %v2436, 0
    %2449 = vmatprep.subr.mxu0 0.0
    %2450 = vmatpush1.msra.mxu0 0.0
    %2451 = vmatprep.subr.mxu0 0.0
    %2452 = vmatpush1.msra.mxu0 0.0
    %2453 = vmatprep.subr.mxu0 0.0
    %2454 = vmatpush1.msra.mxu0 0.0
    %2455 = vmatprep.subr.mxu0 0.0
    %2456 = vmatpush1.msra.mxu0 0.0
    %2457 = vmatprep.subr.mxu0 0.0
    %2458 = vmatpush1.msra.mxu0 0.0
    %2459 = vmatprep.subr.mxu0 0.0
    %2460 = vmatpush1.msra.mxu0 0.0
    %2461 = vmatprep.subr.mxu0 0.0
    %2462 = vmatpush1.msra.mxu0 0.0
    %2463 = vmatprep.subr.mxu0 0.0
    %2464 = vmatpush1.msra.mxu0 0.0
    %2465 = vmatprep.subr.mxu0 0.0
    %2466 = vmatpush1.msra.mxu0 0.0
    %2467 = vmatprep.subr.mxu0 0.0
    %2468 = vmatpush1.msra.mxu0 0.0
    %2469 = vmatprep.subr.mxu0 0.0
    %2470 = vmatpush1.msra.mxu0 0.0
    %2471 = vmatprep.subr.mxu0 0.0
    %2472 = vmatpush1.msra.mxu0 %v2447
    %2473 = vmatprep.subr.mxu0 0.0
    %2474 = vmatpush1.msra.mxu0 %v2435
    %2475 = vmatprep.subr.mxu0 0.0
    %2476 = vmatpush1.msra.mxu0 %v2434
    %2477 = vmatprep.subr.mxu0 0.0
    %2478 = vmatpush1.msra.mxu0 %v2433
    %2479 = vmatprep.subr.mxu0 0.0
    %2480 = vmatpush1.msra.mxu0 %v2432
    %2481 = vmatprep.subr.mxu0 0.0
    %2482 = vmatpush2.msra.mxu0 0.0
    %2483 = vmatprep.subr.mxu0 0.0
    %2484 = vmatpush2.msra.mxu0 0.0
    %2485 = vmatprep.subr.mxu0 0.0
    %2486 = vmatpush2.msra.mxu0 0.0
    %2487 = vmatprep.subr.mxu0 0.0
    %2488 = vmatpush2.msra.mxu0 0.0
    %2489 = vmatprep.subr.mxu0 0.0
    %2490 = vmatpush2.msra.mxu0 0.0
    %2491 = vmatprep.subr.mxu0 0.0
    %2492 = vmatpush2.msra.mxu0 0.0
    %2493 = vmatprep.subr.mxu0 0.0
    %2494 = vmatpush2.msra.mxu0 0.0
    %2495 = vmatprep.subr.mxu0 0.0
    %2496 = vmatpush2.msra.mxu0 0.0
    %2497 = vmatprep.subr.mxu0 0.0
    %2498 = vmatpush2.msra.mxu0 0.0
    %2499 = vmatprep.subr.mxu0 0.0
    %2500 = vmatpush2.msra.mxu0 0.0
    %2501 = vmatprep.subr.mxu0 0.0
    %2502 = vmatpush2.msra.mxu0 0.0
    %2503 = vmatprep.subr.mxu0 0.0
    %2504 = vmatpush2.msra.mxu0 0.0
    %2505 = vmatprep.subr.mxu0 0.0
    %2506 = vmatpush2.msra.mxu0 0.0
    %2507 = vmatprep.subr.mxu0 0.0
    %2508 = vmatpush2.msra.mxu0 0.0
    %2509 = vmatprep.subr.mxu0 0.0
    %2510 = vmatpush2.msra.mxu0 0.0
    %2511 = vmatprep.subr.mxu0 0.0
    %2512 = vmatpush2.msra.mxu0 0.0
    %2513 = vmatprep.mubr.f32.mxu0 0.0
    %2514 = vmatmul.mubr.f32.gmra.mxu0 %v2441
    %v2515 = vpop.f32.mrf.mxu0
    %v2516 = vadd.f32 0.0, %v2515
    %v2517 = vpop.f32.mrf.mxu0
    %2518 = vmatprep.mubr.f32.mxu0 0.0
    %2519 = vmatmul.mubr.f32.gmra.mxu0 %v2444
    %v2520 = vpop.f32.mrf.mxu0
    %v2521 = vadd.f32 0.0, %v2520
    %v2522 = vpop.f32.mrf.mxu0
    %2523 = vdwg.mxu0
    %2526 = vrot.lane.b32.xlu0 %v2516, 64
    %v2527 = vpop.permute.xlu0 %2526
    %2528 = vrot.lane.b32.xlu0 %v2521, 64
    %v2529 = vpop.permute.xlu0 %2528
    %v2532 = vmax.f32 %v2516, %v2527
    %v2533 = vmax.f32 %v2521, %v2529
    %v2534 = vld [vmem:[%s5] sm:$0x1]
    %v2536 = vlaneseq
    %v2537 = vshrl.u32 %v2536, 7
    %v2538 = vsub.s32 0, %v2537
    %v2539 = vrot.slane %v2534, %v2538
    %v2541 = vadd.f32 %v2532, %v2539
    %v2542 = vadd.f32 %v2533, %v2539
    %v2543 = vtanh.pop %v2541
    %v2544 = vtanh.pop %v2542
    %v2545 = vld [vmem:[%s7] sm:$0xff]
    %v2546 = vld [vmem:[%s7 + $0x8] sm:$0xff]
    %v2547 = vld [vmem:[%s7 + $0x10] sm:$0xff]
    %v2548 = vld [vmem:[%s7 + $0x18] sm:$0xff]
    %v2549 = vld [vmem:[%s7 + $0x20] sm:$0xff]
    %v2550 = vld [vmem:[%s7 + $0x28] sm:$0xff]
    %v2551 = vld [vmem:[%s7 + $0x30] sm:$0xff]
    %v2552 = vld [vmem:[%s7 + $0x38] sm:$0xff]
    %s2553 = scalar_lea.vmem %s7, 64
    %v2554 = vld [vmem:[%s2553] sm:$0xff]
    %v2555 = vld [vmem:[%s2553 + $0x8] sm:$0xff]
    %v2556 = vld [vmem:[%s2553 + $0x10] sm:$0xff]
    %v2557 = vld [vmem:[%s2553 + $0x18] sm:$0xff]
    %v2558 = vld [vmem:[%s2553 + $0x20] sm:$0xff]
    %v2559 = vld [vmem:[%s2553 + $0x28] sm:$0xff]
    %v2560 = vld [vmem:[%s2553 + $0x30] sm:$0xff]
    %v2561 = vld [vmem:[%s2553 + $0x38] sm:$0xff]
    %v2563 = vrot.slane %v2543, 2
    %vm2564 = vcmask 523264
    %v2565 = vsel %vm2564, %v2563, 0
    %2567 = vmatprep.subr.mxu0 0.0
    %2568 = vmatpush1.msra.mxu0 0.0
    %2569 = vmatprep.subr.mxu0 0.0
    %2570 = vmatpush1.msra.mxu0 0.0
    %2571 = vmatprep.subr.mxu0 0.0
    %2572 = vmatpush1.msra.mxu0 0.0
    %2573 = vmatprep.subr.mxu0 0.0
    %2574 = vmatpush1.msra.mxu0 0.0
    %2575 = vmatprep.subr.mxu0 0.0
    %2576 = vmatpush1.msra.mxu0 0.0
    %2577 = vmatprep.subr.mxu0 0.0
    %2578 = vmatpush1.msra.mxu0 0.0
    %2579 = vmatprep.subr.mxu0 0.0
    %2580 = vmatpush1.msra.mxu0 0.0
    %2581 = vmatprep.subr.mxu0 0.0
    %2582 = vmatpush1.msra.mxu0 0.0
    %2583 = vmatprep.subr.mxu0 0.0
    %2584 = vmatpush1.msra.mxu0 %v2561
    %2585 = vmatprep.subr.mxu0 0.0
    %2586 = vmatpush1.msra.mxu0 %v2560
    %2587 = vmatprep.subr.mxu0 0.0
    %2588 = vmatpush1.msra.mxu0 %v2559
    %2589 = vmatprep.subr.mxu0 0.0
    %2590 = vmatpush1.msra.mxu0 %v2558
    %2591 = vmatprep.subr.mxu0 0.0
    %2592 = vmatpush1.msra.mxu0 %v2557
    %2593 = vmatprep.subr.mxu0 0.0
    %2594 = vmatpush1.msra.mxu0 %v2556
    %2595 = vmatprep.subr.mxu0 0.0
    %2596 = vmatpush1.msra.mxu0 %v2555
    %2597 = vmatprep.subr.mxu0 0.0
    %2598 = vmatpush1.msra.mxu0 %v2554
    %2599 = vmatprep.subr.mxu0 0.0
    %2600 = vmatpush2.msra.mxu0 0.0
    %2601 = vmatprep.subr.mxu0 0.0
    %2602 = vmatpush2.msra.mxu0 0.0
    %2603 = vmatprep.subr.mxu0 0.0
    %2604 = vmatpush2.msra.mxu0 0.0
    %2605 = vmatprep.subr.mxu0 0.0
    %2606 = vmatpush2.msra.mxu0 0.0
    %2607 = vmatprep.subr.mxu0 0.0
    %2608 = vmatpush2.msra.mxu0 0.0
    %2609 = vmatprep.subr.mxu0 0.0
    %2610 = vmatpush2.msra.mxu0 0.0
    %2611 = vmatprep.subr.mxu0 0.0
    %2612 = vmatpush2.msra.mxu0 0.0
    %2613 = vmatprep.subr.mxu0 0.0
    %2614 = vmatpush2.msra.mxu0 0.0
    %2615 = vmatprep.subr.mxu0 0.0
    %2616 = vmatpush2.msra.mxu0 0.0
    %2617 = vmatprep.subr.mxu0 0.0
    %2618 = vmatpush2.msra.mxu0 0.0
    %2619 = vmatprep.subr.mxu0 0.0
    %2620 = vmatpush2.msra.mxu0 0.0
    %2621 = vmatprep.subr.mxu0 0.0
    %2622 = vmatpush2.msra.mxu0 0.0
    %2623 = vmatprep.subr.mxu0 0.0
    %2624 = vmatpush2.msra.mxu0 0.0
    %2625 = vmatprep.subr.mxu0 0.0
    %2626 = vmatpush2.msra.mxu0 0.0
    %2627 = vmatprep.subr.mxu0 0.0
    %2628 = vmatpush2.msra.mxu0 0.0
    %2629 = vmatprep.subr.mxu0 0.0
    %2630 = vmatpush2.msra.mxu0 0.0
    %2631 = vmatprep.mubr.f32.mxu0 0.0
    %2632 = vmatmul.mubr.f32.gmra.mxu0 %v2565
    %v2633 = vpop.f32.mrf.mxu0
    %v2634 = vadd.f32 0.0, %v2633
    %v2635 = vpop.f32.mrf.mxu0
    %2636 = vdwg.mxu0
    %v2637 = vsel %vm2564, %v2543, 0
    %2639 = vmatprep.subr.mxu0 0.0
    %2640 = vmatpush1.msra.mxu0 0.0
    %2641 = vmatprep.subr.mxu0 0.0
    %2642 = vmatpush1.msra.mxu0 0.0
    %2643 = vmatprep.subr.mxu0 0.0
    %2644 = vmatpush1.msra.mxu0 0.0
    %2645 = vmatprep.subr.mxu0 0.0
    %2646 = vmatpush1.msra.mxu0 0.0
    %2647 = vmatprep.subr.mxu0 0.0
    %2648 = vmatpush1.msra.mxu0 0.0
    %2649 = vmatprep.subr.mxu0 0.0
    %2650 = vmatpush1.msra.mxu0 0.0
    %2651 = vmatprep.subr.mxu0 0.0
    %2652 = vmatpush1.msra.mxu0 0.0
    %2653 = vmatprep.subr.mxu0 0.0
    %2654 = vmatpush1.msra.mxu0 0.0
    %2655 = vmatprep.subr.mxu0 0.0
    %2656 = vmatpush1.msra.mxu0 %v2552
    %2657 = vmatprep.subr.mxu0 0.0
    %2658 = vmatpush1.msra.mxu0 %v2551
    %2659 = vmatprep.subr.mxu0 0.0
    %2660 = vmatpush1.msra.mxu0 %v2550
    %2661 = vmatprep.subr.mxu0 0.0
    %2662 = vmatpush1.msra.mxu0 %v2549
    %2663 = vmatprep.subr.mxu0 0.0
    %2664 = vmatpush1.msra.mxu0 %v2548
    %2665 = vmatprep.subr.mxu0 0.0
    %2666 = vmatpush1.msra.mxu0 %v2547
    %2667 = vmatprep.subr.mxu0 0.0
    %2668 = vmatpush1.msra.mxu0 %v2546
    %2669 = vmatprep.subr.mxu0 0.0
    %2670 = vmatpush1.msra.mxu0 %v2545
    %2671 = vmatprep.subr.mxu0 0.0
    %2672 = vmatpush2.msra.mxu0 0.0
    %2673 = vmatprep.subr.mxu0 0.0
    %2674 = vmatpush2.msra.mxu0 0.0
    %2675 = vmatprep.subr.mxu0 0.0
    %2676 = vmatpush2.msra.mxu0 0.0
    %2677 = vmatprep.subr.mxu0 0.0
    %2678 = vmatpush2.msra.mxu0 0.0
    %2679 = vmatprep.subr.mxu0 0.0
    %2680 = vmatpush2.msra.mxu0 0.0
    %2681 = vmatprep.subr.mxu0 0.0
    %2682 = vmatpush2.msra.mxu0 0.0
    %2683 = vmatprep.subr.mxu0 0.0
    %2684 = vmatpush2.msra.mxu0 0.0
    %2685 = vmatprep.subr.mxu0 0.0
    %2686 = vmatpush2.msra.mxu0 0.0
    %2687 = vmatprep.subr.mxu0 0.0
    %2688 = vmatpush2.msra.mxu0 0.0
    %2689 = vmatprep.subr.mxu0 0.0
    %2690 = vmatpush2.msra.mxu0 0.0
    %2691 = vmatprep.subr.mxu0 0.0
    %2692 = vmatpush2.msra.mxu0 0.0
    %2693 = vmatprep.subr.mxu0 0.0
    %2694 = vmatpush2.msra.mxu0 0.0
    %2695 = vmatprep.subr.mxu0 0.0
    %2696 = vmatpush2.msra.mxu0 0.0
    %2697 = vmatprep.subr.mxu0 0.0
    %2698 = vmatpush2.msra.mxu0 0.0
    %2699 = vmatprep.subr.mxu0 0.0
    %2700 = vmatpush2.msra.mxu0 0.0
    %2701 = vmatprep.subr.mxu0 0.0
    %2702 = vmatpush2.msra.mxu0 0.0
    %2703 = vmatprep.mubr.f32.mxu0 0.0
    %2704 = vmatmul.mubr.f32.gmra.mxu0 %v2637
    %v2705 = vpop.f32.mrf.mxu0
    %v2706 = vadd.f32 %v2634, %v2705
    %v2707 = vpop.f32.mrf.mxu0
    %2708 = vdwg.mxu0
    %s2709 = scalar_lea.vmem %s7, 128
    %v2710 = vld [vmem:[%s2709] sm:$0xff]
    %v2711 = vld [vmem:[%s2709 + $0x8] sm:$0xff]
    %v2712 = vld [vmem:[%s2709 + $0x10] sm:$0xff]
    %v2713 = vld [vmem:[%s2709 + $0x18] sm:$0xff]
    %v2714 = vld [vmem:[%s2709 + $0x20] sm:$0xff]
    %v2715 = vld [vmem:[%s2709 + $0x28] sm:$0xff]
    %v2716 = vld [vmem:[%s2709 + $0x30] sm:$0xff]
    %v2717 = vld [vmem:[%s2709 + $0x38] sm:$0xff]
    %v2718 = vrot.slane %v2543, 4
    %v2719 = vsel %vm2564, %v2718, 0
    %2721 = vmatprep.subr.mxu0 0.0
    %2722 = vmatpush1.msra.mxu0 0.0
    %2723 = vmatprep.subr.mxu0 0.0
    %2724 = vmatpush1.msra.mxu0 0.0
    %2725 = vmatprep.subr.mxu0 0.0
    %2726 = vmatpush1.msra.mxu0 0.0
    %2727 = vmatprep.subr.mxu0 0.0
    %2728 = vmatpush1.msra.mxu0 0.0
    %2729 = vmatprep.subr.mxu0 0.0
    %2730 = vmatpush1.msra.mxu0 0.0
    %2731 = vmatprep.subr.mxu0 0.0
    %2732 = vmatpush1.msra.mxu0 0.0
    %2733 = vmatprep.subr.mxu0 0.0
    %2734 = vmatpush1.msra.mxu0 0.0
    %2735 = vmatprep.subr.mxu0 0.0
    %2736 = vmatpush1.msra.mxu0 0.0
    %2737 = vmatprep.subr.mxu0 0.0
    %2738 = vmatpush1.msra.mxu0 %v2717
    %2739 = vmatprep.subr.mxu0 0.0
    %2740 = vmatpush1.msra.mxu0 %v2716
    %2741 = vmatprep.subr.mxu0 0.0
    %2742 = vmatpush1.msra.mxu0 %v2715
    %2743 = vmatprep.subr.mxu0 0.0
    %2744 = vmatpush1.msra.mxu0 %v2714
    %2745 = vmatprep.subr.mxu0 0.0
    %2746 = vmatpush1.msra.mxu0 %v2713
    %2747 = vmatprep.subr.mxu0 0.0
    %2748 = vmatpush1.msra.mxu0 %v2712
    %2749 = vmatprep.subr.mxu0 0.0
    %2750 = vmatpush1.msra.mxu0 %v2711
    %2751 = vmatprep.subr.mxu0 0.0
    %2752 = vmatpush1.msra.mxu0 %v2710
    %2753 = vmatprep.subr.mxu0 0.0
    %2754 = vmatpush2.msra.mxu0 0.0
    %2755 = vmatprep.subr.mxu0 0.0
    %2756 = vmatpush2.msra.mxu0 0.0
    %2757 = vmatprep.subr.mxu0 0.0
    %2758 = vmatpush2.msra.mxu0 0.0
    %2759 = vmatprep.subr.mxu0 0.0
    %2760 = vmatpush2.msra.mxu0 0.0
    %2761 = vmatprep.subr.mxu0 0.0
    %2762 = vmatpush2.msra.mxu0 0.0
    %2763 = vmatprep.subr.mxu0 0.0
    %2764 = vmatpush2.msra.mxu0 0.0
    %2765 = vmatprep.subr.mxu0 0.0
    %2766 = vmatpush2.msra.mxu0 0.0
    %2767 = vmatprep.subr.mxu0 0.0
    %2768 = vmatpush2.msra.mxu0 0.0
    %2769 = vmatprep.subr.mxu0 0.0
    %2770 = vmatpush2.msra.mxu0 0.0
    %2771 = vmatprep.subr.mxu0 0.0
    %2772 = vmatpush2.msra.mxu0 0.0
    %2773 = vmatprep.subr.mxu0 0.0
    %2774 = vmatpush2.msra.mxu0 0.0
    %2775 = vmatprep.subr.mxu0 0.0
    %2776 = vmatpush2.msra.mxu0 0.0
    %2777 = vmatprep.subr.mxu0 0.0
    %2778 = vmatpush2.msra.mxu0 0.0
    %2779 = vmatprep.subr.mxu0 0.0
    %2780 = vmatpush2.msra.mxu0 0.0
    %2781 = vmatprep.subr.mxu0 0.0
    %2782 = vmatpush2.msra.mxu0 0.0
    %2783 = vmatprep.subr.mxu0 0.0
    %2784 = vmatpush2.msra.mxu0 0.0
    %2785 = vmatprep.mubr.f32.mxu0 0.0
    %2786 = vmatmul.mubr.f32.gmra.mxu0 %v2719
    %v2787 = vpop.f32.mrf.mxu0
    %v2788 = vadd.f32 0.0, %v2787
    %v2789 = vpop.f32.mrf.mxu0
    %2790 = vdwg.mxu0
    %v2791 = vadd.f32 %v2706, %v2788
    %s2792 = scalar_lea.vmem %s7, 192
    %v2793 = vld [vmem:[%s2792] sm:$0xff]
    %v2794 = vld [vmem:[%s2792 + $0x8] sm:$0xff]
    %v2795 = vld [vmem:[%s2792 + $0x10] sm:$0xff]
    %v2796 = vld [vmem:[%s2792 + $0x18] sm:$0xff]
    %v2797 = vld [vmem:[%s2792 + $0x20] sm:$0xff]
    %v2798 = vld [vmem:[%s2792 + $0x28] sm:$0xff]
    %v2799 = vld [vmem:[%s2792 + $0x30] sm:$0xff]
    %v2800 = vld [vmem:[%s2792 + $0x38] sm:$0xff]
    %v2801 = vrot.slane %v2543, 6
    %v2802 = vsel %vm2564, %v2801, 0
    %2804 = vmatprep.subr.mxu0 0.0
    %2805 = vmatpush1.msra.mxu0 0.0
    %2806 = vmatprep.subr.mxu0 0.0
    %2807 = vmatpush1.msra.mxu0 0.0
    %2808 = vmatprep.subr.mxu0 0.0
    %2809 = vmatpush1.msra.mxu0 0.0
    %2810 = vmatprep.subr.mxu0 0.0
    %2811 = vmatpush1.msra.mxu0 0.0
    %2812 = vmatprep.subr.mxu0 0.0
    %2813 = vmatpush1.msra.mxu0 0.0
    %2814 = vmatprep.subr.mxu0 0.0
    %2815 = vmatpush1.msra.mxu0 0.0
    %2816 = vmatprep.subr.mxu0 0.0
    %2817 = vmatpush1.msra.mxu0 0.0
    %2818 = vmatprep.subr.mxu0 0.0
    %2819 = vmatpush1.msra.mxu0 0.0
    %2820 = vmatprep.subr.mxu0 0.0
    %2821 = vmatpush1.msra.mxu0 %v2800
    %2822 = vmatprep.subr.mxu0 0.0
    %2823 = vmatpush1.msra.mxu0 %v2799
    %2824 = vmatprep.subr.mxu0 0.0
    %2825 = vmatpush1.msra.mxu0 %v2798
    %2826 = vmatprep.subr.mxu0 0.0
    %2827 = vmatpush1.msra.mxu0 %v2797
    %2828 = vmatprep.subr.mxu0 0.0
    %2829 = vmatpush1.msra.mxu0 %v2796
    %2830 = vmatprep.subr.mxu0 0.0
    %2831 = vmatpush1.msra.mxu0 %v2795
    %2832 = vmatprep.subr.mxu0 0.0
    %2833 = vmatpush1.msra.mxu0 %v2794
    %2834 = vmatprep.subr.mxu0 0.0
    %2835 = vmatpush1.msra.mxu0 %v2793
    %2836 = vmatprep.subr.mxu0 0.0
    %2837 = vmatpush2.msra.mxu0 0.0
    %2838 = vmatprep.subr.mxu0 0.0
    %2839 = vmatpush2.msra.mxu0 0.0
    %2840 = vmatprep.subr.mxu0 0.0
    %2841 = vmatpush2.msra.mxu0 0.0
    %2842 = vmatprep.subr.mxu0 0.0
    %2843 = vmatpush2.msra.mxu0 0.0
    %2844 = vmatprep.subr.mxu0 0.0
    %2845 = vmatpush2.msra.mxu0 0.0
    %2846 = vmatprep.subr.mxu0 0.0
    %2847 = vmatpush2.msra.mxu0 0.0
    %2848 = vmatprep.subr.mxu0 0.0
    %2849 = vmatpush2.msra.mxu0 0.0
    %2850 = vmatprep.subr.mxu0 0.0
    %2851 = vmatpush2.msra.mxu0 0.0
    %2852 = vmatprep.subr.mxu0 0.0
    %2853 = vmatpush2.msra.mxu0 0.0
    %2854 = vmatprep.subr.mxu0 0.0
    %2855 = vmatpush2.msra.mxu0 0.0
    %2856 = vmatprep.subr.mxu0 0.0
    %2857 = vmatpush2.msra.mxu0 0.0
    %2858 = vmatprep.subr.mxu0 0.0
    %2859 = vmatpush2.msra.mxu0 0.0
    %2860 = vmatprep.subr.mxu0 0.0
    %2861 = vmatpush2.msra.mxu0 0.0
    %2862 = vmatprep.subr.mxu0 0.0
    %2863 = vmatpush2.msra.mxu0 0.0
    %2864 = vmatprep.subr.mxu0 0.0
    %2865 = vmatpush2.msra.mxu0 0.0
    %2866 = vmatprep.subr.mxu0 0.0
    %2867 = vmatpush2.msra.mxu0 0.0
    %2868 = vmatprep.mubr.f32.mxu0 0.0
    %2869 = vmatmul.mubr.f32.gmra.mxu0 %v2802
    %v2870 = vpop.f32.mrf.mxu0
    %v2871 = vadd.f32 0.0, %v2870
    %v2872 = vpop.f32.mrf.mxu0
    %2873 = vdwg.mxu0
    %v2874 = vadd.f32 %v2791, %v2871
    %s2875 = scalar_lea.vmem %s7, 256
    %v2876 = vld [vmem:[%s2875] sm:$0xff]
    %v2877 = vld [vmem:[%s2875 + $0x8] sm:$0xff]
    %v2878 = vld [vmem:[%s2875 + $0x10] sm:$0xff]
    %v2879 = vld [vmem:[%s2875 + $0x18] sm:$0xff]
    %v2880 = vld [vmem:[%s2875 + $0x20] sm:$0xff]
    %v2881 = vld [vmem:[%s2875 + $0x28] sm:$0xff]
    %v2882 = vld [vmem:[%s2875 + $0x30] sm:$0xff]
    %v2883 = vld [vmem:[%s2875 + $0x38] sm:$0xff]
    %v2885 = vsel %vm2564, %v2544, 0
    %2887 = vmatprep.subr.mxu0 0.0
    %2888 = vmatpush1.msra.mxu0 0.0
    %2889 = vmatprep.subr.mxu0 0.0
    %2890 = vmatpush1.msra.mxu0 0.0
    %2891 = vmatprep.subr.mxu0 0.0
    %2892 = vmatpush1.msra.mxu0 0.0
    %2893 = vmatprep.subr.mxu0 0.0
    %2894 = vmatpush1.msra.mxu0 0.0
    %2895 = vmatprep.subr.mxu0 0.0
    %2896 = vmatpush1.msra.mxu0 0.0
    %2897 = vmatprep.subr.mxu0 0.0
    %2898 = vmatpush1.msra.mxu0 0.0
    %2899 = vmatprep.subr.mxu0 0.0
    %2900 = vmatpush1.msra.mxu0 0.0
    %2901 = vmatprep.subr.mxu0 0.0
    %2902 = vmatpush1.msra.mxu0 0.0
    %2903 = vmatprep.subr.mxu0 0.0
    %2904 = vmatpush1.msra.mxu0 %v2883
    %2905 = vmatprep.subr.mxu0 0.0
    %2906 = vmatpush1.msra.mxu0 %v2882
    %2907 = vmatprep.subr.mxu0 0.0
    %2908 = vmatpush1.msra.mxu0 %v2881
    %2909 = vmatprep.subr.mxu0 0.0
    %2910 = vmatpush1.msra.mxu0 %v2880
    %2911 = vmatprep.subr.mxu0 0.0
    %2912 = vmatpush1.msra.mxu0 %v2879
    %2913 = vmatprep.subr.mxu0 0.0
    %2914 = vmatpush1.msra.mxu0 %v2878
    %2915 = vmatprep.subr.mxu0 0.0
    %2916 = vmatpush1.msra.mxu0 %v2877
    %2917 = vmatprep.subr.mxu0 0.0
    %2918 = vmatpush1.msra.mxu0 %v2876
    %2919 = vmatprep.subr.mxu0 0.0
    %2920 = vmatpush2.msra.mxu0 0.0
    %2921 = vmatprep.subr.mxu0 0.0
    %2922 = vmatpush2.msra.mxu0 0.0
    %2923 = vmatprep.subr.mxu0 0.0
    %2924 = vmatpush2.msra.mxu0 0.0
    %2925 = vmatprep.subr.mxu0 0.0
    %2926 = vmatpush2.msra.mxu0 0.0
    %2927 = vmatprep.subr.mxu0 0.0
    %2928 = vmatpush2.msra.mxu0 0.0
    %2929 = vmatprep.subr.mxu0 0.0
    %2930 = vmatpush2.msra.mxu0 0.0
    %2931 = vmatprep.subr.mxu0 0.0
    %2932 = vmatpush2.msra.mxu0 0.0
    %2933 = vmatprep.subr.mxu0 0.0
    %2934 = vmatpush2.msra.mxu0 0.0
    %2935 = vmatprep.subr.mxu0 0.0
    %2936 = vmatpush2.msra.mxu0 0.0
    %2937 = vmatprep.subr.mxu0 0.0
    %2938 = vmatpush2.msra.mxu0 0.0
    %2939 = vmatprep.subr.mxu0 0.0
    %2940 = vmatpush2.msra.mxu0 0.0
    %2941 = vmatprep.subr.mxu0 0.0
    %2942 = vmatpush2.msra.mxu0 0.0
    %2943 = vmatprep.subr.mxu0 0.0
    %2944 = vmatpush2.msra.mxu0 0.0
    %2945 = vmatprep.subr.mxu0 0.0
    %2946 = vmatpush2.msra.mxu0 0.0
    %2947 = vmatprep.subr.mxu0 0.0
    %2948 = vmatpush2.msra.mxu0 0.0
    %2949 = vmatprep.subr.mxu0 0.0
    %2950 = vmatpush2.msra.mxu0 0.0
    %2951 = vmatprep.mubr.f32.mxu0 0.0
    %2952 = vmatmul.mubr.f32.gmra.mxu0 %v2885
    %v2953 = vpop.f32.mrf.mxu0
    %v2954 = vadd.f32 0.0, %v2953
    %v2955 = vpop.f32.mrf.mxu0
    %2956 = vdwg.mxu0
    %v2957 = vadd.f32 %v2874, %v2954
    %s2958 = scalar_lea.vmem %s7, 320
    %v2959 = vld [vmem:[%s2958] sm:$0xff]
    %v2960 = vld [vmem:[%s2958 + $0x8] sm:$0xff]
    %v2961 = vld [vmem:[%s2958 + $0x10] sm:$0xff]
    %v2962 = vld [vmem:[%s2958 + $0x18] sm:$0xff]
    %v2963 = vld [vmem:[%s2958 + $0x20] sm:$0xff]
    %v2964 = vld [vmem:[%s2958 + $0x28] sm:$0xff]
    %v2965 = vld [vmem:[%s2958 + $0x30] sm:$0xff]
    %v2966 = vld [vmem:[%s2958 + $0x38] sm:$0xff]
    %v2967 = vrot.slane %v2544, 2
    %v2968 = vsel %vm2564, %v2967, 0
    %2970 = vmatprep.subr.mxu0 0.0
    %2971 = vmatpush1.msra.mxu0 0.0
    %2972 = vmatprep.subr.mxu0 0.0
    %2973 = vmatpush1.msra.mxu0 0.0
    %2974 = vmatprep.subr.mxu0 0.0
    %2975 = vmatpush1.msra.mxu0 0.0
    %2976 = vmatprep.subr.mxu0 0.0
    %2977 = vmatpush1.msra.mxu0 0.0
    %2978 = vmatprep.subr.mxu0 0.0
    %2979 = vmatpush1.msra.mxu0 0.0
    %2980 = vmatprep.subr.mxu0 0.0
    %2981 = vmatpush1.msra.mxu0 0.0
    %2982 = vmatprep.subr.mxu0 0.0
    %2983 = vmatpush1.msra.mxu0 0.0
    %2984 = vmatprep.subr.mxu0 0.0
    %2985 = vmatpush1.msra.mxu0 0.0
    %2986 = vmatprep.subr.mxu0 0.0
    %2987 = vmatpush1.msra.mxu0 %v2966
    %2988 = vmatprep.subr.mxu0 0.0
    %2989 = vmatpush1.msra.mxu0 %v2965
    %2990 = vmatprep.subr.mxu0 0.0
    %2991 = vmatpush1.msra.mxu0 %v2964
    %2992 = vmatprep.subr.mxu0 0.0
    %2993 = vmatpush1.msra.mxu0 %v2963
    %2994 = vmatprep.subr.mxu0 0.0
    %2995 = vmatpush1.msra.mxu0 %v2962
    %2996 = vmatprep.subr.mxu0 0.0
    %2997 = vmatpush1.msra.mxu0 %v2961
    %2998 = vmatprep.subr.mxu0 0.0
    %2999 = vmatpush1.msra.mxu0 %v2960
    %3000 = vmatprep.subr.mxu0 0.0
    %3001 = vmatpush1.msra.mxu0 %v2959
    %3002 = vmatprep.subr.mxu0 0.0
    %3003 = vmatpush2.msra.mxu0 0.0
    %3004 = vmatprep.subr.mxu0 0.0
    %3005 = vmatpush2.msra.mxu0 0.0
    %3006 = vmatprep.subr.mxu0 0.0
    %3007 = vmatpush2.msra.mxu0 0.0
    %3008 = vmatprep.subr.mxu0 0.0
    %3009 = vmatpush2.msra.mxu0 0.0
    %3010 = vmatprep.subr.mxu0 0.0
    %3011 = vmatpush2.msra.mxu0 0.0
    %3012 = vmatprep.subr.mxu0 0.0
    %3013 = vmatpush2.msra.mxu0 0.0
    %3014 = vmatprep.subr.mxu0 0.0
    %3015 = vmatpush2.msra.mxu0 0.0
    %3016 = vmatprep.subr.mxu0 0.0
    %3017 = vmatpush2.msra.mxu0 0.0
    %3018 = vmatprep.subr.mxu0 0.0
    %3019 = vmatpush2.msra.mxu0 0.0
    %3020 = vmatprep.subr.mxu0 0.0
    %3021 = vmatpush2.msra.mxu0 0.0
    %3022 = vmatprep.subr.mxu0 0.0
    %3023 = vmatpush2.msra.mxu0 0.0
    %3024 = vmatprep.subr.mxu0 0.0
    %3025 = vmatpush2.msra.mxu0 0.0
    %3026 = vmatprep.subr.mxu0 0.0
    %3027 = vmatpush2.msra.mxu0 0.0
    %3028 = vmatprep.subr.mxu0 0.0
    %3029 = vmatpush2.msra.mxu0 0.0
    %3030 = vmatprep.subr.mxu0 0.0
    %3031 = vmatpush2.msra.mxu0 0.0
    %3032 = vmatprep.subr.mxu0 0.0
    %3033 = vmatpush2.msra.mxu0 0.0
    %3034 = vmatprep.mubr.f32.mxu0 0.0
    %3035 = vmatmul.mubr.f32.gmra.mxu0 %v2968
    %v3036 = vpop.f32.mrf.mxu0
    %v3037 = vadd.f32 0.0, %v3036
    %v3038 = vpop.f32.mrf.mxu0
    %3039 = vdwg.mxu0
    %v3040 = vadd.f32 %v2957, %v3037
    %s3041 = scalar_lea.vmem %s7, 384
    %v3042 = vld [vmem:[%s3041] sm:$0xff]
    %v3043 = vld [vmem:[%s3041 + $0x8] sm:$0xff]
    %v3044 = vld [vmem:[%s3041 + $0x10] sm:$0xff]
    %v3045 = vld [vmem:[%s3041 + $0x18] sm:$0xff]
    %v3046 = vld [vmem:[%s3041 + $0x20] sm:$0xff]
    %v3047 = vld [vmem:[%s3041 + $0x28] sm:$0xff]
    %v3048 = vld [vmem:[%s3041 + $0x30] sm:$0xff]
    %v3049 = vld [vmem:[%s3041 + $0x38] sm:$0xff]
    %v3050 = vrot.slane %v2544, 4
    %v3051 = vsel %vm2564, %v3050, 0
    %3053 = vmatprep.subr.mxu0 0.0
    %3054 = vmatpush1.msra.mxu0 0.0
    %3055 = vmatprep.subr.mxu0 0.0
    %3056 = vmatpush1.msra.mxu0 0.0
    %3057 = vmatprep.subr.mxu0 0.0
    %3058 = vmatpush1.msra.mxu0 0.0
    %3059 = vmatprep.subr.mxu0 0.0
    %3060 = vmatpush1.msra.mxu0 0.0
    %3061 = vmatprep.subr.mxu0 0.0
    %3062 = vmatpush1.msra.mxu0 0.0
    %3063 = vmatprep.subr.mxu0 0.0
    %3064 = vmatpush1.msra.mxu0 0.0
    %3065 = vmatprep.subr.mxu0 0.0
    %3066 = vmatpush1.msra.mxu0 0.0
    %3067 = vmatprep.subr.mxu0 0.0
    %3068 = vmatpush1.msra.mxu0 0.0
    %3069 = vmatprep.subr.mxu0 0.0
    %3070 = vmatpush1.msra.mxu0 %v3049
    %3071 = vmatprep.subr.mxu0 0.0
    %3072 = vmatpush1.msra.mxu0 %v3048
    %3073 = vmatprep.subr.mxu0 0.0
    %3074 = vmatpush1.msra.mxu0 %v3047
    %3075 = vmatprep.subr.mxu0 0.0
    %3076 = vmatpush1.msra.mxu0 %v3046
    %3077 = vmatprep.subr.mxu0 0.0
    %3078 = vmatpush1.msra.mxu0 %v3045
    %3079 = vmatprep.subr.mxu0 0.0
    %3080 = vmatpush1.msra.mxu0 %v3044
    %3081 = vmatprep.subr.mxu0 0.0
    %3082 = vmatpush1.msra.mxu0 %v3043
    %3083 = vmatprep.subr.mxu0 0.0
    %3084 = vmatpush1.msra.mxu0 %v3042
    %3085 = vmatprep.subr.mxu0 0.0
    %3086 = vmatpush2.msra.mxu0 0.0
    %3087 = vmatprep.subr.mxu0 0.0
    %3088 = vmatpush2.msra.mxu0 0.0
    %3089 = vmatprep.subr.mxu0 0.0
    %3090 = vmatpush2.msra.mxu0 0.0
    %3091 = vmatprep.subr.mxu0 0.0
    %3092 = vmatpush2.msra.mxu0 0.0
    %3093 = vmatprep.subr.mxu0 0.0
    %3094 = vmatpush2.msra.mxu0 0.0
    %3095 = vmatprep.subr.mxu0 0.0
    %3096 = vmatpush2.msra.mxu0 0.0
    %3097 = vmatprep.subr.mxu0 0.0
    %3098 = vmatpush2.msra.mxu0 0.0
    %3099 = vmatprep.subr.mxu0 0.0
    %3100 = vmatpush2.msra.mxu0 0.0
    %3101 = vmatprep.subr.mxu0 0.0
    %3102 = vmatpush2.msra.mxu0 0.0
    %3103 = vmatprep.subr.mxu0 0.0
    %3104 = vmatpush2.msra.mxu0 0.0
    %3105 = vmatprep.subr.mxu0 0.0
    %3106 = vmatpush2.msra.mxu0 0.0
    %3107 = vmatprep.subr.mxu0 0.0
    %3108 = vmatpush2.msra.mxu0 0.0
    %3109 = vmatprep.subr.mxu0 0.0
    %3110 = vmatpush2.msra.mxu0 0.0
    %3111 = vmatprep.subr.mxu0 0.0
    %3112 = vmatpush2.msra.mxu0 0.0
    %3113 = vmatprep.subr.mxu0 0.0
    %3114 = vmatpush2.msra.mxu0 0.0
    %3115 = vmatprep.subr.mxu0 0.0
    %3116 = vmatpush2.msra.mxu0 0.0
    %3117 = vmatprep.mubr.f32.mxu0 0.0
    %3118 = vmatmul.mubr.f32.gmra.mxu0 %v3051
    %v3119 = vpop.f32.mrf.mxu0
    %v3120 = vadd.f32 0.0, %v3119
    %v3121 = vpop.f32.mrf.mxu0
    %3122 = vdwg.mxu0
    %v3123 = vadd.f32 %v3040, %v3120
    %s3124 = scalar_lea.vmem %s7, 448
    %v3125 = vld [vmem:[%s3124] sm:$0xff]
    %v3126 = vld [vmem:[%s3124 + $0x8] sm:$0xff]
    %v3127 = vld [vmem:[%s3124 + $0x10] sm:$0xff]
    %v3128 = vld [vmem:[%s3124 + $0x18] sm:$0xff]
    %v3129 = vld [vmem:[%s3124 + $0x20] sm:$0xff]
    %v3130 = vld [vmem:[%s3124 + $0x28] sm:$0xff]
    %v3131 = vld [vmem:[%s3124 + $0x30] sm:$0xff]
    %v3132 = vld [vmem:[%s3124 + $0x38] sm:$0xff]
    %v3133 = vrot.slane %v2544, 6
    %v3134 = vsel %vm2564, %v3133, 0
    %3136 = vmatprep.subr.mxu0 0.0
    %3137 = vmatpush1.msra.mxu0 0.0
    %3138 = vmatprep.subr.mxu0 0.0
    %3139 = vmatpush1.msra.mxu0 0.0
    %3140 = vmatprep.subr.mxu0 0.0
    %3141 = vmatpush1.msra.mxu0 0.0
    %3142 = vmatprep.subr.mxu0 0.0
    %3143 = vmatpush1.msra.mxu0 0.0
    %3144 = vmatprep.subr.mxu0 0.0
    %3145 = vmatpush1.msra.mxu0 0.0
    %3146 = vmatprep.subr.mxu0 0.0
    %3147 = vmatpush1.msra.mxu0 0.0
    %3148 = vmatprep.subr.mxu0 0.0
    %3149 = vmatpush1.msra.mxu0 0.0
    %3150 = vmatprep.subr.mxu0 0.0
    %3151 = vmatpush1.msra.mxu0 0.0
    %3152 = vmatprep.subr.mxu0 0.0
    %3153 = vmatpush1.msra.mxu0 %v3132
    %3154 = vmatprep.subr.mxu0 0.0
    %3155 = vmatpush1.msra.mxu0 %v3131
    %3156 = vmatprep.subr.mxu0 0.0
    %3157 = vmatpush1.msra.mxu0 %v3130
    %3158 = vmatprep.subr.mxu0 0.0
    %3159 = vmatpush1.msra.mxu0 %v3129
    %3160 = vmatprep.subr.mxu0 0.0
    %3161 = vmatpush1.msra.mxu0 %v3128
    %3162 = vmatprep.subr.mxu0 0.0
    %3163 = vmatpush1.msra.mxu0 %v3127
    %3164 = vmatprep.subr.mxu0 0.0
    %3165 = vmatpush1.msra.mxu0 %v3126
    %3166 = vmatprep.subr.mxu0 0.0
    %3167 = vmatpush1.msra.mxu0 %v3125
    %3168 = vmatprep.subr.mxu0 0.0
    %3169 = vmatpush2.msra.mxu0 0.0
    %3170 = vmatprep.subr.mxu0 0.0
    %3171 = vmatpush2.msra.mxu0 0.0
    %3172 = vmatprep.subr.mxu0 0.0
    %3173 = vmatpush2.msra.mxu0 0.0
    %3174 = vmatprep.subr.mxu0 0.0
    %3175 = vmatpush2.msra.mxu0 0.0
    %3176 = vmatprep.subr.mxu0 0.0
    %3177 = vmatpush2.msra.mxu0 0.0
    %3178 = vmatprep.subr.mxu0 0.0
    %3179 = vmatpush2.msra.mxu0 0.0
    %3180 = vmatprep.subr.mxu0 0.0
    %3181 = vmatpush2.msra.mxu0 0.0
    %3182 = vmatprep.subr.mxu0 0.0
    %3183 = vmatpush2.msra.mxu0 0.0
    %3184 = vmatprep.subr.mxu0 0.0
    %3185 = vmatpush2.msra.mxu0 0.0
    %3186 = vmatprep.subr.mxu0 0.0
    %3187 = vmatpush2.msra.mxu0 0.0
    %3188 = vmatprep.subr.mxu0 0.0
    %3189 = vmatpush2.msra.mxu0 0.0
    %3190 = vmatprep.subr.mxu0 0.0
    %3191 = vmatpush2.msra.mxu0 0.0
    %3192 = vmatprep.subr.mxu0 0.0
    %3193 = vmatpush2.msra.mxu0 0.0
    %3194 = vmatprep.subr.mxu0 0.0
    %3195 = vmatpush2.msra.mxu0 0.0
    %3196 = vmatprep.subr.mxu0 0.0
    %3197 = vmatpush2.msra.mxu0 0.0
    %3198 = vmatprep.subr.mxu0 0.0
    %3199 = vmatpush2.msra.mxu0 0.0
    %3200 = vmatprep.mubr.f32.mxu0 0.0
    %3201 = vmatmul.mubr.f32.gmra.mxu0 %v3134
    %v3202 = vpop.f32.mrf.mxu0
    %v3203 = vadd.f32 0.0, %v3202
    %v3204 = vpop.f32.mrf.mxu0
    %3205 = vdwg.mxu0
    %v3206 = vadd.f32 %v3123, %v3203
    %v3207 = vld [vmem:[%s8] sm:$0x1]
    %v3209 = vlaneseq
    %v3210 = vshrl.u32 %v3209, 7
    %v3211 = vsub.s32 0, %v3210
    %v3212 = vrot.slane %v3207, %v3211
    %v3214 = vadd.f32 %v3206, %v3212
    %v3215 = vtanh.pop %v3214
    %v3216 = vld [vmem:[%s9] sm:$0xff]
    %v3217 = vld [vmem:[%s9 + $0x8] sm:$0xff]
    %v3218 = vld [vmem:[%s9 + $0x10] sm:$0xff]
    %v3219 = vld [vmem:[%s9 + $0x18] sm:$0xff]
    %v3220 = vld [vmem:[%s10] sm:$0x1]
    %v3222 = vlaneseq
    %v3223 = vshrl.u32 %v3222, 7
    %v3224 = vsub.s32 0, %v3223
    %v3225 = vrot.slane %v3220, %v3224
    %vm3227 = vcmask 261120
    %v3229 = vsel %vm3227, %v3215, 0
    %3231 = vmatprep.subr.mxu0 0.0
    %3232 = vmatpush1.msra.mxu0 0.0
    %3233 = vmatprep.subr.mxu0 0.0
    %3234 = vmatpush1.msra.mxu0 0.0
    %3235 = vmatprep.subr.mxu0 0.0
    %3236 = vmatpush1.msra.mxu0 0.0
    %3237 = vmatprep.subr.mxu0 0.0
    %3238 = vmatpush1.msra.mxu0 0.0
    %3239 = vmatprep.subr.mxu0 0.0
    %3240 = vmatpush1.msra.mxu0 0.0
    %3241 = vmatprep.subr.mxu0 0.0
    %3242 = vmatpush1.msra.mxu0 0.0
    %3243 = vmatprep.subr.mxu0 0.0
    %3244 = vmatpush1.msra.mxu0 0.0
    %3245 = vmatprep.subr.mxu0 0.0
    %3246 = vmatpush1.msra.mxu0 0.0
    %3247 = vmatprep.subr.mxu0 0.0
    %3248 = vmatpush1.msra.mxu0 0.0
    %3249 = vmatprep.subr.mxu0 0.0
    %3250 = vmatpush1.msra.mxu0 0.0
    %3251 = vmatprep.subr.mxu0 0.0
    %3252 = vmatpush1.msra.mxu0 0.0
    %3253 = vmatprep.subr.mxu0 0.0
    %3254 = vmatpush1.msra.mxu0 0.0
    %3255 = vmatprep.subr.mxu0 0.0
    %3256 = vmatpush1.msra.mxu0 %v3219
    %3257 = vmatprep.subr.mxu0 0.0
    %3258 = vmatpush1.msra.mxu0 %v3218
    %3259 = vmatprep.subr.mxu0 0.0
    %3260 = vmatpush1.msra.mxu0 %v3217
    %3261 = vmatprep.subr.mxu0 0.0
    %3262 = vmatpush1.msra.mxu0 %v3216
    %3263 = vmatprep.subr.mxu0 0.0
    %3264 = vmatpush2.msra.mxu0 0.0
    %3265 = vmatprep.subr.mxu0 0.0
    %3266 = vmatpush2.msra.mxu0 0.0
    %3267 = vmatprep.subr.mxu0 0.0
    %3268 = vmatpush2.msra.mxu0 0.0
    %3269 = vmatprep.subr.mxu0 0.0
    %3270 = vmatpush2.msra.mxu0 0.0
    %3271 = vmatprep.subr.mxu0 0.0
    %3272 = vmatpush2.msra.mxu0 0.0
    %3273 = vmatprep.subr.mxu0 0.0
    %3274 = vmatpush2.msra.mxu0 0.0
    %3275 = vmatprep.subr.mxu0 0.0
    %3276 = vmatpush2.msra.mxu0 0.0
    %3277 = vmatprep.subr.mxu0 0.0
    %3278 = vmatpush2.msra.mxu0 0.0
    %3279 = vmatprep.subr.mxu0 0.0
    %3280 = vmatpush2.msra.mxu0 0.0
    %3281 = vmatprep.subr.mxu0 0.0
    %3282 = vmatpush2.msra.mxu0 0.0
    %3283 = vmatprep.subr.mxu0 0.0
    %3284 = vmatpush2.msra.mxu0 0.0
    %3285 = vmatprep.subr.mxu0 0.0
    %3286 = vmatpush2.msra.mxu0 0.0
    %3287 = vmatprep.subr.mxu0 0.0
    %3288 = vmatpush2.msra.mxu0 0.0
    %3289 = vmatprep.subr.mxu0 0.0
    %3290 = vmatpush2.msra.mxu0 0.0
    %3291 = vmatprep.subr.mxu0 0.0
    %3292 = vmatpush2.msra.mxu0 0.0
    %3293 = vmatprep.subr.mxu0 0.0
    %3294 = vmatpush2.msra.mxu0 0.0
    %3295 = vmatprep.mubr.f32.mxu0 0.0
    %3296 = vmatmul.mubr.f32.gmra.mxu0 %v3229
    %v3297 = vpop.f32.mrf.mxu0
    %v3298 = vadd.f32 %v3225, %v3297
    %v3299 = vpop.f32.mrf.mxu0
    %3300 = vdwg.mxu0
    %vm3301 = vcmask 9216
    %3302 = vst.msk [vmem:[#allocation4] sm:$0x3] %vm3301, %v3298
    // Predicated region
    $region46: #{net_forward.1} parent=1 // pred_check
      _
    $region47: #{net_forward.1} parent=1 // pred_check_branch
      %3304 = sbr.rel (0) target = $region49
    $region48: #{net_forward.1} parent=1 // pred_region
      %s3306 = ssub.s32 32, 32
      %3307 = vsyncadd [#allocation5], %s3306
      %s3309 = sshll.u32 [#allocation4], 4
      %s3310 = int_to_ptr.vmem [resolvable:$true] %s3309
      %3312 = dma.vmem_to_hbm [thread:$0]  %s3310, 32, %s11, [#allocation5]
    $region49: #{net_forward.1} parent=1 // pred_fallthru
      _
    // Predicated region
    $region50: #{net_forward.1} parent=1 // pred_check
      _
    $region51: #{net_forward.1} parent=1 // pred_check_branch
      %3314 = sbr.rel (0) target = $region53
    $region52: #{net_forward.1} parent=1 // pred_region
      %3315 = dma.done [#allocation5], 32
    $region53: #{net_forward.1} parent=1 // pred_fallthru
      _
    %3316 = vsyncpa [#allocation5], 1

</llo_original>
